<compile_context>
chip_gen: v7x
topology: tpu7x:2x2x1
jax: 0.10.0
libtpu: 0.0.40
codegen_flags: <defaults>
</compile_context>

<pallas_src>
import functools

import jax
import jax.numpy as jnp
from jax.experimental import pallas as pl
from jax.experimental.pallas import tpu as pltpu


def _tap_offsets(W, L):
    """(lane_roll_shift, mask_index) per 3x3 tap, (kh, kw)-major; center -> None."""
    taps = []
    mi = 0
    for kh in range(3):
        for kw in range(3):
            dy, dx = kh - 1, kw - 1
            if dy == 0 and dx == 0:
                taps.append((0, None))
            else:
                taps.append(((-(dy * W + dx)) % L, mi))
                mi += 1
    return taps


# ----------------------------------------------------------------------------
# Fused Pallas kernel: conv1+PReLU -> conv2+PReLU -> conv3 + residual
# ----------------------------------------------------------------------------
def make_dual_kernel(H, W, nb, c_res, mxu_dtype):
    HW = H * W
    L = nb * HW                      # lanes per grid step (nb images folded in)
    taps = _tap_offsets(W, L)

    def kernel(x_ref, m_ref, w1_ref, b1_ref, a1_ref,
               w2_ref, b2_ref, a2_ref, w3_ref, b3_ref, o_ref):
        x = x_ref[...]                                   # (C_in_pad, L) f32
        m_all = m_ref[...]                               # (8, L) f32
        msk = [m_all[i:i + 1, :] for i in range(8)]      # sliced once, reused 3x

        def im2col(a):
            # Stack the 9 rolled+masked taps along sublanes -> (9*Cin, L).
            # Lane-axis rolls run on the XLU; SAME zero-padding is the mask mul.
            parts = []
            for shift, mi in taps:
                if mi is None:
                    parts.append(a)
                else:
                    parts.append(pltpu.roll(a, shift, 1) * msk[mi])
            return jnp.concatenate(parts, axis=0)

        def prelu(v, alpha):
            return jnp.where(v > 0, v, alpha * v)

        a1 = a1_ref[0, 0]
        a2 = a2_ref[0, 0]

        # --- layer 1: one (hidden, 9*C_in_pad) @ (9*C_in_pad, L) MXU matmul ----
        s1 = im2col(x).astype(mxu_dtype)
        y1 = jnp.dot(w1_ref[...], s1, preferred_element_type=jnp.float32)
        y1 = prelu(y1 + b1_ref[...], a1)                 # (hidden, L) f32

        # --- layer 2: one (hidden, 9*hidden) @ (9*hidden, L) MXU matmul --------
        s2 = im2col(y1).astype(mxu_dtype)
        y2 = jnp.dot(w2_ref[...], s2, preferred_element_type=jnp.float32)
        y2 = prelu(y2 + b2_ref[...], a2)                 # (hidden, L) f32

        # --- layer 3 (Cout=2): matmul per tap, THEN roll+mask the (2, L) result
        y2c = y2.astype(mxu_dtype)
        out = None
        for k, (shift, mi) in enumerate(taps):
            v = jnp.dot(w3_ref[k], y2c, preferred_element_type=jnp.float32)
            if mi is not None:
                v = pltpu.roll(v, shift, 1) * msk[mi]
            out = v if out is None else out + v
        # bias + residual (h == first c_res channels of the concatenated x)
        out = out + b3_ref[...] + x[:c_res, :]
        o_ref[...] = out.astype(o_ref.dtype)

    return kernel


# ----------------------------------------------------------------------------
# Dual_Network forward (plain-JAX glue around one fused pallas_call)
# ----------------------------------------------------------------------------
def dual_network_forward(params, h, f, forward_operator, g, *,
                         mxu_dtype=jnp.bfloat16, batch_blocks=1):
    # eval_f = forward_operator(f); x = cat((h, eval_f, g), dim=1).float()
    eval_f = forward_operator(f)
    x = jnp.concatenate([h, eval_f, g], axis=1).astype(jnp.float32)

    N, C_in, H, W = x.shape
    C_res = h.shape[1]
    HW = H * W
    assert N % batch_blocks == 0, "batch must split evenly over grid steps"
    nb = N // batch_blocks
    L = nb * HW

    # Channels-major slab: channels on sublanes, (batch, spatial) flattened onto
    # the lane axis.  The transpose is tiny wrapper-side layout plumbing.
    x_cl = jnp.transpose(x.reshape(N, C_in, HW), (1, 0, 2)).reshape(C_in, N * HW)

    # Pad input channels to a multiple of 8 so the im2col sublane stacking is
    # tile-aligned (padded rows/weight columns are zero -> no effect on result).
    C_in_pad = ((C_in + 7) // 8) * 8
    if C_in_pad != C_in:
        x_cl = jnp.pad(x_cl, ((0, C_in_pad - C_in), (0, 0)))

    # Boundary masks for the 8 off-center taps, precomputed once, tiled per image
    # in the block.  Same (kh, kw) order as _tap_offsets.
    pos = jnp.arange(HW, dtype=jnp.int32)[None, :]
    row, col = pos // W, pos % W
    mlist = []
    for kh in range(3):
        for kw in range(3):
            dy, dx = kh - 1, kw - 1
            if dy == 0 and dx == 0:
                continue
            mlist.append((row + dy >= 0) & (row + dy < H) &
                         (col + dx >= 0) & (col + dx < W))
    masks = jnp.tile(jnp.concatenate(mlist, axis=0).astype(jnp.float32), (1, nb))

    hidden = params["w1"].shape[0]
    C_out = params["w3"].shape[0]

    # PyTorch OIHW -> contiguous flat (Cout, 9*Cin) slabs, column order
    # (kh, kw, cin) to match the in-kernel im2col stacking.  conv3 stays per-tap
    # (roll/mask is applied after its channel matmul).
    flat_w = lambda w: (jnp.transpose(w, (0, 2, 3, 1))
                        .reshape(w.shape[0], -1).astype(mxu_dtype))
    w1_oihw = params["w1"]
    if C_in_pad != C_in:
        w1_oihw = jnp.pad(w1_oihw, ((0, 0), (0, C_in_pad - C_in), (0, 0), (0, 0)))
    w1 = flat_w(w1_oihw)                                         # (hidden, 9*C_in_pad)
    w2 = flat_w(params["w2"])                                    # (hidden, 9*hidden)
    w3 = (jnp.transpose(params["w3"], (2, 3, 0, 1))
          .reshape(9, C_out, hidden).astype(mxu_dtype))          # (9, C_out, hidden)
    b1 = params["b1"].reshape(-1, 1).astype(jnp.float32)
    b2 = params["b2"].reshape(-1, 1).astype(jnp.float32)
    b3 = params["b3"].reshape(-1, 1).astype(jnp.float32)
    a1 = jnp.asarray(params["a1"], jnp.float32).reshape(1, 1)
    a2 = jnp.asarray(params["a2"], jnp.float32).reshape(1, 1)

    full = lambda shape: pl.BlockSpec(shape, lambda i, _s=shape: (0,) * len(_s))
    smem = pl.BlockSpec(memory_space=pltpu.MemorySpace.SMEM)

    out_cl = pl.pallas_call(
        make_dual_kernel(H, W, nb, C_res, mxu_dtype),
        grid=(batch_blocks,),
        in_specs=[
            pl.BlockSpec((C_in_pad, L), lambda i: (0, i)),   # x slab (rows 0..C_res-1 = h)
            full((8, L)),                                    # tap boundary masks
            full(w1.shape), full((hidden, 1)), smem,         # conv1 + PReLU1 alpha
            full(w2.shape), full((hidden, 1)), smem,         # conv2 + PReLU2 alpha
            full(w3.shape), full((C_out, 1)),                # conv3
        ],
        out_specs=pl.BlockSpec((C_out, L), lambda i: (0, i)),
        out_shape=jax.ShapeDtypeStruct((C_out, N * HW), jnp.float32),
        compiler_params=pltpu.CompilerParams(
            dimension_semantics=("parallel",)),
    )(x_cl, masks, w1, b1, a1, w2, b2, a2, w3, b3)

    return jnp.transpose(out_cl.reshape(C_out, N, HW),
                         (1, 0, 2)).reshape(N, C_out, H, W)


# ----------------------------------------------------------------------------
# Pure-JAX reference (correctness check only)
# ----------------------------------------------------------------------------
def _conv_ref(x_nchw, w_oihw, b):
    y = jax.lax.conv_general_dilated(
        x_nchw, w_oihw, window_strides=(1, 1), padding="SAME",
        dimension_numbers=("NCHW", "OIHW", "NCHW"))
    return y + b.reshape(1, -1, 1, 1)


def dual_network_ref(params, h, f, forward_operator, g):
    eval_f = forward_operator(f)
    x = jnp.concatenate([h, eval_f, g], axis=1).astype(jnp.float32)
    y = _conv_ref(x, params["w1"], params["b1"])
    y = jnp.where(y > 0, y, params["a1"] * y)
    y = _conv_ref(y, params["w2"], params["b2"])
    y = jnp.where(y > 0, y, params["a2"] * y)
    y = _conv_ref(y, params["w3"], params["b3"])
    return h.astype(jnp.float32) + y


# ----------------------------------------------------------------------------
# Main
# ----------------------------------------------------------------------------
if __name__ == "__main__":
    # h has 2 channels, eval_f and g have 1 channel each ->
    #   first_input = 4, final_output = 2 (residual with h), hidden = 32.
    N, C_h, C_f, C_g, H, W = 2, 2, 1, 1, 16, 16
    first_input = C_h + C_f + C_g
    final_output = C_h
    hidden = 32

    key = jax.random.PRNGKey(0)
    ks = jax.random.split(key, 9)

    # PyTorch Conv2d weight layout (Cout, Cin, kH, kW); PReLU alpha = 0.25 default.
    params = {
        "w1": 0.1 * jax.random.normal(ks[0], (hidden, first_input, 3, 3), jnp.float32),
        "b1": 0.01 * jax.random.normal(ks[1], (hidden,), jnp.float32),
        "a1": jnp.float32(0.25),
        "w2": 0.1 * jax.random.normal(ks[2], (hidden, hidden, 3, 3), jnp.float32),
        "b2": 0.01 * jax.random.normal(ks[3], (hidden,), jnp.float32),
        "a2": jnp.float32(0.25),
        "w3": 0.1 * jax.random.normal(ks[4], (final_output, hidden, 3, 3), jnp.float32),
        "b3": 0.01 * jax.random.normal(ks[5], (final_output,), jnp.float32),
    }

    # Inputs (NCHW, PyTorch convention).
    h = jax.random.normal(ks[6], (N, C_h, H, W), jnp.float32)
    f = jax.random.normal(ks[7], (N, C_f, H, W), jnp.float32)
    g = jax.random.normal(ks[8], (N, C_g, H, W), jnp.float32)

    # forward_operator is a user-supplied callable in the PyTorch module; use a
    # deterministic elementwise operator (plain-JAX glue, outside the kernel).
    def forward_operator(t):
        return 0.5 * t + 0.1 * t * t

    ref = dual_network_ref(params, h, f, forward_operator, g)

    # 1) Structural check: f32 MXU operands, tight tolerance vs the XLA reference.
    run_f32 = jax.jit(functools.partial(dual_network_forward,
                                        forward_operator=forward_operator,
                                        mxu_dtype=jnp.float32))
    out_f32 = jax.block_until_ready(run_f32(params, h, g=g, f=f))
    assert out_f32.shape == (N, final_output, H, W)
    assert jnp.allclose(out_f32, ref, atol=2e-3, rtol=2e-3), "f32 kernel mismatch"

    # 2) Performance config: bf16 MXU operands (f32 accumulate/elementwise).
    #    Loose tolerance only covers bf16 operand rounding over 3 conv layers.
    run_bf16 = jax.jit(functools.partial(dual_network_forward,
                                         forward_operator=forward_operator,
                                         mxu_dtype=jnp.bfloat16))
    out_bf16 = jax.block_until_ready(run_bf16(params, h, g=g, f=f))
    assert out_bf16.shape == (N, final_output, H, W)
    assert jnp.allclose(out_bf16, ref, atol=1e-1, rtol=1e-1), "bf16 kernel mismatch"

    print("KERNEL_OK")
</pallas_src>

<mosaic_0001>
module attributes {stable_mosaic.version = 11 : i64} {
  func.func @kernel(%arg0: i32, %arg1: memref<8x512xf32, #tpu.memory_space<vmem>>, %arg2: memref<8x512xf32, #tpu.memory_space<vmem>>, %arg3: memref<32x72xf32, #tpu.memory_space<vmem>>, %arg4: memref<32x1xf32, #tpu.memory_space<vmem>>, %arg5: memref<1x1xf32, #tpu.memory_space<smem>>, %arg6: memref<32x288xf32, #tpu.memory_space<vmem>>, %arg7: memref<32x1xf32, #tpu.memory_space<vmem>>, %arg8: memref<1x1xf32, #tpu.memory_space<smem>>, %arg9: memref<9x2x32xf32, #tpu.memory_space<vmem>>, %arg10: memref<2x1xf32, #tpu.memory_space<vmem>>, %arg11: memref<2x512xf32, #tpu.memory_space<vmem>>) attributes {dimension_semantics = [#tpu.dimension_semantics<parallel>], iteration_bounds = array<i64: 1>, scalar_prefetch = 0 : i64, scratch_operands = 0 : i64, tpu.core_type = #tpu.core_type<tc>, window_params = [{transform_indices = @transform_0, window_bounds = array<i64: 8, 512>}, {pipeline_mode = #tpu.pipeline_mode<synchronous>, transform_indices = @transform_1, window_bounds = array<i64: 8, 512>}, {pipeline_mode = #tpu.pipeline_mode<synchronous>, transform_indices = @transform_2, window_bounds = array<i64: 32, 72>}, {pipeline_mode = #tpu.pipeline_mode<synchronous>, transform_indices = @transform_3, window_bounds = array<i64: 32, 1>}, {transform_indices = @transform_4, window_bounds = array<i64: 1, 1>}, {pipeline_mode = #tpu.pipeline_mode<synchronous>, transform_indices = @transform_5, window_bounds = array<i64: 32, 288>}, {pipeline_mode = #tpu.pipeline_mode<synchronous>, transform_indices = @transform_6, window_bounds = array<i64: 32, 1>}, {transform_indices = @transform_7, window_bounds = array<i64: 1, 1>}, {pipeline_mode = #tpu.pipeline_mode<synchronous>, transform_indices = @transform_8, window_bounds = array<i64: 9, 2, 32>}, {pipeline_mode = #tpu.pipeline_mode<synchronous>, transform_indices = @transform_9, window_bounds = array<i64: 2, 1>}, {transform_indices = @transform_10, window_bounds = array<i64: 2, 512>}]} {
    %c0 = arith.constant 0 : index
    %c0_0 = arith.constant 0 : index
    %0 = vector.load %arg1[%c0, %c0_0] : memref<8x512xf32, #tpu.memory_space<vmem>>, vector<8x512xf32>
    %c0_1 = arith.constant 0 : index
    %c0_2 = arith.constant 0 : index
    %1 = vector.load %arg2[%c0_1, %c0_2] : memref<8x512xf32, #tpu.memory_space<vmem>>, vector<8x512xf32>
    %2 = vector.extract_strided_slice %1 {offsets = [0, 0], sizes = [1, 512], strides = [1, 1]} : vector<8x512xf32> to vector<1x512xf32>
    %3 = vector.extract_strided_slice %1 {offsets = [1, 0], sizes = [1, 512], strides = [1, 1]} : vector<8x512xf32> to vector<1x512xf32>
    %4 = vector.extract_strided_slice %1 {offsets = [2, 0], sizes = [1, 512], strides = [1, 1]} : vector<8x512xf32> to vector<1x512xf32>
    %5 = vector.extract_strided_slice %1 {offsets = [3, 0], sizes = [1, 512], strides = [1, 1]} : vector<8x512xf32> to vector<1x512xf32>
    %6 = vector.extract_strided_slice %1 {offsets = [4, 0], sizes = [1, 512], strides = [1, 1]} : vector<8x512xf32> to vector<1x512xf32>
    %7 = vector.extract_strided_slice %1 {offsets = [5, 0], sizes = [1, 512], strides = [1, 1]} : vector<8x512xf32> to vector<1x512xf32>
    %8 = vector.extract_strided_slice %1 {offsets = [6, 0], sizes = [1, 512], strides = [1, 1]} : vector<8x512xf32> to vector<1x512xf32>
    %9 = vector.extract_strided_slice %1 {offsets = [7, 0], sizes = [1, 512], strides = [1, 1]} : vector<8x512xf32> to vector<1x512xf32>
    %c0_3 = arith.constant 0 : index
    %c0_4 = arith.constant 0 : index
    %10 = memref.load %arg5[%c0_3, %c0_4] : memref<1x1xf32, #tpu.memory_space<smem>>
    %c0_5 = arith.constant 0 : index
    %c0_6 = arith.constant 0 : index
    %11 = memref.load %arg8[%c0_5, %c0_6] : memref<1x1xf32, #tpu.memory_space<smem>>
    %c17_i32 = arith.constant 17 : i32
    %12 = tpu.dynamic_rotate %0 by %c17_i32 dim 1 : vector<8x512xf32>, i32 -> vector<8x512xf32>
    %13 = vector.broadcast %2 : vector<1x512xf32> to vector<8x512xf32>
    %14 = arith.mulf %12, %13 : vector<8x512xf32>
    %c16_i32 = arith.constant 16 : i32
    %15 = tpu.dynamic_rotate %0 by %c16_i32 dim 1 : vector<8x512xf32>, i32 -> vector<8x512xf32>
    %16 = vector.broadcast %3 : vector<1x512xf32> to vector<8x512xf32>
    %17 = arith.mulf %15, %16 : vector<8x512xf32>
    %c15_i32 = arith.constant 15 : i32
    %18 = tpu.dynamic_rotate %0 by %c15_i32 dim 1 : vector<8x512xf32>, i32 -> vector<8x512xf32>
    %19 = vector.broadcast %4 : vector<1x512xf32> to vector<8x512xf32>
    %20 = arith.mulf %18, %19 : vector<8x512xf32>
    %c1_i32 = arith.constant 1 : i32
    %21 = tpu.dynamic_rotate %0 by %c1_i32 dim 1 : vector<8x512xf32>, i32 -> vector<8x512xf32>
    %22 = vector.broadcast %5 : vector<1x512xf32> to vector<8x512xf32>
    %23 = arith.mulf %21, %22 : vector<8x512xf32>
    %c511_i32 = arith.constant 511 : i32
    %24 = tpu.dynamic_rotate %0 by %c511_i32 dim 1 : vector<8x512xf32>, i32 -> vector<8x512xf32>
    %25 = vector.broadcast %6 : vector<1x512xf32> to vector<8x512xf32>
    %26 = arith.mulf %24, %25 : vector<8x512xf32>
    %c497_i32 = arith.constant 497 : i32
    %27 = tpu.dynamic_rotate %0 by %c497_i32 dim 1 : vector<8x512xf32>, i32 -> vector<8x512xf32>
    %28 = vector.broadcast %7 : vector<1x512xf32> to vector<8x512xf32>
    %29 = arith.mulf %27, %28 : vector<8x512xf32>
    %c496_i32 = arith.constant 496 : i32
    %30 = tpu.dynamic_rotate %0 by %c496_i32 dim 1 : vector<8x512xf32>, i32 -> vector<8x512xf32>
    %31 = vector.broadcast %8 : vector<1x512xf32> to vector<8x512xf32>
    %32 = arith.mulf %30, %31 : vector<8x512xf32>
    %c495_i32 = arith.constant 495 : i32
    %33 = tpu.dynamic_rotate %0 by %c495_i32 dim 1 : vector<8x512xf32>, i32 -> vector<8x512xf32>
    %34 = vector.broadcast %9 : vector<1x512xf32> to vector<8x512xf32>
    %35 = arith.mulf %33, %34 : vector<8x512xf32>
    %36 = tpu.concatenate %14, %17, %20, %23, %0, %26, %29, %32, %35 in 0 : vector<8x512xf32>, vector<8x512xf32>, vector<8x512xf32>, vector<8x512xf32>, vector<8x512xf32>, vector<8x512xf32>, vector<8x512xf32>, vector<8x512xf32>, vector<8x512xf32> -> vector<72x512xf32>
    %c0_7 = arith.constant 0 : index
    %c0_8 = arith.constant 0 : index
    %37 = vector.load %arg3[%c0_7, %c0_8] : memref<32x72xf32, #tpu.memory_space<vmem>>, vector<32x72xf32>
    %cst = arith.constant dense<0.000000e+00> : vector<32x512xf32>
    %38 = tpu.matmul %37, %36, %cst {dimension_numbers = #tpu.dot_dimension_numbers<[1], [0], [0], [1], [0, 0, 1, 1], [], []>} : vector<32x72xf32>, vector<72x512xf32>, vector<32x512xf32> -> vector<32x512xf32>
    %c0_9 = arith.constant 0 : index
    %c0_10 = arith.constant 0 : index
    %39 = vector.load %arg4[%c0_9, %c0_10] : memref<32x1xf32, #tpu.memory_space<vmem>>, vector<32x1xf32>
    %40 = vector.broadcast %39 : vector<32x1xf32> to vector<32x512xf32>
    %41 = arith.addf %38, %40 : vector<32x512xf32>
    %cst_11 = arith.constant 0.000000e+00 : f32
    %42 = vector.broadcast %cst_11 : f32 to vector<32x512xf32>
    %43 = arith.cmpf ogt, %41, %42 : vector<32x512xf32>
    %44 = vector.broadcast %10 : f32 to vector<32x512xf32>
    %45 = arith.mulf %44, %41 : vector<32x512xf32>
    %46 = arith.select %43, %41, %45 : vector<32x512xi1>, vector<32x512xf32>
    %c17_i32_12 = arith.constant 17 : i32
    %47 = tpu.dynamic_rotate %46 by %c17_i32_12 dim 1 : vector<32x512xf32>, i32 -> vector<32x512xf32>
    %48 = vector.broadcast %2 : vector<1x512xf32> to vector<32x512xf32>
    %49 = arith.mulf %47, %48 : vector<32x512xf32>
    %c16_i32_13 = arith.constant 16 : i32
    %50 = tpu.dynamic_rotate %46 by %c16_i32_13 dim 1 : vector<32x512xf32>, i32 -> vector<32x512xf32>
    %51 = vector.broadcast %3 : vector<1x512xf32> to vector<32x512xf32>
    %52 = arith.mulf %50, %51 : vector<32x512xf32>
    %c15_i32_14 = arith.constant 15 : i32
    %53 = tpu.dynamic_rotate %46 by %c15_i32_14 dim 1 : vector<32x512xf32>, i32 -> vector<32x512xf32>
    %54 = vector.broadcast %4 : vector<1x512xf32> to vector<32x512xf32>
    %55 = arith.mulf %53, %54 : vector<32x512xf32>
    %c1_i32_15 = arith.constant 1 : i32
    %56 = tpu.dynamic_rotate %46 by %c1_i32_15 dim 1 : vector<32x512xf32>, i32 -> vector<32x512xf32>
    %57 = vector.broadcast %5 : vector<1x512xf32> to vector<32x512xf32>
    %58 = arith.mulf %56, %57 : vector<32x512xf32>
    %c511_i32_16 = arith.constant 511 : i32
    %59 = tpu.dynamic_rotate %46 by %c511_i32_16 dim 1 : vector<32x512xf32>, i32 -> vector<32x512xf32>
    %60 = vector.broadcast %6 : vector<1x512xf32> to vector<32x512xf32>
    %61 = arith.mulf %59, %60 : vector<32x512xf32>
    %c497_i32_17 = arith.constant 497 : i32
    %62 = tpu.dynamic_rotate %46 by %c497_i32_17 dim 1 : vector<32x512xf32>, i32 -> vector<32x512xf32>
    %63 = vector.broadcast %7 : vector<1x512xf32> to vector<32x512xf32>
    %64 = arith.mulf %62, %63 : vector<32x512xf32>
    %c496_i32_18 = arith.constant 496 : i32
    %65 = tpu.dynamic_rotate %46 by %c496_i32_18 dim 1 : vector<32x512xf32>, i32 -> vector<32x512xf32>
    %66 = vector.broadcast %8 : vector<1x512xf32> to vector<32x512xf32>
    %67 = arith.mulf %65, %66 : vector<32x512xf32>
    %c495_i32_19 = arith.constant 495 : i32
    %68 = tpu.dynamic_rotate %46 by %c495_i32_19 dim 1 : vector<32x512xf32>, i32 -> vector<32x512xf32>
    %69 = vector.broadcast %9 : vector<1x512xf32> to vector<32x512xf32>
    %70 = arith.mulf %68, %69 : vector<32x512xf32>
    %71 = tpu.concatenate %49, %52, %55, %58, %46, %61, %64, %67, %70 in 0 : vector<32x512xf32>, vector<32x512xf32>, vector<32x512xf32>, vector<32x512xf32>, vector<32x512xf32>, vector<32x512xf32>, vector<32x512xf32>, vector<32x512xf32>, vector<32x512xf32> -> vector<288x512xf32>
    %c0_20 = arith.constant 0 : index
    %c0_21 = arith.constant 0 : index
    %72 = vector.load %arg6[%c0_20, %c0_21] : memref<32x288xf32, #tpu.memory_space<vmem>>, vector<32x288xf32>
    %cst_22 = arith.constant dense<0.000000e+00> : vector<32x512xf32>
    %73 = tpu.matmul %72, %71, %cst_22 {dimension_numbers = #tpu.dot_dimension_numbers<[1], [0], [0], [1], [0, 0, 1, 1], [], []>} : vector<32x288xf32>, vector<288x512xf32>, vector<32x512xf32> -> vector<32x512xf32>
    %c0_23 = arith.constant 0 : index
    %c0_24 = arith.constant 0 : index
    %74 = vector.load %arg7[%c0_23, %c0_24] : memref<32x1xf32, #tpu.memory_space<vmem>>, vector<32x1xf32>
    %75 = vector.broadcast %74 : vector<32x1xf32> to vector<32x512xf32>
    %76 = arith.addf %73, %75 : vector<32x512xf32>
    %cst_25 = arith.constant 0.000000e+00 : f32
    %77 = vector.broadcast %cst_25 : f32 to vector<32x512xf32>
    %78 = arith.cmpf ogt, %76, %77 : vector<32x512xf32>
    %79 = vector.broadcast %11 : f32 to vector<32x512xf32>
    %80 = arith.mulf %79, %76 : vector<32x512xf32>
    %81 = arith.select %78, %76, %80 : vector<32x512xi1>, vector<32x512xf32>
    %c0_26 = arith.constant 0 : index
    %c0_27 = arith.constant 0 : index
    %c0_28 = arith.constant 0 : index
    %82 = vector.load %arg9[%c0_26, %c0_27, %c0_28] : memref<9x2x32xf32, #tpu.memory_space<vmem>>, vector<1x2x32xf32>
    %83 = vector.shape_cast %82 : vector<1x2x32xf32> to vector<2x32xf32>
    %cst_29 = arith.constant dense<0.000000e+00> : vector<2x512xf32>
    %84 = tpu.matmul %83, %81, %cst_29 {dimension_numbers = #tpu.dot_dimension_numbers<[1], [0], [0], [1], [0, 0, 1, 1], [], []>} : vector<2x32xf32>, vector<32x512xf32>, vector<2x512xf32> -> vector<2x512xf32>
    %c17_i32_30 = arith.constant 17 : i32
    %85 = tpu.dynamic_rotate %84 by %c17_i32_30 dim 1 : vector<2x512xf32>, i32 -> vector<2x512xf32>
    %86 = vector.broadcast %2 : vector<1x512xf32> to vector<2x512xf32>
    %87 = arith.mulf %85, %86 : vector<2x512xf32>
    %c1 = arith.constant 1 : index
    %c0_31 = arith.constant 0 : index
    %c0_32 = arith.constant 0 : index
    %88 = vector.load %arg9[%c1, %c0_31, %c0_32] : memref<9x2x32xf32, #tpu.memory_space<vmem>>, vector<1x2x32xf32>
    %89 = vector.shape_cast %88 : vector<1x2x32xf32> to vector<2x32xf32>
    %cst_33 = arith.constant dense<0.000000e+00> : vector<2x512xf32>
    %90 = tpu.matmul %89, %81, %cst_33 {dimension_numbers = #tpu.dot_dimension_numbers<[1], [0], [0], [1], [0, 0, 1, 1], [], []>} : vector<2x32xf32>, vector<32x512xf32>, vector<2x512xf32> -> vector<2x512xf32>
    %c16_i32_34 = arith.constant 16 : i32
    %91 = tpu.dynamic_rotate %90 by %c16_i32_34 dim 1 : vector<2x512xf32>, i32 -> vector<2x512xf32>
    %92 = vector.broadcast %3 : vector<1x512xf32> to vector<2x512xf32>
    %93 = arith.mulf %91, %92 : vector<2x512xf32>
    %94 = arith.addf %87, %93 : vector<2x512xf32>
    %c2 = arith.constant 2 : index
    %c0_35 = arith.constant 0 : index
    %c0_36 = arith.constant 0 : index
    %95 = vector.load %arg9[%c2, %c0_35, %c0_36] : memref<9x2x32xf32, #tpu.memory_space<vmem>>, vector<1x2x32xf32>
    %96 = vector.shape_cast %95 : vector<1x2x32xf32> to vector<2x32xf32>
    %cst_37 = arith.constant dense<0.000000e+00> : vector<2x512xf32>
    %97 = tpu.matmul %96, %81, %cst_37 {dimension_numbers = #tpu.dot_dimension_numbers<[1], [0], [0], [1], [0, 0, 1, 1], [], []>} : vector<2x32xf32>, vector<32x512xf32>, vector<2x512xf32> -> vector<2x512xf32>
    %c15_i32_38 = arith.constant 15 : i32
    %98 = tpu.dynamic_rotate %97 by %c15_i32_38 dim 1 : vector<2x512xf32>, i32 -> vector<2x512xf32>
    %99 = vector.broadcast %4 : vector<1x512xf32> to vector<2x512xf32>
    %100 = arith.mulf %98, %99 : vector<2x512xf32>
    %101 = arith.addf %94, %100 : vector<2x512xf32>
    %c3 = arith.constant 3 : index
    %c0_39 = arith.constant 0 : index
    %c0_40 = arith.constant 0 : index
    %102 = vector.load %arg9[%c3, %c0_39, %c0_40] : memref<9x2x32xf32, #tpu.memory_space<vmem>>, vector<1x2x32xf32>
    %103 = vector.shape_cast %102 : vector<1x2x32xf32> to vector<2x32xf32>
    %cst_41 = arith.constant dense<0.000000e+00> : vector<2x512xf32>
    %104 = tpu.matmul %103, %81, %cst_41 {dimension_numbers = #tpu.dot_dimension_numbers<[1], [0], [0], [1], [0, 0, 1, 1], [], []>} : vector<2x32xf32>, vector<32x512xf32>, vector<2x512xf32> -> vector<2x512xf32>
    %c1_i32_42 = arith.constant 1 : i32
    %105 = tpu.dynamic_rotate %104 by %c1_i32_42 dim 1 : vector<2x512xf32>, i32 -> vector<2x512xf32>
    %106 = vector.broadcast %5 : vector<1x512xf32> to vector<2x512xf32>
    %107 = arith.mulf %105, %106 : vector<2x512xf32>
    %108 = arith.addf %101, %107 : vector<2x512xf32>
    %c4 = arith.constant 4 : index
    %c0_43 = arith.constant 0 : index
    %c0_44 = arith.constant 0 : index
    %109 = vector.load %arg9[%c4, %c0_43, %c0_44] : memref<9x2x32xf32, #tpu.memory_space<vmem>>, vector<1x2x32xf32>
    %110 = vector.shape_cast %109 : vector<1x2x32xf32> to vector<2x32xf32>
    %cst_45 = arith.constant dense<0.000000e+00> : vector<2x512xf32>
    %111 = tpu.matmul %110, %81, %cst_45 {dimension_numbers = #tpu.dot_dimension_numbers<[1], [0], [0], [1], [0, 0, 1, 1], [], []>} : vector<2x32xf32>, vector<32x512xf32>, vector<2x512xf32> -> vector<2x512xf32>
    %112 = arith.addf %108, %111 : vector<2x512xf32>
    %c5 = arith.constant 5 : index
    %c0_46 = arith.constant 0 : index
    %c0_47 = arith.constant 0 : index
    %113 = vector.load %arg9[%c5, %c0_46, %c0_47] : memref<9x2x32xf32, #tpu.memory_space<vmem>>, vector<1x2x32xf32>
    %114 = vector.shape_cast %113 : vector<1x2x32xf32> to vector<2x32xf32>
    %cst_48 = arith.constant dense<0.000000e+00> : vector<2x512xf32>
    %115 = tpu.matmul %114, %81, %cst_48 {dimension_numbers = #tpu.dot_dimension_numbers<[1], [0], [0], [1], [0, 0, 1, 1], [], []>} : vector<2x32xf32>, vector<32x512xf32>, vector<2x512xf32> -> vector<2x512xf32>
    %c511_i32_49 = arith.constant 511 : i32
    %116 = tpu.dynamic_rotate %115 by %c511_i32_49 dim 1 : vector<2x512xf32>, i32 -> vector<2x512xf32>
    %117 = vector.broadcast %6 : vector<1x512xf32> to vector<2x512xf32>
    %118 = arith.mulf %116, %117 : vector<2x512xf32>
    %119 = arith.addf %112, %118 : vector<2x512xf32>
    %c6 = arith.constant 6 : index
    %c0_50 = arith.constant 0 : index
    %c0_51 = arith.constant 0 : index
    %120 = vector.load %arg9[%c6, %c0_50, %c0_51] : memref<9x2x32xf32, #tpu.memory_space<vmem>>, vector<1x2x32xf32>
    %121 = vector.shape_cast %120 : vector<1x2x32xf32> to vector<2x32xf32>
    %cst_52 = arith.constant dense<0.000000e+00> : vector<2x512xf32>
    %122 = tpu.matmul %121, %81, %cst_52 {dimension_numbers = #tpu.dot_dimension_numbers<[1], [0], [0], [1], [0, 0, 1, 1], [], []>} : vector<2x32xf32>, vector<32x512xf32>, vector<2x512xf32> -> vector<2x512xf32>
    %c497_i32_53 = arith.constant 497 : i32
    %123 = tpu.dynamic_rotate %122 by %c497_i32_53 dim 1 : vector<2x512xf32>, i32 -> vector<2x512xf32>
    %124 = vector.broadcast %7 : vector<1x512xf32> to vector<2x512xf32>
    %125 = arith.mulf %123, %124 : vector<2x512xf32>
    %126 = arith.addf %119, %125 : vector<2x512xf32>
    %c7 = arith.constant 7 : index
    %c0_54 = arith.constant 0 : index
    %c0_55 = arith.constant 0 : index
    %127 = vector.load %arg9[%c7, %c0_54, %c0_55] : memref<9x2x32xf32, #tpu.memory_space<vmem>>, vector<1x2x32xf32>
    %128 = vector.shape_cast %127 : vector<1x2x32xf32> to vector<2x32xf32>
    %cst_56 = arith.constant dense<0.000000e+00> : vector<2x512xf32>
    %129 = tpu.matmul %128, %81, %cst_56 {dimension_numbers = #tpu.dot_dimension_numbers<[1], [0], [0], [1], [0, 0, 1, 1], [], []>} : vector<2x32xf32>, vector<32x512xf32>, vector<2x512xf32> -> vector<2x512xf32>
    %c496_i32_57 = arith.constant 496 : i32
    %130 = tpu.dynamic_rotate %129 by %c496_i32_57 dim 1 : vector<2x512xf32>, i32 -> vector<2x512xf32>
    %131 = vector.broadcast %8 : vector<1x512xf32> to vector<2x512xf32>
    %132 = arith.mulf %130, %131 : vector<2x512xf32>
    %133 = arith.addf %126, %132 : vector<2x512xf32>
    %c8 = arith.constant 8 : index
    %c0_58 = arith.constant 0 : index
    %c0_59 = arith.constant 0 : index
    %134 = vector.load %arg9[%c8, %c0_58, %c0_59] : memref<9x2x32xf32, #tpu.memory_space<vmem>>, vector<1x2x32xf32>
    %135 = vector.shape_cast %134 : vector<1x2x32xf32> to vector<2x32xf32>
    %cst_60 = arith.constant dense<0.000000e+00> : vector<2x512xf32>
    %136 = tpu.matmul %135, %81, %cst_60 {dimension_numbers = #tpu.dot_dimension_numbers<[1], [0], [0], [1], [0, 0, 1, 1], [], []>} : vector<2x32xf32>, vector<32x512xf32>, vector<2x512xf32> -> vector<2x512xf32>
    %c495_i32_61 = arith.constant 495 : i32
    %137 = tpu.dynamic_rotate %136 by %c495_i32_61 dim 1 : vector<2x512xf32>, i32 -> vector<2x512xf32>
    %138 = vector.broadcast %9 : vector<1x512xf32> to vector<2x512xf32>
    %139 = arith.mulf %137, %138 : vector<2x512xf32>
    %140 = arith.addf %133, %139 : vector<2x512xf32>
    %c0_62 = arith.constant 0 : index
    %c0_63 = arith.constant 0 : index
    %141 = vector.load %arg10[%c0_62, %c0_63] : memref<2x1xf32, #tpu.memory_space<vmem>>, vector<2x1xf32>
    %142 = vector.broadcast %141 : vector<2x1xf32> to vector<2x512xf32>
    %143 = arith.addf %140, %142 : vector<2x512xf32>
    %144 = vector.extract_strided_slice %0 {offsets = [0, 0], sizes = [2, 512], strides = [1, 1]} : vector<8x512xf32> to vector<2x512xf32>
    %145 = arith.addf %143, %144 : vector<2x512xf32>
    %c0_64 = arith.constant 0 : index
    %c0_65 = arith.constant 0 : index
    %146 = vector.load %arg11[%c0_64, %c0_65] : memref<2x512xf32, #tpu.memory_space<vmem>>, vector<2x512xf32>
    tpu.vector_store %arg11[%c0_64, %c0_65], %145 {strides = array<i32>} : memref<2x512xf32, #tpu.memory_space<vmem>>, vector<2x512xf32>,
    return
  }
  func.func @transform_0(%arg0: i32) -> (i32, i32) {
    %c0_i32 = arith.constant 0 : i32
    %c0_i32_0 = arith.constant 0 : i32
    return %c0_i32, %arg0 : i32, i32
  }
  func.func @transform_1(%arg0: i32) -> (i32, i32) {
    %c0_i32 = arith.constant 0 : i32
    %c0_i32_0 = arith.constant 0 : i32
    %c0_i32_1 = arith.constant 0 : i32
    return %c0_i32, %c0_i32_0 : i32, i32
  }
  func.func @transform_2(%arg0: i32) -> (i32, i32) {
    %c0_i32 = arith.constant 0 : i32
    %c0_i32_0 = arith.constant 0 : i32
    %c0_i32_1 = arith.constant 0 : i32
    return %c0_i32, %c0_i32_0 : i32, i32
  }
  func.func @transform_3(%arg0: i32) -> (i32, i32) {
    %c0_i32 = arith.constant 0 : i32
    %c0_i32_0 = arith.constant 0 : i32
    %c0_i32_1 = arith.constant 0 : i32
    return %c0_i32, %c0_i32_0 : i32, i32
  }
  func.func @transform_4(%arg0: i32) -> (i32, i32) {
    %c0_i32 = arith.constant 0 : i32
    %c0_i32_0 = arith.constant 0 : i32
    %c0_i32_1 = arith.constant 0 : i32
    return %c0_i32, %c0_i32_0 : i32, i32
  }
  func.func @transform_5(%arg0: i32) -> (i32, i32) {
    %c0_i32 = arith.constant 0 : i32
    %c0_i32_0 = arith.constant 0 : i32
    %c0_i32_1 = arith.constant 0 : i32
    return %c0_i32, %c0_i32_0 : i32, i32
  }
  func.func @transform_6(%arg0: i32) -> (i32, i32) {
    %c0_i32 = arith.constant 0 : i32
    %c0_i32_0 = arith.constant 0 : i32
    %c0_i32_1 = arith.constant 0 : i32
    return %c0_i32, %c0_i32_0 : i32, i32
  }
  func.func @transform_7(%arg0: i32) -> (i32, i32) {
    %c0_i32 = arith.constant 0 : i32
    %c0_i32_0 = arith.constant 0 : i32
    %c0_i32_1 = arith.constant 0 : i32
    return %c0_i32, %c0_i32_0 : i32, i32
  }
  func.func @transform_8(%arg0: i32) -> (i32, i32, i32) {
    %c0_i32 = arith.constant 0 : i32
    %c0_i32_0 = arith.constant 0 : i32
    %c0_i32_1 = arith.constant 0 : i32
    %c0_i32_2 = arith.constant 0 : i32
    return %c0_i32, %c0_i32_0, %c0_i32_1 : i32, i32, i32
  }
  func.func @transform_9(%arg0: i32) -> (i32, i32) {
    %c0_i32 = arith.constant 0 : i32
    %c0_i32_0 = arith.constant 0 : i32
    %c0_i32_1 = arith.constant 0 : i32
    return %c0_i32, %c0_i32_0 : i32, i32
  }
  func.func @transform_10(%arg0: i32) -> (i32, i32) {
    %c0_i32 = arith.constant 0 : i32
    %c0_i32_0 = arith.constant 0 : i32
    return %c0_i32, %arg0 : i32, i32
  }
}

</mosaic_0001>

<llo_original>
// kernel: dual_network_forward.1
$region0: #{dual_network_forward.1}
  #allocation0 [shape = 'u32[]', space=smem, size = 0x4, offset = 0x4, fixed_abs, tag = 'smem constant byte address 0x4 - core index']
  #allocation1 [shape = 'u32[144,128]{1,0:T(1,128)}', space=vmem, size = 0x12000, scoped, tag = 'internal scratch']
  #allocation2 [shape = 'f32[1,1]{1,0:T(1,128)S(6)}', space=smem, size = 0x200, scoped, tag = 'scoped memory for dual_network_forward.1']
  #allocation3 [shape = 'f32[1,1]{1,0:T(1,128)S(6)}', space=smem, size = 0x200, scoped, tag = 'scoped memory for dual_network_forward.1']
  %s0 = inlined_call_operand.vmem [shape: f32[8,512], index: 0, kind: input, shape index: {}]
  %s1 = inlined_call_operand.vmem [shape: f32[8,512], index: 1, kind: input, shape index: {}]
  %s2 = inlined_call_operand.vmem [shape: f32[32,72], index: 2, kind: input, shape index: {}]
  %s3 = inlined_call_operand.vmem [shape: f32[32,1], index: 3, kind: input, shape index: {}]
  %s4 = inlined_call_operand.<no memory space> [shape: f32[1,1], index: 4, kind: input, shape index: {}]
  %s5 = inlined_call_operand.vmem [shape: f32[32,288], index: 5, kind: input, shape index: {}]
  %s6 = inlined_call_operand.vmem [shape: f32[32,1], index: 6, kind: input, shape index: {}]
  %s7 = inlined_call_operand.<no memory space> [shape: f32[1,1], index: 7, kind: input, shape index: {}]
  %s8 = inlined_call_operand.vmem [shape: f32[9,2,32], index: 8, kind: input, shape index: {}]
  %s9 = inlined_call_operand.vmem [shape: f32[2,1], index: 9, kind: input, shape index: {}]
  %s10 = inlined_call_operand.vmem [shape: f32[2,512], index: 10, kind: output, shape index: {}]
  %s11 = sld [smem:[#allocation0]]
  $region50: #{dual_network_forward.1} parent=0
    _
  %s13 = ssub.s32 1, %s11
  %s14 = scalar_select 0, %s13, %s11
  %15 = sst [smem:[#allocation2]] %s4
  %16 = sst [smem:[#allocation3]] %s7
  // Predicated region
  $region2: #{dual_network_forward.1} parent=0 // pred_check
    _
  $region3: #{dual_network_forward.1} parent=0 // pred_check_branch
    %18 = sbr.rel (0) target = $region5
  $region4: #{dual_network_forward.1} parent=0 // pred_region
    _
  $region5: #{dual_network_forward.1} parent=0 // pred_fallthru
    _
  // Predicated region
  $region6: #{dual_network_forward.1} parent=0 // pred_check
    _
  $region7: #{dual_network_forward.1} parent=0 // pred_check_branch
    %20 = sbr.rel (0) target = $region9
  $region8: #{dual_network_forward.1} parent=0 // pred_region
    _
  $region9: #{dual_network_forward.1} parent=0 // pred_fallthru
    _
  // Predicated region
  $region10: #{dual_network_forward.1} parent=0 // pred_check
    _
  $region11: #{dual_network_forward.1} parent=0 // pred_check_branch
    %22 = sbr.rel (0) target = $region13
  $region12: #{dual_network_forward.1} parent=0 // pred_region
    _
  $region13: #{dual_network_forward.1} parent=0 // pred_fallthru
    _
  // Predicated region
  $region14: #{dual_network_forward.1} parent=0 // pred_check
    _
  $region15: #{dual_network_forward.1} parent=0 // pred_check_branch
    %24 = sbr.rel (0) target = $region17
  $region16: #{dual_network_forward.1} parent=0 // pred_region
    _
  $region17: #{dual_network_forward.1} parent=0 // pred_fallthru
    _
  // Predicated region
  $region18: #{dual_network_forward.1} parent=0 // pred_check
    _
  $region19: #{dual_network_forward.1} parent=0 // pred_check_branch
    %26 = sbr.rel (0) target = $region21
  $region20: #{dual_network_forward.1} parent=0 // pred_region
    _
  $region21: #{dual_network_forward.1} parent=0 // pred_fallthru
    _
  // Predicated region
  $region22: #{dual_network_forward.1} parent=0 // pred_check
    _
  $region23: #{dual_network_forward.1} parent=0 // pred_check_branch
    %28 = sbr.rel (0) target = $region25
  $region24: #{dual_network_forward.1} parent=0 // pred_region
    _
  $region25: #{dual_network_forward.1} parent=0 // pred_fallthru
    _
  // Predicated region
  $region26: #{dual_network_forward.1} parent=0 // pred_check
    _
  $region27: #{dual_network_forward.1} parent=0 // pred_check_branch
    %30 = sbr.rel (0) target = $region29
  $region28: #{dual_network_forward.1} parent=0 // pred_region
    _
  $region29: #{dual_network_forward.1} parent=0 // pred_fallthru
    _
  // Predicated region
  $region30: #{dual_network_forward.1} parent=0 // pred_check
    _
  $region31: #{dual_network_forward.1} parent=0 // pred_check_branch
    %32 = sbr.rel (0) target = $region33
  $region32: #{dual_network_forward.1} parent=0 // pred_region
    _
  $region33: #{dual_network_forward.1} parent=0 // pred_fallthru
    _
  // Predicated region
  $region34: #{dual_network_forward.1} parent=0 // pred_check
    _
  $region35: #{dual_network_forward.1} parent=0 // pred_check_branch
    %34 = sbr.rel (0) target = $region37
  $region36: #{dual_network_forward.1} parent=0 // pred_region
    _
  $region37: #{dual_network_forward.1} parent=0 // pred_fallthru
    _
  // Predicated region
  $region38: #{dual_network_forward.1} parent=0 // pred_check
    _
  $region39: #{dual_network_forward.1} parent=0 // pred_check_branch
    %36 = sbr.rel (0) target = $region41
  $region40: #{dual_network_forward.1} parent=0 // pred_region
    _
  $region41: #{dual_network_forward.1} parent=0 // pred_fallthru
    _
  %v37 = vld [vmem:[%s0] sm:$0xff]
  %v38 = vld [vmem:[%s0 + $0x8] sm:$0xff]
  %v39 = vld [vmem:[%s0 + $0x10] sm:$0xff]
  %v40 = vld [vmem:[%s0 + $0x18] sm:$0xff]
  %v41 = vld [vmem:[%s1] sm:$0xff]
  %v42 = vld [vmem:[%s1 + $0x8] sm:$0xff]
  %v43 = vld [vmem:[%s1 + $0x10] sm:$0xff]
  %v44 = vld [vmem:[%s1 + $0x18] sm:$0xff]
  %s45 = sld [smem:[#allocation2]]
  %s46 = sld [smem:[#allocation3]]
  %47 = vrot.lane.b32.xlu0 %v37, 17
  %v48 = vpop.permute.xlu0 %47
  %49 = vrot.lane.b32.xlu0 %v38, 17
  %v50 = vpop.permute.xlu0 %49
  %51 = vrot.lane.b32.xlu0 %v39, 17
  %v52 = vpop.permute.xlu0 %51
  %53 = vrot.lane.b32.xlu0 %v40, 17
  %v54 = vpop.permute.xlu0 %53
  %v55 = vlaneseq
  %v56 = vand.u32 %v55, 127
  %vm57 = vcmp.lt.s32.totalorder %v56, 17
  %v58 = vsel %vm57, %v52, %v54
  %v59 = vsel %vm57, %v50, %v52
  %v60 = vsel %vm57, %v48, %v50
  %v61 = vsel %vm57, %v54, %v48
  %v62 = vlaneseq
  %v63 = vshrl.u32 %v62, 7
  %v64 = vsub.s32 0, %v63
  %v65 = vrot.slane %v41, %v64
  %v66 = vlaneseq
  %v67 = vshrl.u32 %v66, 7
  %v68 = vsub.s32 0, %v67
  %v69 = vrot.slane %v42, %v68
  %v70 = vlaneseq
  %v71 = vshrl.u32 %v70, 7
  %v72 = vsub.s32 0, %v71
  %v73 = vrot.slane %v43, %v72
  %v74 = vlaneseq
  %v75 = vshrl.u32 %v74, 7
  %v76 = vsub.s32 0, %v75
  %v77 = vrot.slane %v44, %v76
  %v78 = vmul.f32 %v61, %v65
  %v79 = vmul.f32 %v60, %v69
  %v80 = vmul.f32 %v59, %v73
  %v81 = vmul.f32 %v58, %v77
  %82 = vrot.lane.b32.xlu0 %v37, 16
  %v83 = vpop.permute.xlu0 %82
  %84 = vrot.lane.b32.xlu0 %v38, 16
  %v85 = vpop.permute.xlu0 %84
  %86 = vrot.lane.b32.xlu0 %v39, 16
  %v87 = vpop.permute.xlu0 %86
  %88 = vrot.lane.b32.xlu0 %v40, 16
  %v89 = vpop.permute.xlu0 %88
  %vm90 = vcmp.lt.s32.totalorder %v56, 16
  %v91 = vsel %vm90, %v87, %v89
  %v92 = vsel %vm90, %v85, %v87
  %v93 = vsel %vm90, %v83, %v85
  %v94 = vsel %vm90, %v89, %v83
  %v95 = vlaneseq
  %v96 = vshrl.u32 %v95, 7
  %v97 = vsub.s32 1, %v96
  %v98 = vrot.slane %v41, %v97
  %v99 = vlaneseq
  %v100 = vshrl.u32 %v99, 7
  %v101 = vsub.s32 1, %v100
  %v102 = vrot.slane %v42, %v101
  %v103 = vlaneseq
  %v104 = vshrl.u32 %v103, 7
  %v105 = vsub.s32 1, %v104
  %v106 = vrot.slane %v43, %v105
  %v107 = vlaneseq
  %v108 = vshrl.u32 %v107, 7
  %v109 = vsub.s32 1, %v108
  %v110 = vrot.slane %v44, %v109
  %v111 = vmul.f32 %v94, %v98
  %v112 = vmul.f32 %v93, %v102
  %v113 = vmul.f32 %v92, %v106
  %v114 = vmul.f32 %v91, %v110
  %115 = vrot.lane.b32.xlu0 %v37, 15
  %v116 = vpop.permute.xlu0 %115
  %117 = vrot.lane.b32.xlu0 %v38, 15
  %v118 = vpop.permute.xlu0 %117
  %119 = vrot.lane.b32.xlu0 %v39, 15
  %v120 = vpop.permute.xlu0 %119
  %121 = vrot.lane.b32.xlu0 %v40, 15
  %v122 = vpop.permute.xlu0 %121
  %vm123 = vcmp.lt.s32.totalorder %v56, 15
  %v124 = vsel %vm123, %v120, %v122
  %v125 = vsel %vm123, %v118, %v120
  %v126 = vsel %vm123, %v116, %v118
  %v127 = vsel %vm123, %v122, %v116
  %v128 = vlaneseq
  %v129 = vshrl.u32 %v128, 7
  %v130 = vsub.s32 2, %v129
  %v131 = vrot.slane %v41, %v130
  %v132 = vlaneseq
  %v133 = vshrl.u32 %v132, 7
  %v134 = vsub.s32 2, %v133
  %v135 = vrot.slane %v42, %v134
  %v136 = vlaneseq
  %v137 = vshrl.u32 %v136, 7
  %v138 = vsub.s32 2, %v137
  %v139 = vrot.slane %v43, %v138
  %v140 = vlaneseq
  %v141 = vshrl.u32 %v140, 7
  %v142 = vsub.s32 2, %v141
  %v143 = vrot.slane %v44, %v142
  %v144 = vmul.f32 %v127, %v131
  %v145 = vmul.f32 %v126, %v135
  %v146 = vmul.f32 %v125, %v139
  %v147 = vmul.f32 %v124, %v143
  %148 = vrot.lane.b32.xlu0 %v37, 1
  %v149 = vpop.permute.xlu0 %148
  %150 = vrot.lane.b32.xlu0 %v38, 1
  %v151 = vpop.permute.xlu0 %150
  %152 = vrot.lane.b32.xlu0 %v39, 1
  %v153 = vpop.permute.xlu0 %152
  %154 = vrot.lane.b32.xlu0 %v40, 1
  %v155 = vpop.permute.xlu0 %154
  %vm156 = vcmp.lt.s32.totalorder %v56, 1
  %v157 = vsel %vm156, %v153, %v155
  %v158 = vsel %vm156, %v151, %v153
  %v159 = vsel %vm156, %v149, %v151
  %v160 = vsel %vm156, %v155, %v149
  %v161 = vlaneseq
  %v162 = vshrl.u32 %v161, 7
  %v163 = vsub.s32 3, %v162
  %v164 = vrot.slane %v41, %v163
  %v165 = vlaneseq
  %v166 = vshrl.u32 %v165, 7
  %v167 = vsub.s32 3, %v166
  %v168 = vrot.slane %v42, %v167
  %v169 = vlaneseq
  %v170 = vshrl.u32 %v169, 7
  %v171 = vsub.s32 3, %v170
  %v172 = vrot.slane %v43, %v171
  %v173 = vlaneseq
  %v174 = vshrl.u32 %v173, 7
  %v175 = vsub.s32 3, %v174
  %v176 = vrot.slane %v44, %v175
  %v177 = vmul.f32 %v160, %v164
  %v178 = vmul.f32 %v159, %v168
  %v179 = vmul.f32 %v158, %v172
  %v180 = vmul.f32 %v157, %v176
  %181 = vrot.lane.b32.xlu0 %v37, 127
  %v182 = vpop.permute.xlu0 %181
  %183 = vrot.lane.b32.xlu0 %v38, 127
  %v184 = vpop.permute.xlu0 %183
  %185 = vrot.lane.b32.xlu0 %v39, 127
  %v186 = vpop.permute.xlu0 %185
  %187 = vrot.lane.b32.xlu0 %v40, 127
  %v188 = vpop.permute.xlu0 %187
  %vm189 = vcmp.lt.s32.totalorder %v56, 127
  %v190 = vsel %vm189, %v186, %v188
  %v191 = vsel %vm189, %v184, %v186
  %v192 = vsel %vm189, %v182, %v184
  %v193 = vsel %vm189, %v188, %v182
  %v194 = vlaneseq
  %v195 = vshrl.u32 %v194, 7
  %v196 = vsub.s32 4, %v195
  %v197 = vrot.slane %v41, %v196
  %v198 = vlaneseq
  %v199 = vshrl.u32 %v198, 7
  %v200 = vsub.s32 4, %v199
  %v201 = vrot.slane %v42, %v200
  %v202 = vlaneseq
  %v203 = vshrl.u32 %v202, 7
  %v204 = vsub.s32 4, %v203
  %v205 = vrot.slane %v43, %v204
  %v206 = vlaneseq
  %v207 = vshrl.u32 %v206, 7
  %v208 = vsub.s32 4, %v207
  %v209 = vrot.slane %v44, %v208
  %v210 = vmul.f32 %v192, %v197
  %v211 = vmul.f32 %v191, %v201
  %v212 = vmul.f32 %v190, %v205
  %v213 = vmul.f32 %v193, %v209
  %214 = vrot.lane.b32.xlu0 %v37, 113
  %v215 = vpop.permute.xlu0 %214
  %216 = vrot.lane.b32.xlu0 %v38, 113
  %v217 = vpop.permute.xlu0 %216
  %218 = vrot.lane.b32.xlu0 %v39, 113
  %v219 = vpop.permute.xlu0 %218
  %220 = vrot.lane.b32.xlu0 %v40, 113
  %v221 = vpop.permute.xlu0 %220
  %vm222 = vcmp.lt.s32.totalorder %v56, 113
  %v223 = vsel %vm222, %v219, %v221
  %v224 = vsel %vm222, %v217, %v219
  %v225 = vsel %vm222, %v215, %v217
  %v226 = vsel %vm222, %v221, %v215
  %v227 = vlaneseq
  %v228 = vshrl.u32 %v227, 7
  %v229 = vsub.s32 5, %v228
  %v230 = vrot.slane %v41, %v229
  %v231 = vlaneseq
  %v232 = vshrl.u32 %v231, 7
  %v233 = vsub.s32 5, %v232
  %v234 = vrot.slane %v42, %v233
  %v235 = vlaneseq
  %v236 = vshrl.u32 %v235, 7
  %v237 = vsub.s32 5, %v236
  %v238 = vrot.slane %v43, %v237
  %v239 = vlaneseq
  %v240 = vshrl.u32 %v239, 7
  %v241 = vsub.s32 5, %v240
  %v242 = vrot.slane %v44, %v241
  %v243 = vmul.f32 %v225, %v230
  %v244 = vmul.f32 %v224, %v234
  %v245 = vmul.f32 %v223, %v238
  %v246 = vmul.f32 %v226, %v242
  %247 = vrot.lane.b32.xlu0 %v37, 112
  %v248 = vpop.permute.xlu0 %247
  %249 = vrot.lane.b32.xlu0 %v38, 112
  %v250 = vpop.permute.xlu0 %249
  %251 = vrot.lane.b32.xlu0 %v39, 112
  %v252 = vpop.permute.xlu0 %251
  %253 = vrot.lane.b32.xlu0 %v40, 112
  %v254 = vpop.permute.xlu0 %253
  %vm255 = vcmp.lt.s32.totalorder %v56, 112
  %v256 = vsel %vm255, %v252, %v254
  %v257 = vsel %vm255, %v250, %v252
  %v258 = vsel %vm255, %v248, %v250
  %v259 = vsel %vm255, %v254, %v248
  %v260 = vlaneseq
  %v261 = vshrl.u32 %v260, 7
  %v262 = vsub.s32 6, %v261
  %v263 = vrot.slane %v41, %v262
  %v264 = vlaneseq
  %v265 = vshrl.u32 %v264, 7
  %v266 = vsub.s32 6, %v265
  %v267 = vrot.slane %v42, %v266
  %v268 = vlaneseq
  %v269 = vshrl.u32 %v268, 7
  %v270 = vsub.s32 6, %v269
  %v271 = vrot.slane %v43, %v270
  %v272 = vlaneseq
  %v273 = vshrl.u32 %v272, 7
  %v274 = vsub.s32 6, %v273
  %v275 = vrot.slane %v44, %v274
  %v276 = vmul.f32 %v258, %v263
  %v277 = vmul.f32 %v257, %v267
  %v278 = vmul.f32 %v256, %v271
  %v279 = vmul.f32 %v259, %v275
  %280 = vrot.lane.b32.xlu0 %v37, 111
  %v281 = vpop.permute.xlu0 %280
  %282 = vrot.lane.b32.xlu0 %v38, 111
  %v283 = vpop.permute.xlu0 %282
  %284 = vrot.lane.b32.xlu0 %v39, 111
  %v285 = vpop.permute.xlu0 %284
  %286 = vrot.lane.b32.xlu0 %v40, 111
  %v287 = vpop.permute.xlu0 %286
  %vm288 = vcmp.lt.s32.totalorder %v56, 111
  %v289 = vsel %vm288, %v285, %v287
  %v290 = vsel %vm288, %v283, %v285
  %v291 = vsel %vm288, %v281, %v283
  %v292 = vsel %vm288, %v287, %v281
  %v293 = vlaneseq
  %v294 = vshrl.u32 %v293, 7
  %v295 = vsub.s32 7, %v294
  %v296 = vrot.slane %v41, %v295
  %v297 = vlaneseq
  %v298 = vshrl.u32 %v297, 7
  %v299 = vsub.s32 7, %v298
  %v300 = vrot.slane %v42, %v299
  %v301 = vlaneseq
  %v302 = vshrl.u32 %v301, 7
  %v303 = vsub.s32 7, %v302
  %v304 = vrot.slane %v43, %v303
  %v305 = vlaneseq
  %v306 = vshrl.u32 %v305, 7
  %v307 = vsub.s32 7, %v306
  %v308 = vrot.slane %v44, %v307
  %v309 = vmul.f32 %v291, %v296
  %v310 = vmul.f32 %v290, %v300
  %v311 = vmul.f32 %v289, %v304
  %v312 = vmul.f32 %v292, %v308
  %v313 = vld [vmem:[%s2] sm:$0xff]
  %v314 = vld [vmem:[%s2 + $0x8] sm:$0xff]
  %v315 = vld [vmem:[%s2 + $0x10] sm:$0xff]
  %v316 = vld [vmem:[%s2 + $0x18] sm:$0xff]
  %v317 = vld [vmem:[%s3] sm:$0xff]
  %v318 = vld [vmem:[%s3 + $0x8] sm:$0xff]
  %v319 = vld [vmem:[%s3 + $0x10] sm:$0xff]
  %v320 = vld [vmem:[%s3 + $0x18] sm:$0xff]
  %322 = vset.pattern.permute.xlu0 0
  %323 = vperm.xlu0 %322, %v317
  %v324 = vpop.permute.xlu0 %323
  %327 = vset.pattern.permute.xlu0 0
  %328 = vperm.xlu0 %327, %v318
  %v329 = vpop.permute.xlu0 %328
  %332 = vset.pattern.permute.xlu0 0
  %333 = vperm.xlu0 %332, %v319
  %v334 = vpop.permute.xlu0 %333
  %337 = vset.pattern.permute.xlu0 0
  %338 = vperm.xlu0 %337, %v320
  %v339 = vpop.permute.xlu0 %338
  %vm341 = vcmask 588800
  %v343 = vsel %vm341, %v313, 0
  %v346 = vsel %vm341, %v314, 0
  %v349 = vsel %vm341, %v315, 0
  %v352 = vsel %vm341, %v316, 0
  %354 = vmatprep.subr.mxu0 %v79
  %355 = vmatpush1.msra.mxu0 %v78
  %356 = vmatprep.subr.mxu0 %v112
  %357 = vmatpush1.msra.mxu0 %v111
  %358 = vmatprep.subr.mxu0 %v145
  %359 = vmatpush1.msra.mxu0 %v144
  %360 = vmatprep.subr.mxu0 %v178
  %361 = vmatpush1.msra.mxu0 %v177
  %362 = vmatprep.subr.mxu0 %v38
  %363 = vmatpush1.msra.mxu0 %v37
  %364 = vmatprep.subr.mxu0 %v211
  %365 = vmatpush1.msra.mxu0 %v210
  %366 = vmatprep.subr.mxu0 %v244
  %367 = vmatpush1.msra.mxu0 %v243
  %368 = vmatprep.subr.mxu0 %v277
  %369 = vmatpush1.msra.mxu0 %v276
  %370 = vmatprep.subr.mxu0 %v310
  %371 = vmatpush1.msra.mxu0 %v309
  %372 = vmatprep.subr.mxu0 0.0
  %373 = vmatpush1.msra.mxu0 0.0
  %374 = vmatprep.subr.mxu0 0.0
  %375 = vmatpush1.msra.mxu0 0.0
  %376 = vmatprep.subr.mxu0 0.0
  %377 = vmatpush1.msra.mxu0 0.0
  %378 = vmatprep.subr.mxu0 0.0
  %379 = vmatpush1.msra.mxu0 0.0
  %380 = vmatprep.subr.mxu0 0.0
  %381 = vmatpush1.msra.mxu0 0.0
  %382 = vmatprep.subr.mxu0 0.0
  %383 = vmatpush1.msra.mxu0 0.0
  %384 = vmatprep.subr.mxu0 0.0
  %385 = vmatpush1.msra.mxu0 0.0
  %386 = vmatprep.subr.mxu0 0.0
  %387 = vmatpush1.msra.mxu0 0.0
  %388 = vmatprep.subr.mxu0 0.0
  %389 = vmatpush1.msra.mxu0 0.0
  %390 = vmatprep.subr.mxu0 0.0
  %391 = vmatpush1.msra.mxu0 0.0
  %392 = vmatprep.subr.mxu0 0.0
  %393 = vmatpush1.msra.mxu0 0.0
  %394 = vmatprep.subr.mxu0 0.0
  %395 = vmatpush1.msra.mxu0 0.0
  %396 = vmatprep.subr.mxu0 0.0
  %397 = vmatpush1.msra.mxu0 0.0
  %398 = vmatprep.subr.mxu0 0.0
  %399 = vmatpush1.msra.mxu0 0.0
  %400 = vmatprep.subr.mxu0 0.0
  %401 = vmatpush1.msra.mxu0 0.0
  %402 = vmatprep.subr.mxu0 0.0
  %403 = vmatpush1.msra.mxu0 0.0
  %404 = vmatprep.subr.mxu0 0.0
  %405 = vmatpush1.msra.mxu0 0.0
  %406 = vmatprep.subr.mxu0 0.0
  %407 = vmatpush1.msra.mxu0 0.0
  %408 = vmatprep.subr.mxu0 0.0
  %409 = vmatpush1.msra.mxu0 0.0
  %410 = vmatprep.subr.mxu0 0.0
  %411 = vmatpush1.msra.mxu0 0.0
  %412 = vmatprep.subr.mxu0 0.0
  %413 = vmatpush1.msra.mxu0 0.0
  %414 = vmatprep.subr.mxu0 0.0
  %415 = vmatpush1.msra.mxu0 0.0
  %416 = vmatprep.subr.mxu0 0.0
  %417 = vmatpush1.msra.mxu0 0.0
  %418 = vmatprep.mubr.f32.mxu0 0.0
  %419 = vmatmul.mubr.f32.gmra.mrb[0].mxu0 %v343
  %v420 = vpop.f32.mrb[0].mxu0
  %v421 = vadd.f32 %v324, %v420
  %v422 = vpop.f32.mrb[0].mxu0
  %v423 = vadd.f32 %v324, %v422
  %424 = vmatprep.mubr.f32.mxu0 0.0
  %425 = vmatmul.mubr.f32.gmra.mrb[0].mxu0 %v346
  %v426 = vpop.f32.mrb[0].mxu0
  %v427 = vadd.f32 %v329, %v426
  %v428 = vpop.f32.mrb[0].mxu0
  %v429 = vadd.f32 %v329, %v428
  %430 = vmatprep.mubr.f32.mxu0 0.0
  %431 = vmatmul.mubr.f32.gmra.mrb[0].mxu0 %v349
  %v432 = vpop.f32.mrb[0].mxu0
  %v433 = vadd.f32 %v334, %v432
  %v434 = vpop.f32.mrb[0].mxu0
  %v435 = vadd.f32 %v334, %v434
  %436 = vmatprep.mubr.f32.mxu0 0.0
  %437 = vmatmul.mubr.f32.gmra.mrb[0].mxu0 %v352
  %v438 = vpop.f32.mrb[0].mxu0
  %v439 = vadd.f32 %v339, %v438
  %v440 = vpop.f32.mrb[0].mxu0
  %v441 = vadd.f32 %v339, %v440
  %442 = vdwg.mxu0
  %443 = vmatprep.subr.mxu0 %v81
  %444 = vmatpush1.msra.mxu0 %v80
  %445 = vmatprep.subr.mxu0 %v114
  %446 = vmatpush1.msra.mxu0 %v113
  %447 = vmatprep.subr.mxu0 %v147
  %448 = vmatpush1.msra.mxu0 %v146
  %449 = vmatprep.subr.mxu0 %v180
  %450 = vmatpush1.msra.mxu0 %v179
  %451 = vmatprep.subr.mxu0 %v40
  %452 = vmatpush1.msra.mxu0 %v39
  %453 = vmatprep.subr.mxu0 %v213
  %454 = vmatpush1.msra.mxu0 %v212
  %455 = vmatprep.subr.mxu0 %v246
  %456 = vmatpush1.msra.mxu0 %v245
  %457 = vmatprep.subr.mxu0 %v279
  %458 = vmatpush1.msra.mxu0 %v278
  %459 = vmatprep.subr.mxu0 %v312
  %460 = vmatpush1.msra.mxu0 %v311
  %461 = vmatprep.subr.mxu0 0.0
  %462 = vmatpush1.msra.mxu0 0.0
  %463 = vmatprep.subr.mxu0 0.0
  %464 = vmatpush1.msra.mxu0 0.0
  %465 = vmatprep.subr.mxu0 0.0
  %466 = vmatpush1.msra.mxu0 0.0
  %467 = vmatprep.subr.mxu0 0.0
  %468 = vmatpush1.msra.mxu0 0.0
  %469 = vmatprep.subr.mxu0 0.0
  %470 = vmatpush1.msra.mxu0 0.0
  %471 = vmatprep.subr.mxu0 0.0
  %472 = vmatpush1.msra.mxu0 0.0
  %473 = vmatprep.subr.mxu0 0.0
  %474 = vmatpush1.msra.mxu0 0.0
  %475 = vmatprep.subr.mxu0 0.0
  %476 = vmatpush1.msra.mxu0 0.0
  %477 = vmatprep.subr.mxu0 0.0
  %478 = vmatpush1.msra.mxu0 0.0
  %479 = vmatprep.subr.mxu0 0.0
  %480 = vmatpush1.msra.mxu0 0.0
  %481 = vmatprep.subr.mxu0 0.0
  %482 = vmatpush1.msra.mxu0 0.0
  %483 = vmatprep.subr.mxu0 0.0
  %484 = vmatpush1.msra.mxu0 0.0
  %485 = vmatprep.subr.mxu0 0.0
  %486 = vmatpush1.msra.mxu0 0.0
  %487 = vmatprep.subr.mxu0 0.0
  %488 = vmatpush1.msra.mxu0 0.0
  %489 = vmatprep.subr.mxu0 0.0
  %490 = vmatpush1.msra.mxu0 0.0
  %491 = vmatprep.subr.mxu0 0.0
  %492 = vmatpush1.msra.mxu0 0.0
  %493 = vmatprep.subr.mxu0 0.0
  %494 = vmatpush1.msra.mxu0 0.0
  %495 = vmatprep.subr.mxu0 0.0
  %496 = vmatpush1.msra.mxu0 0.0
  %497 = vmatprep.subr.mxu0 0.0
  %498 = vmatpush1.msra.mxu0 0.0
  %499 = vmatprep.subr.mxu0 0.0
  %500 = vmatpush1.msra.mxu0 0.0
  %501 = vmatprep.subr.mxu0 0.0
  %502 = vmatpush1.msra.mxu0 0.0
  %503 = vmatprep.subr.mxu0 0.0
  %504 = vmatpush1.msra.mxu0 0.0
  %505 = vmatprep.subr.mxu0 0.0
  %506 = vmatpush1.msra.mxu0 0.0
  %507 = vmatprep.mubr.f32.mxu0 0.0
  %508 = vmatmul.mubr.f32.gmra.mrb[0].mxu0 %v343
  %v509 = vpop.f32.mrb[0].mxu0
  %v510 = vadd.f32 %v324, %v509
  %v511 = vpop.f32.mrb[0].mxu0
  %v512 = vadd.f32 %v324, %v511
  %513 = vmatprep.mubr.f32.mxu0 0.0
  %514 = vmatmul.mubr.f32.gmra.mrb[0].mxu0 %v346
  %v515 = vpop.f32.mrb[0].mxu0
  %v516 = vadd.f32 %v329, %v515
  %v517 = vpop.f32.mrb[0].mxu0
  %v518 = vadd.f32 %v329, %v517
  %519 = vmatprep.mubr.f32.mxu0 0.0
  %520 = vmatmul.mubr.f32.gmra.mrb[0].mxu0 %v349
  %v521 = vpop.f32.mrb[0].mxu0
  %v522 = vadd.f32 %v334, %v521
  %v523 = vpop.f32.mrb[0].mxu0
  %v524 = vadd.f32 %v334, %v523
  %525 = vmatprep.mubr.f32.mxu0 0.0
  %526 = vmatmul.mubr.f32.gmra.mrb[0].mxu0 %v352
  %v527 = vpop.f32.mrb[0].mxu0
  %v528 = vadd.f32 %v339, %v527
  %v529 = vpop.f32.mrb[0].mxu0
  %v530 = vadd.f32 %v339, %v529
  %531 = vdwg.mxu0
  %vm532 = vcmp.gt.f32.partialorder %v421, 0.0
  %vm533 = vcmp.gt.f32.partialorder %v423, 0.0
  %vm534 = vcmp.gt.f32.partialorder %v510, 0.0
  %vm535 = vcmp.gt.f32.partialorder %v512, 0.0
  %vm536 = vcmp.gt.f32.partialorder %v427, 0.0
  %vm537 = vcmp.gt.f32.partialorder %v429, 0.0
  %vm538 = vcmp.gt.f32.partialorder %v516, 0.0
  %vm539 = vcmp.gt.f32.partialorder %v518, 0.0
  %vm540 = vcmp.gt.f32.partialorder %v433, 0.0
  %vm541 = vcmp.gt.f32.partialorder %v435, 0.0
  %vm542 = vcmp.gt.f32.partialorder %v522, 0.0
  %vm543 = vcmp.gt.f32.partialorder %v524, 0.0
  %vm544 = vcmp.gt.f32.partialorder %v439, 0.0
  %vm545 = vcmp.gt.f32.partialorder %v441, 0.0
  %vm546 = vcmp.gt.f32.partialorder %v528, 0.0
  %vm547 = vcmp.gt.f32.partialorder %v530, 0.0
  %v548 = vstv %s45
  %v549 = vmul.f32 %v548, %v421
  %v550 = vmul.f32 %v548, %v423
  %v551 = vmul.f32 %v548, %v510
  %v552 = vmul.f32 %v548, %v512
  %v553 = vmul.f32 %v548, %v427
  %v554 = vmul.f32 %v548, %v429
  %v555 = vmul.f32 %v548, %v516
  %v556 = vmul.f32 %v548, %v518
  %v557 = vmul.f32 %v548, %v433
  %v558 = vmul.f32 %v548, %v435
  %v559 = vmul.f32 %v548, %v522
  %v560 = vmul.f32 %v548, %v524
  %v561 = vmul.f32 %v548, %v439
  %v562 = vmul.f32 %v548, %v441
  %v563 = vmul.f32 %v548, %v528
  %v564 = vmul.f32 %v548, %v530
  %v565 = vsel %vm532, %v421, %v549
  %v566 = vsel %vm533, %v423, %v550
  %v567 = vsel %vm534, %v510, %v551
  %v568 = vsel %vm535, %v512, %v552
  %v569 = vsel %vm536, %v427, %v553
  %v570 = vsel %vm537, %v429, %v554
  %v571 = vsel %vm538, %v516, %v555
  %v572 = vsel %vm539, %v518, %v556
  %v573 = vsel %vm540, %v433, %v557
  %v574 = vsel %vm541, %v435, %v558
  %v575 = vsel %vm542, %v522, %v559
  %v576 = vsel %vm543, %v524, %v560
  %v577 = vsel %vm544, %v439, %v561
  %v578 = vsel %vm545, %v441, %v562
  %v579 = vsel %vm546, %v528, %v563
  %v580 = vsel %vm547, %v530, %v564
  %581 = vrot.lane.b32.xlu0 %v565, 17
  %v582 = vpop.permute.xlu0 %581
  %583 = vrot.lane.b32.xlu0 %v569, 17
  %v584 = vpop.permute.xlu0 %583
  %585 = vrot.lane.b32.xlu0 %v573, 17
  %v586 = vpop.permute.xlu0 %585
  %587 = vrot.lane.b32.xlu0 %v577, 17
  %v588 = vpop.permute.xlu0 %587
  %589 = vrot.lane.b32.xlu0 %v566, 17
  %v590 = vpop.permute.xlu0 %589
  %591 = vrot.lane.b32.xlu0 %v570, 17
  %v592 = vpop.permute.xlu0 %591
  %593 = vrot.lane.b32.xlu0 %v574, 17
  %v594 = vpop.permute.xlu0 %593
  %595 = vrot.lane.b32.xlu0 %v578, 17
  %v596 = vpop.permute.xlu0 %595
  %597 = vrot.lane.b32.xlu0 %v567, 17
  %v598 = vpop.permute.xlu0 %597
  %599 = vrot.lane.b32.xlu0 %v571, 17
  %v600 = vpop.permute.xlu0 %599
  %601 = vrot.lane.b32.xlu0 %v575, 17
  %v602 = vpop.permute.xlu0 %601
  %603 = vrot.lane.b32.xlu0 %v579, 17
  %v604 = vpop.permute.xlu0 %603
  %605 = vrot.lane.b32.xlu0 %v568, 17
  %v606 = vpop.permute.xlu0 %605
  %607 = vrot.lane.b32.xlu0 %v572, 17
  %v608 = vpop.permute.xlu0 %607
  %609 = vrot.lane.b32.xlu0 %v576, 17
  %v610 = vpop.permute.xlu0 %609
  %611 = vrot.lane.b32.xlu0 %v580, 17
  %v612 = vpop.permute.xlu0 %611
  %v613 = vsel %vm57, %v598, %v606
  %v614 = vsel %vm57, %v600, %v608
  %v615 = vsel %vm57, %v602, %v610
  %v616 = vsel %vm57, %v604, %v612
  %v617 = vsel %vm57, %v590, %v598
  %v618 = vsel %vm57, %v592, %v600
  %v619 = vsel %vm57, %v594, %v602
  %v620 = vsel %vm57, %v596, %v604
  %v621 = vsel %vm57, %v582, %v590
  %v622 = vsel %vm57, %v584, %v592
  %v623 = vsel %vm57, %v586, %v594
  %v624 = vsel %vm57, %v588, %v596
  %v625 = vsel %vm57, %v606, %v582
  %v626 = vsel %vm57, %v608, %v584
  %v627 = vsel %vm57, %v610, %v586
  %v628 = vsel %vm57, %v612, %v588
  %v629 = vmul.f32 %v625, %v65
  %v630 = vmul.f32 %v621, %v69
  %v631 = vmul.f32 %v617, %v73
  %v632 = vmul.f32 %v613, %v77
  %v633 = vmul.f32 %v626, %v65
  %v634 = vmul.f32 %v622, %v69
  %v635 = vmul.f32 %v618, %v73
  %v636 = vmul.f32 %v614, %v77
  %v637 = vmul.f32 %v627, %v65
  %v638 = vmul.f32 %v623, %v69
  %v639 = vmul.f32 %v619, %v73
  %v640 = vmul.f32 %v615, %v77
  %v641 = vmul.f32 %v628, %v65
  %v642 = vmul.f32 %v624, %v69
  %v643 = vmul.f32 %v620, %v73
  %v644 = vmul.f32 %v616, %v77
  %645 = vrot.lane.b32.xlu0 %v565, 16
  %v646 = vpop.permute.xlu0 %645
  %647 = vrot.lane.b32.xlu0 %v569, 16
  %v648 = vpop.permute.xlu0 %647
  %649 = vrot.lane.b32.xlu0 %v573, 16
  %v650 = vpop.permute.xlu0 %649
  %651 = vrot.lane.b32.xlu0 %v577, 16
  %v652 = vpop.permute.xlu0 %651
  %653 = vrot.lane.b32.xlu0 %v566, 16
  %v654 = vpop.permute.xlu0 %653
  %655 = vrot.lane.b32.xlu0 %v570, 16
  %v656 = vpop.permute.xlu0 %655
  %657 = vrot.lane.b32.xlu0 %v574, 16
  %v658 = vpop.permute.xlu0 %657
  %659 = vrot.lane.b32.xlu0 %v578, 16
  %v660 = vpop.permute.xlu0 %659
  %661 = vrot.lane.b32.xlu0 %v567, 16
  %v662 = vpop.permute.xlu0 %661
  %663 = vrot.lane.b32.xlu0 %v571, 16
  %v664 = vpop.permute.xlu0 %663
  %665 = vrot.lane.b32.xlu0 %v575, 16
  %v666 = vpop.permute.xlu0 %665
  %667 = vrot.lane.b32.xlu0 %v579, 16
  %v668 = vpop.permute.xlu0 %667
  %669 = vrot.lane.b32.xlu0 %v568, 16
  %v670 = vpop.permute.xlu0 %669
  %671 = vrot.lane.b32.xlu0 %v572, 16
  %v672 = vpop.permute.xlu0 %671
  %673 = vrot.lane.b32.xlu0 %v576, 16
  %v674 = vpop.permute.xlu0 %673
  %675 = vrot.lane.b32.xlu0 %v580, 16
  %v676 = vpop.permute.xlu0 %675
  %v677 = vsel %vm90, %v662, %v670
  %v678 = vsel %vm90, %v664, %v672
  %v679 = vsel %vm90, %v666, %v674
  %v680 = vsel %vm90, %v668, %v676
  %v681 = vsel %vm90, %v654, %v662
  %v682 = vsel %vm90, %v656, %v664
  %v683 = vsel %vm90, %v658, %v666
  %v684 = vsel %vm90, %v660, %v668
  %v685 = vsel %vm90, %v646, %v654
  %v686 = vsel %vm90, %v648, %v656
  %v687 = vsel %vm90, %v650, %v658
  %v688 = vsel %vm90, %v652, %v660
  %v689 = vsel %vm90, %v670, %v646
  %v690 = vsel %vm90, %v672, %v648
  %v691 = vsel %vm90, %v674, %v650
  %v692 = vsel %vm90, %v676, %v652
  %v693 = vmul.f32 %v689, %v98
  %v694 = vmul.f32 %v685, %v102
  %v695 = vmul.f32 %v681, %v106
  %v696 = vmul.f32 %v677, %v110
  %v697 = vmul.f32 %v690, %v98
  %v698 = vmul.f32 %v686, %v102
  %v699 = vmul.f32 %v682, %v106
  %v700 = vmul.f32 %v678, %v110
  %v701 = vmul.f32 %v691, %v98
  %v702 = vmul.f32 %v687, %v102
  %v703 = vmul.f32 %v683, %v106
  %v704 = vmul.f32 %v679, %v110
  %v705 = vmul.f32 %v692, %v98
  %v706 = vmul.f32 %v688, %v102
  %v707 = vmul.f32 %v684, %v106
  %v708 = vmul.f32 %v680, %v110
  %709 = vrot.lane.b32.xlu0 %v565, 15
  %v710 = vpop.permute.xlu0 %709
  %711 = vrot.lane.b32.xlu0 %v569, 15
  %v712 = vpop.permute.xlu0 %711
  %713 = vrot.lane.b32.xlu0 %v573, 15
  %v714 = vpop.permute.xlu0 %713
  %715 = vrot.lane.b32.xlu0 %v577, 15
  %v716 = vpop.permute.xlu0 %715
  %717 = vrot.lane.b32.xlu0 %v566, 15
  %v718 = vpop.permute.xlu0 %717
  %719 = vrot.lane.b32.xlu0 %v570, 15
  %v720 = vpop.permute.xlu0 %719
  %721 = vrot.lane.b32.xlu0 %v574, 15
  %v722 = vpop.permute.xlu0 %721
  %723 = vrot.lane.b32.xlu0 %v578, 15
  %v724 = vpop.permute.xlu0 %723
  %725 = vrot.lane.b32.xlu0 %v567, 15
  %v726 = vpop.permute.xlu0 %725
  %727 = vrot.lane.b32.xlu0 %v571, 15
  %v728 = vpop.permute.xlu0 %727
  %729 = vrot.lane.b32.xlu0 %v575, 15
  %v730 = vpop.permute.xlu0 %729
  %731 = vrot.lane.b32.xlu0 %v579, 15
  %v732 = vpop.permute.xlu0 %731
  %733 = vrot.lane.b32.xlu0 %v568, 15
  %v734 = vpop.permute.xlu0 %733
  %735 = vrot.lane.b32.xlu0 %v572, 15
  %v736 = vpop.permute.xlu0 %735
  %737 = vrot.lane.b32.xlu0 %v576, 15
  %v738 = vpop.permute.xlu0 %737
  %739 = vrot.lane.b32.xlu0 %v580, 15
  %v740 = vpop.permute.xlu0 %739
  %v741 = vsel %vm123, %v726, %v734
  %v742 = vsel %vm123, %v728, %v736
  %v743 = vsel %vm123, %v730, %v738
  %v744 = vsel %vm123, %v732, %v740
  %v745 = vsel %vm123, %v718, %v726
  %v746 = vsel %vm123, %v720, %v728
  %v747 = vsel %vm123, %v722, %v730
  %v748 = vsel %vm123, %v724, %v732
  %v749 = vsel %vm123, %v710, %v718
  %v750 = vsel %vm123, %v712, %v720
  %v751 = vsel %vm123, %v714, %v722
  %v752 = vsel %vm123, %v716, %v724
  %v753 = vsel %vm123, %v734, %v710
  %v754 = vsel %vm123, %v736, %v712
  %v755 = vsel %vm123, %v738, %v714
  %v756 = vsel %vm123, %v740, %v716
  %v757 = vmul.f32 %v753, %v131
  %v758 = vmul.f32 %v749, %v135
  %v759 = vmul.f32 %v745, %v139
  %v760 = vmul.f32 %v741, %v143
  %v761 = vmul.f32 %v754, %v131
  %v762 = vmul.f32 %v750, %v135
  %v763 = vmul.f32 %v746, %v139
  %v764 = vmul.f32 %v742, %v143
  %v765 = vmul.f32 %v755, %v131
  %v766 = vmul.f32 %v751, %v135
  %v767 = vmul.f32 %v747, %v139
  %v768 = vmul.f32 %v743, %v143
  %v769 = vmul.f32 %v756, %v131
  %v770 = vmul.f32 %v752, %v135
  %v771 = vmul.f32 %v748, %v139
  %v772 = vmul.f32 %v744, %v143
  %773 = vrot.lane.b32.xlu0 %v565, 1
  %v774 = vpop.permute.xlu0 %773
  %775 = vrot.lane.b32.xlu0 %v569, 1
  %v776 = vpop.permute.xlu0 %775
  %777 = vrot.lane.b32.xlu0 %v573, 1
  %v778 = vpop.permute.xlu0 %777
  %779 = vrot.lane.b32.xlu0 %v577, 1
  %v780 = vpop.permute.xlu0 %779
  %781 = vrot.lane.b32.xlu0 %v566, 1
  %v782 = vpop.permute.xlu0 %781
  %783 = vrot.lane.b32.xlu0 %v570, 1
  %v784 = vpop.permute.xlu0 %783
  %785 = vrot.lane.b32.xlu0 %v574, 1
  %v786 = vpop.permute.xlu0 %785
  %787 = vrot.lane.b32.xlu0 %v578, 1
  %v788 = vpop.permute.xlu0 %787
  %789 = vrot.lane.b32.xlu0 %v567, 1
  %v790 = vpop.permute.xlu0 %789
  %791 = vrot.lane.b32.xlu0 %v571, 1
  %v792 = vpop.permute.xlu0 %791
  %793 = vrot.lane.b32.xlu0 %v575, 1
  %v794 = vpop.permute.xlu0 %793
  %795 = vrot.lane.b32.xlu0 %v579, 1
  %v796 = vpop.permute.xlu0 %795
  %797 = vrot.lane.b32.xlu0 %v568, 1
  %v798 = vpop.permute.xlu0 %797
  %799 = vrot.lane.b32.xlu0 %v572, 1
  %v800 = vpop.permute.xlu0 %799
  %801 = vrot.lane.b32.xlu0 %v576, 1
  %v802 = vpop.permute.xlu0 %801
  %803 = vrot.lane.b32.xlu0 %v580, 1
  %v804 = vpop.permute.xlu0 %803
  %v805 = vsel %vm156, %v790, %v798
  %v806 = vsel %vm156, %v792, %v800
  %v807 = vsel %vm156, %v794, %v802
  %v808 = vsel %vm156, %v796, %v804
  %v809 = vsel %vm156, %v782, %v790
  %v810 = vsel %vm156, %v784, %v792
  %v811 = vsel %vm156, %v786, %v794
  %v812 = vsel %vm156, %v788, %v796
  %v813 = vsel %vm156, %v774, %v782
  %v814 = vsel %vm156, %v776, %v784
  %v815 = vsel %vm156, %v778, %v786
  %v816 = vsel %vm156, %v780, %v788
  %v817 = vsel %vm156, %v798, %v774
  %v818 = vsel %vm156, %v800, %v776
  %v819 = vsel %vm156, %v802, %v778
  %v820 = vsel %vm156, %v804, %v780
  %v821 = vmul.f32 %v817, %v164
  %v822 = vmul.f32 %v813, %v168
  %v823 = vmul.f32 %v809, %v172
  %v824 = vmul.f32 %v805, %v176
  %v825 = vmul.f32 %v818, %v164
  %v826 = vmul.f32 %v814, %v168
  %v827 = vmul.f32 %v810, %v172
  %v828 = vmul.f32 %v806, %v176
  %v829 = vmul.f32 %v819, %v164
  %v830 = vmul.f32 %v815, %v168
  %v831 = vmul.f32 %v811, %v172
  %v832 = vmul.f32 %v807, %v176
  %v833 = vmul.f32 %v820, %v164
  %v834 = vmul.f32 %v816, %v168
  %v835 = vmul.f32 %v812, %v172
  %v836 = vmul.f32 %v808, %v176
  %837 = vrot.lane.b32.xlu0 %v565, 127
  %v838 = vpop.permute.xlu0 %837
  %839 = vrot.lane.b32.xlu0 %v569, 127
  %v840 = vpop.permute.xlu0 %839
  %841 = vrot.lane.b32.xlu0 %v573, 127
  %v842 = vpop.permute.xlu0 %841
  %843 = vrot.lane.b32.xlu0 %v577, 127
  %v844 = vpop.permute.xlu0 %843
  %845 = vrot.lane.b32.xlu0 %v566, 127
  %v846 = vpop.permute.xlu0 %845
  %847 = vrot.lane.b32.xlu0 %v570, 127
  %v848 = vpop.permute.xlu0 %847
  %849 = vrot.lane.b32.xlu0 %v574, 127
  %v850 = vpop.permute.xlu0 %849
  %851 = vrot.lane.b32.xlu0 %v578, 127
  %v852 = vpop.permute.xlu0 %851
  %853 = vrot.lane.b32.xlu0 %v567, 127
  %v854 = vpop.permute.xlu0 %853
  %855 = vrot.lane.b32.xlu0 %v571, 127
  %v856 = vpop.permute.xlu0 %855
  %857 = vrot.lane.b32.xlu0 %v575, 127
  %v858 = vpop.permute.xlu0 %857
  %859 = vrot.lane.b32.xlu0 %v579, 127
  %v860 = vpop.permute.xlu0 %859
  %861 = vrot.lane.b32.xlu0 %v568, 127
  %v862 = vpop.permute.xlu0 %861
  %863 = vrot.lane.b32.xlu0 %v572, 127
  %v864 = vpop.permute.xlu0 %863
  %865 = vrot.lane.b32.xlu0 %v576, 127
  %v866 = vpop.permute.xlu0 %865
  %867 = vrot.lane.b32.xlu0 %v580, 127
  %v868 = vpop.permute.xlu0 %867
  %v869 = vsel %vm189, %v854, %v862
  %v870 = vsel %vm189, %v856, %v864
  %v871 = vsel %vm189, %v858, %v866
  %v872 = vsel %vm189, %v860, %v868
  %v873 = vsel %vm189, %v846, %v854
  %v874 = vsel %vm189, %v848, %v856
  %v875 = vsel %vm189, %v850, %v858
  %v876 = vsel %vm189, %v852, %v860
  %v877 = vsel %vm189, %v838, %v846
  %v878 = vsel %vm189, %v840, %v848
  %v879 = vsel %vm189, %v842, %v850
  %v880 = vsel %vm189, %v844, %v852
  %v881 = vsel %vm189, %v862, %v838
  %v882 = vsel %vm189, %v864, %v840
  %v883 = vsel %vm189, %v866, %v842
  %v884 = vsel %vm189, %v868, %v844
  %v885 = vmul.f32 %v877, %v197
  %v886 = vmul.f32 %v873, %v201
  %v887 = vmul.f32 %v869, %v205
  %v888 = vmul.f32 %v881, %v209
  %v889 = vmul.f32 %v878, %v197
  %v890 = vmul.f32 %v874, %v201
  %v891 = vmul.f32 %v870, %v205
  %v892 = vmul.f32 %v882, %v209
  %v893 = vmul.f32 %v879, %v197
  %v894 = vmul.f32 %v875, %v201
  %v895 = vmul.f32 %v871, %v205
  %v896 = vmul.f32 %v883, %v209
  %v897 = vmul.f32 %v880, %v197
  %v898 = vmul.f32 %v876, %v201
  %v899 = vmul.f32 %v872, %v205
  %v900 = vmul.f32 %v884, %v209
  %901 = vrot.lane.b32.xlu0 %v565, 113
  %v902 = vpop.permute.xlu0 %901
  %903 = vrot.lane.b32.xlu0 %v569, 113
  %v904 = vpop.permute.xlu0 %903
  %905 = vrot.lane.b32.xlu0 %v573, 113
  %v906 = vpop.permute.xlu0 %905
  %907 = vrot.lane.b32.xlu0 %v577, 113
  %v908 = vpop.permute.xlu0 %907
  %909 = vrot.lane.b32.xlu0 %v566, 113
  %v910 = vpop.permute.xlu0 %909
  %911 = vrot.lane.b32.xlu0 %v570, 113
  %v912 = vpop.permute.xlu0 %911
  %913 = vrot.lane.b32.xlu0 %v574, 113
  %v914 = vpop.permute.xlu0 %913
  %915 = vrot.lane.b32.xlu0 %v578, 113
  %v916 = vpop.permute.xlu0 %915
  %917 = vrot.lane.b32.xlu0 %v567, 113
  %v918 = vpop.permute.xlu0 %917
  %919 = vrot.lane.b32.xlu0 %v571, 113
  %v920 = vpop.permute.xlu0 %919
  %921 = vrot.lane.b32.xlu0 %v575, 113
  %v922 = vpop.permute.xlu0 %921
  %923 = vrot.lane.b32.xlu0 %v579, 113
  %v924 = vpop.permute.xlu0 %923
  %925 = vrot.lane.b32.xlu0 %v568, 113
  %v926 = vpop.permute.xlu0 %925
  %927 = vrot.lane.b32.xlu0 %v572, 113
  %v928 = vpop.permute.xlu0 %927
  %929 = vrot.lane.b32.xlu0 %v576, 113
  %v930 = vpop.permute.xlu0 %929
  %931 = vrot.lane.b32.xlu0 %v580, 113
  %v932 = vpop.permute.xlu0 %931
  %v933 = vsel %vm222, %v918, %v926
  %v934 = vsel %vm222, %v920, %v928
  %v935 = vsel %vm222, %v922, %v930
  %v936 = vsel %vm222, %v924, %v932
  %v937 = vsel %vm222, %v910, %v918
  %v938 = vsel %vm222, %v912, %v920
  %v939 = vsel %vm222, %v914, %v922
  %v940 = vsel %vm222, %v916, %v924
  %v941 = vsel %vm222, %v902, %v910
  %v942 = vsel %vm222, %v904, %v912
  %v943 = vsel %vm222, %v906, %v914
  %v944 = vsel %vm222, %v908, %v916
  %v945 = vsel %vm222, %v926, %v902
  %v946 = vsel %vm222, %v928, %v904
  %v947 = vsel %vm222, %v930, %v906
  %v948 = vsel %vm222, %v932, %v908
  %v949 = vmul.f32 %v941, %v230
  %v950 = vmul.f32 %v937, %v234
  %v951 = vmul.f32 %v933, %v238
  %v952 = vmul.f32 %v945, %v242
  %v953 = vmul.f32 %v942, %v230
  %v954 = vmul.f32 %v938, %v234
  %v955 = vmul.f32 %v934, %v238
  %v956 = vmul.f32 %v946, %v242
  %v957 = vmul.f32 %v943, %v230
  %v958 = vmul.f32 %v939, %v234
  %v959 = vmul.f32 %v935, %v238
  %v960 = vmul.f32 %v947, %v242
  %v961 = vmul.f32 %v944, %v230
  %v962 = vmul.f32 %v940, %v234
  %v963 = vmul.f32 %v936, %v238
  %v964 = vmul.f32 %v948, %v242
  %965 = vrot.lane.b32.xlu0 %v565, 112
  %v966 = vpop.permute.xlu0 %965
  %967 = vrot.lane.b32.xlu0 %v569, 112
  %v968 = vpop.permute.xlu0 %967
  %969 = vrot.lane.b32.xlu0 %v573, 112
  %v970 = vpop.permute.xlu0 %969
  %971 = vrot.lane.b32.xlu0 %v577, 112
  %v972 = vpop.permute.xlu0 %971
  %973 = vrot.lane.b32.xlu0 %v566, 112
  %v974 = vpop.permute.xlu0 %973
  %975 = vrot.lane.b32.xlu0 %v570, 112
  %v976 = vpop.permute.xlu0 %975
  %977 = vrot.lane.b32.xlu0 %v574, 112
  %v978 = vpop.permute.xlu0 %977
  %979 = vrot.lane.b32.xlu0 %v578, 112
  %v980 = vpop.permute.xlu0 %979
  %981 = vrot.lane.b32.xlu0 %v567, 112
  %v982 = vpop.permute.xlu0 %981
  %983 = vrot.lane.b32.xlu0 %v571, 112
  %v984 = vpop.permute.xlu0 %983
  %985 = vrot.lane.b32.xlu0 %v575, 112
  %v986 = vpop.permute.xlu0 %985
  %987 = vrot.lane.b32.xlu0 %v579, 112
  %v988 = vpop.permute.xlu0 %987
  %989 = vrot.lane.b32.xlu0 %v568, 112
  %v990 = vpop.permute.xlu0 %989
  %991 = vrot.lane.b32.xlu0 %v572, 112
  %v992 = vpop.permute.xlu0 %991
  %993 = vrot.lane.b32.xlu0 %v576, 112
  %v994 = vpop.permute.xlu0 %993
  %995 = vrot.lane.b32.xlu0 %v580, 112
  %v996 = vpop.permute.xlu0 %995
  %v997 = vsel %vm255, %v982, %v990
  %v998 = vsel %vm255, %v984, %v992
  %v999 = vsel %vm255, %v986, %v994
  %v1000 = vsel %vm255, %v988, %v996
  %v1001 = vsel %vm255, %v974, %v982
  %v1002 = vsel %vm255, %v976, %v984
  %v1003 = vsel %vm255, %v978, %v986
  %v1004 = vsel %vm255, %v980, %v988
  %v1005 = vsel %vm255, %v966, %v974
  %v1006 = vsel %vm255, %v968, %v976
  %v1007 = vsel %vm255, %v970, %v978
  %v1008 = vsel %vm255, %v972, %v980
  %v1009 = vsel %vm255, %v990, %v966
  %v1010 = vsel %vm255, %v992, %v968
  %v1011 = vsel %vm255, %v994, %v970
  %v1012 = vsel %vm255, %v996, %v972
  %v1013 = vmul.f32 %v1005, %v263
  %v1014 = vmul.f32 %v1001, %v267
  %v1015 = vmul.f32 %v997, %v271
  %v1016 = vmul.f32 %v1009, %v275
  %v1017 = vmul.f32 %v1006, %v263
  %v1018 = vmul.f32 %v1002, %v267
  %v1019 = vmul.f32 %v998, %v271
  %v1020 = vmul.f32 %v1010, %v275
  %v1021 = vmul.f32 %v1007, %v263
  %v1022 = vmul.f32 %v1003, %v267
  %v1023 = vmul.f32 %v999, %v271
  %v1024 = vmul.f32 %v1011, %v275
  %v1025 = vmul.f32 %v1008, %v263
  %v1026 = vmul.f32 %v1004, %v267
  %v1027 = vmul.f32 %v1000, %v271
  %v1028 = vmul.f32 %v1012, %v275
  %1029 = vrot.lane.b32.xlu0 %v565, 111
  %v1030 = vpop.permute.xlu0 %1029
  %1031 = vrot.lane.b32.xlu0 %v569, 111
  %v1032 = vpop.permute.xlu0 %1031
  %1033 = vrot.lane.b32.xlu0 %v573, 111
  %v1034 = vpop.permute.xlu0 %1033
  %1035 = vrot.lane.b32.xlu0 %v577, 111
  %v1036 = vpop.permute.xlu0 %1035
  %1037 = vrot.lane.b32.xlu0 %v566, 111
  %v1038 = vpop.permute.xlu0 %1037
  %1039 = vrot.lane.b32.xlu0 %v570, 111
  %v1040 = vpop.permute.xlu0 %1039
  %1041 = vrot.lane.b32.xlu0 %v574, 111
  %v1042 = vpop.permute.xlu0 %1041
  %1043 = vrot.lane.b32.xlu0 %v578, 111
  %v1044 = vpop.permute.xlu0 %1043
  %1045 = vrot.lane.b32.xlu0 %v567, 111
  %v1046 = vpop.permute.xlu0 %1045
  %1047 = vrot.lane.b32.xlu0 %v571, 111
  %v1048 = vpop.permute.xlu0 %1047
  %1049 = vrot.lane.b32.xlu0 %v575, 111
  %v1050 = vpop.permute.xlu0 %1049
  %1051 = vrot.lane.b32.xlu0 %v579, 111
  %v1052 = vpop.permute.xlu0 %1051
  %1053 = vrot.lane.b32.xlu0 %v568, 111
  %v1054 = vpop.permute.xlu0 %1053
  %1055 = vrot.lane.b32.xlu0 %v572, 111
  %v1056 = vpop.permute.xlu0 %1055
  %1057 = vrot.lane.b32.xlu0 %v576, 111
  %v1058 = vpop.permute.xlu0 %1057
  %1059 = vrot.lane.b32.xlu0 %v580, 111
  %v1060 = vpop.permute.xlu0 %1059
  %v1061 = vsel %vm288, %v1046, %v1054
  %v1062 = vsel %vm288, %v1048, %v1056
  %v1063 = vsel %vm288, %v1050, %v1058
  %v1064 = vsel %vm288, %v1052, %v1060
  %v1065 = vsel %vm288, %v1038, %v1046
  %v1066 = vsel %vm288, %v1040, %v1048
  %v1067 = vsel %vm288, %v1042, %v1050
  %v1068 = vsel %vm288, %v1044, %v1052
  %v1069 = vsel %vm288, %v1030, %v1038
  %v1070 = vsel %vm288, %v1032, %v1040
  %v1071 = vsel %vm288, %v1034, %v1042
  %v1072 = vsel %vm288, %v1036, %v1044
  %v1073 = vsel %vm288, %v1054, %v1030
  %v1074 = vsel %vm288, %v1056, %v1032
  %v1075 = vsel %vm288, %v1058, %v1034
  %v1076 = vsel %vm288, %v1060, %v1036
  %v1077 = vmul.f32 %v1069, %v296
  %v1078 = vmul.f32 %v1065, %v300
  %v1079 = vmul.f32 %v1061, %v304
  %v1080 = vmul.f32 %v1073, %v308
  %v1081 = vmul.f32 %v1070, %v296
  %v1082 = vmul.f32 %v1066, %v300
  %v1083 = vmul.f32 %v1062, %v304
  %v1084 = vmul.f32 %v1074, %v308
  %v1085 = vmul.f32 %v1071, %v296
  %v1086 = vmul.f32 %v1067, %v300
  %v1087 = vmul.f32 %v1063, %v304
  %v1088 = vmul.f32 %v1075, %v308
  %v1089 = vmul.f32 %v1072, %v296
  %v1090 = vmul.f32 %v1068, %v300
  %v1091 = vmul.f32 %v1064, %v304
  %v1092 = vmul.f32 %v1076, %v308
  %v1093 = vld [vmem:[%s5] sm:$0xff]
  %v1094 = vld [vmem:[%s5 + $0x8] sm:$0xff]
  %v1095 = vld [vmem:[%s5 + $0x10] sm:$0xff]
  %v1096 = vld [vmem:[%s5 + $0x18] sm:$0xff]
  %v1097 = vld [vmem:[%s5 + $0x20] sm:$0xff]
  %v1098 = vld [vmem:[%s5 + $0x28] sm:$0xff]
  %v1099 = vld [vmem:[%s5 + $0x30] sm:$0xff]
  %v1100 = vld [vmem:[%s5 + $0x38] sm:$0xff]
  %v1101 = vld [vmem:[%s5 + $0x40] sm:$0xff]
  %v1102 = vld [vmem:[%s5 + $0x48] sm:$0xff]
  %v1103 = vld [vmem:[%s5 + $0x50] sm:$0xff]
  %v1104 = vld [vmem:[%s5 + $0x58] sm:$0xff]
  %v1105 = vld [vmem:[%s6] sm:$0xff]
  %v1106 = vld [vmem:[%s6 + $0x8] sm:$0xff]
  %v1107 = vld [vmem:[%s6 + $0x10] sm:$0xff]
  %v1108 = vld [vmem:[%s6 + $0x18] sm:$0xff]
  %1110 = vset.pattern.permute.xlu0 0
  %1111 = vperm.xlu0 %1110, %v1105
  %v1112 = vpop.permute.xlu0 %1111
  %1115 = vset.pattern.permute.xlu0 0
  %1116 = vperm.xlu0 %1115, %v1106
  %v1117 = vpop.permute.xlu0 %1116
  %1120 = vset.pattern.permute.xlu0 0
  %1121 = vperm.xlu0 %1120, %v1107
  %v1122 = vpop.permute.xlu0 %1121
  %1125 = vset.pattern.permute.xlu0 0
  %1126 = vperm.xlu0 %1125, %v1108
  %v1127 = vpop.permute.xlu0 %1126
  %vm1129 = vcmask 261120
  %v1131 = vsel %vm1129, %v1095, 0
  %v1134 = vsel %vm1129, %v1098, 0
  %v1137 = vsel %vm1129, %v1101, 0
  %v1140 = vsel %vm1129, %v1104, 0
  %1142 = vmatprep.subr.mxu0 %v630
  %1143 = vmatpush1.msra.mxu0 %v629
  %1144 = vmatprep.subr.mxu0 %v634
  %1145 = vmatpush1.msra.mxu0 %v633
  %1146 = vmatprep.subr.mxu0 %v638
  %1147 = vmatpush1.msra.mxu0 %v637
  %1148 = vmatprep.subr.mxu0 %v642
  %1149 = vmatpush1.msra.mxu0 %v641
  %1150 = vmatprep.subr.mxu0 %v694
  %1151 = vmatpush1.msra.mxu0 %v693
  %1152 = vmatprep.subr.mxu0 %v698
  %1153 = vmatpush1.msra.mxu0 %v697
  %1154 = vmatprep.subr.mxu0 %v702
  %1155 = vmatpush1.msra.mxu0 %v701
  %1156 = vmatprep.subr.mxu0 %v706
  %1157 = vmatpush1.msra.mxu0 %v705
  %1158 = vmatprep.subr.mxu0 %v758
  %1159 = vmatpush1.msra.mxu0 %v757
  %1160 = vmatprep.subr.mxu0 %v762
  %1161 = vmatpush1.msra.mxu0 %v761
  %1162 = vmatprep.subr.mxu0 %v766
  %1163 = vmatpush1.msra.mxu0 %v765
  %1164 = vmatprep.subr.mxu0 %v770
  %1165 = vmatpush1.msra.mxu0 %v769
  %1166 = vmatprep.subr.mxu0 %v822
  %1167 = vmatpush1.msra.mxu0 %v821
  %1168 = vmatprep.subr.mxu0 %v826
  %1169 = vmatpush1.msra.mxu0 %v825
  %1170 = vmatprep.subr.mxu0 %v830
  %1171 = vmatpush1.msra.mxu0 %v829
  %1172 = vmatprep.subr.mxu0 %v834
  %1173 = vmatpush1.msra.mxu0 %v833
  %1174 = vmatprep.subr.mxu0 %v566
  %1175 = vmatpush1.msra.mxu0 %v565
  %1176 = vmatprep.subr.mxu0 %v570
  %1177 = vmatpush1.msra.mxu0 %v569
  %1178 = vmatprep.subr.mxu0 %v574
  %1179 = vmatpush1.msra.mxu0 %v573
  %1180 = vmatprep.subr.mxu0 %v578
  %1181 = vmatpush1.msra.mxu0 %v577
  %1182 = vmatprep.subr.mxu0 %v886
  %1183 = vmatpush1.msra.mxu0 %v885
  %1184 = vmatprep.subr.mxu0 %v890
  %1185 = vmatpush1.msra.mxu0 %v889
  %1186 = vmatprep.subr.mxu0 %v894
  %1187 = vmatpush1.msra.mxu0 %v893
  %1188 = vmatprep.subr.mxu0 %v898
  %1189 = vmatpush1.msra.mxu0 %v897
  %1190 = vmatprep.subr.mxu0 %v950
  %1191 = vmatpush1.msra.mxu0 %v949
  %1192 = vmatprep.subr.mxu0 %v954
  %1193 = vmatpush1.msra.mxu0 %v953
  %1194 = vmatprep.subr.mxu0 %v958
  %1195 = vmatpush1.msra.mxu0 %v957
  %1196 = vmatprep.subr.mxu0 %v962
  %1197 = vmatpush1.msra.mxu0 %v961
  %1198 = vmatprep.subr.mxu0 %v1014
  %1199 = vmatpush1.msra.mxu0 %v1013
  %1200 = vmatprep.subr.mxu0 %v1018
  %1201 = vmatpush1.msra.mxu0 %v1017
  %1202 = vmatprep.subr.mxu0 %v1022
  %1203 = vmatpush1.msra.mxu0 %v1021
  %1204 = vmatprep.subr.mxu0 %v1026
  %1205 = vmatpush1.msra.mxu0 %v1025
  %1206 = vmatprep.mubr.f32.mxu0 %v1094
  %1207 = vmatmul.mubr.f32.gmra.mrb[0].mxu0 %v1093
  %v1208 = vpop.f32.mrb[0].mxu0
  %v1209 = vadd.f32 %v1112, %v1208
  %v1210 = vpop.f32.mrb[0].mxu0
  %v1211 = vadd.f32 %v1112, %v1210
  %1212 = vmatprep.mubr.f32.mxu0 %v1097
  %1213 = vmatmul.mubr.f32.gmra.mrb[0].mxu0 %v1096
  %v1214 = vpop.f32.mrb[0].mxu0
  %v1215 = vadd.f32 %v1117, %v1214
  %v1216 = vpop.f32.mrb[0].mxu0
  %v1217 = vadd.f32 %v1117, %v1216
  %1218 = vmatprep.mubr.f32.mxu0 %v1100
  %1219 = vmatmul.mubr.f32.gmra.mrb[0].mxu0 %v1099
  %v1220 = vpop.f32.mrb[0].mxu0
  %v1221 = vadd.f32 %v1122, %v1220
  %v1222 = vpop.f32.mrb[0].mxu0
  %v1223 = vadd.f32 %v1122, %v1222
  %1224 = vmatprep.mubr.f32.mxu0 %v1103
  %1225 = vmatmul.mubr.f32.gmra.mrb[0].mxu0 %v1102
  %v1226 = vpop.f32.mrb[0].mxu0
  %v1227 = vadd.f32 %v1127, %v1226
  %v1228 = vpop.f32.mrb[0].mxu0
  %v1229 = vadd.f32 %v1127, %v1228
  %1230 = vdwg.mxu0
  %1231 = vmatprep.subr.mxu0 %v1078
  %1232 = vmatpush1.msra.mxu0 %v1077
  %1233 = vmatprep.subr.mxu0 %v1082
  %1234 = vmatpush1.msra.mxu0 %v1081
  %1235 = vmatprep.subr.mxu0 %v1086
  %1236 = vmatpush1.msra.mxu0 %v1085
  %1237 = vmatprep.subr.mxu0 %v1090
  %1238 = vmatpush1.msra.mxu0 %v1089
  %1239 = vmatprep.subr.mxu0 0.0
  %1240 = vmatpush1.msra.mxu0 0.0
  %1241 = vmatprep.subr.mxu0 0.0
  %1242 = vmatpush1.msra.mxu0 0.0
  %1243 = vmatprep.subr.mxu0 0.0
  %1244 = vmatpush1.msra.mxu0 0.0
  %1245 = vmatprep.subr.mxu0 0.0
  %1246 = vmatpush1.msra.mxu0 0.0
  %1247 = vmatprep.subr.mxu0 0.0
  %1248 = vmatpush1.msra.mxu0 0.0
  %1249 = vmatprep.subr.mxu0 0.0
  %1250 = vmatpush1.msra.mxu0 0.0
  %1251 = vmatprep.subr.mxu0 0.0
  %1252 = vmatpush1.msra.mxu0 0.0
  %1253 = vmatprep.subr.mxu0 0.0
  %1254 = vmatpush1.msra.mxu0 0.0
  %1255 = vmatprep.subr.mxu0 0.0
  %1256 = vmatpush1.msra.mxu0 0.0
  %1257 = vmatprep.subr.mxu0 0.0
  %1258 = vmatpush1.msra.mxu0 0.0
  %1259 = vmatprep.subr.mxu0 0.0
  %1260 = vmatpush1.msra.mxu0 0.0
  %1261 = vmatprep.subr.mxu0 0.0
  %1262 = vmatpush1.msra.mxu0 0.0
  %1263 = vmatprep.subr.mxu0 0.0
  %1264 = vmatpush1.msra.mxu0 0.0
  %1265 = vmatprep.subr.mxu0 0.0
  %1266 = vmatpush1.msra.mxu0 0.0
  %1267 = vmatprep.subr.mxu0 0.0
  %1268 = vmatpush1.msra.mxu0 0.0
  %1269 = vmatprep.subr.mxu0 0.0
  %1270 = vmatpush1.msra.mxu0 0.0
  %1271 = vmatprep.subr.mxu0 0.0
  %1272 = vmatpush1.msra.mxu0 0.0
  %1273 = vmatprep.subr.mxu0 0.0
  %1274 = vmatpush1.msra.mxu0 0.0
  %1275 = vmatprep.subr.mxu0 0.0
  %1276 = vmatpush1.msra.mxu0 0.0
  %1277 = vmatprep.subr.mxu0 0.0
  %1278 = vmatpush1.msra.mxu0 0.0
  %1279 = vmatprep.subr.mxu0 0.0
  %1280 = vmatpush1.msra.mxu0 0.0
  %1281 = vmatprep.subr.mxu0 0.0
  %1282 = vmatpush1.msra.mxu0 0.0
  %1283 = vmatprep.subr.mxu0 0.0
  %1284 = vmatpush1.msra.mxu0 0.0
  %1285 = vmatprep.subr.mxu0 0.0
  %1286 = vmatpush1.msra.mxu0 0.0
  %1287 = vmatprep.subr.mxu0 0.0
  %1288 = vmatpush1.msra.mxu0 0.0
  %1289 = vmatprep.subr.mxu0 0.0
  %1290 = vmatpush1.msra.mxu0 0.0
  %1291 = vmatprep.subr.mxu0 0.0
  %1292 = vmatpush1.msra.mxu0 0.0
  %1293 = vmatprep.subr.mxu0 0.0
  %1294 = vmatpush1.msra.mxu0 0.0
  %1295 = vmatprep.mubr.f32.mxu0 0.0
  %1296 = vmatmul.mubr.f32.gmra.mrb[0].mxu0 %v1131
  %v1297 = vpop.f32.mrb[0].mxu0
  %v1298 = vadd.f32 %v1209, %v1297
  %v1299 = vpop.f32.mrb[0].mxu0
  %v1300 = vadd.f32 %v1211, %v1299
  %1301 = vmatprep.mubr.f32.mxu0 0.0
  %1302 = vmatmul.mubr.f32.gmra.mrb[0].mxu0 %v1134
  %v1303 = vpop.f32.mrb[0].mxu0
  %v1304 = vadd.f32 %v1215, %v1303
  %v1305 = vpop.f32.mrb[0].mxu0
  %v1306 = vadd.f32 %v1217, %v1305
  %1307 = vmatprep.mubr.f32.mxu0 0.0
  %1308 = vmatmul.mubr.f32.gmra.mrb[0].mxu0 %v1137
  %v1309 = vpop.f32.mrb[0].mxu0
  %v1310 = vadd.f32 %v1221, %v1309
  %v1311 = vpop.f32.mrb[0].mxu0
  %v1312 = vadd.f32 %v1223, %v1311
  %1313 = vmatprep.mubr.f32.mxu0 0.0
  %1314 = vmatmul.mubr.f32.gmra.mrb[0].mxu0 %v1140
  %v1315 = vpop.f32.mrb[0].mxu0
  %v1316 = vadd.f32 %v1227, %v1315
  %v1317 = vpop.f32.mrb[0].mxu0
  %v1318 = vadd.f32 %v1229, %v1317
  %1319 = vdwg.mxu0
  %1320 = vmatprep.subr.mxu0 %v632
  %1321 = vmatpush1.msra.mxu0 %v631
  %1322 = vmatprep.subr.mxu0 %v636
  %1323 = vmatpush1.msra.mxu0 %v635
  %1324 = vmatprep.subr.mxu0 %v640
  %1325 = vmatpush1.msra.mxu0 %v639
  %1326 = vmatprep.subr.mxu0 %v644
  %1327 = vmatpush1.msra.mxu0 %v643
  %1328 = vmatprep.subr.mxu0 %v696
  %1329 = vmatpush1.msra.mxu0 %v695
  %1330 = vmatprep.subr.mxu0 %v700
  %1331 = vmatpush1.msra.mxu0 %v699
  %1332 = vmatprep.subr.mxu0 %v704
  %1333 = vmatpush1.msra.mxu0 %v703
  %1334 = vmatprep.subr.mxu0 %v708
  %1335 = vmatpush1.msra.mxu0 %v707
  %1336 = vmatprep.subr.mxu0 %v760
  %1337 = vmatpush1.msra.mxu0 %v759
  %1338 = vmatprep.subr.mxu0 %v764
  %1339 = vmatpush1.msra.mxu0 %v763
  %1340 = vmatprep.subr.mxu0 %v768
  %1341 = vmatpush1.msra.mxu0 %v767
  %1342 = vmatprep.subr.mxu0 %v772
  %1343 = vmatpush1.msra.mxu0 %v771
  %1344 = vmatprep.subr.mxu0 %v824
  %1345 = vmatpush1.msra.mxu0 %v823
  %1346 = vmatprep.subr.mxu0 %v828
  %1347 = vmatpush1.msra.mxu0 %v827
  %1348 = vmatprep.subr.mxu0 %v832
  %1349 = vmatpush1.msra.mxu0 %v831
  %1350 = vmatprep.subr.mxu0 %v836
  %1351 = vmatpush1.msra.mxu0 %v835
  %1352 = vmatprep.subr.mxu0 %v568
  %1353 = vmatpush1.msra.mxu0 %v567
  %1354 = vmatprep.subr.mxu0 %v572
  %1355 = vmatpush1.msra.mxu0 %v571
  %1356 = vmatprep.subr.mxu0 %v576
  %1357 = vmatpush1.msra.mxu0 %v575
  %1358 = vmatprep.subr.mxu0 %v580
  %1359 = vmatpush1.msra.mxu0 %v579
  %1360 = vmatprep.subr.mxu0 %v888
  %1361 = vmatpush1.msra.mxu0 %v887
  %1362 = vmatprep.subr.mxu0 %v892
  %1363 = vmatpush1.msra.mxu0 %v891
  %1364 = vmatprep.subr.mxu0 %v896
  %1365 = vmatpush1.msra.mxu0 %v895
  %1366 = vmatprep.subr.mxu0 %v900
  %1367 = vmatpush1.msra.mxu0 %v899
  %1368 = vmatprep.subr.mxu0 %v952
  %1369 = vmatpush1.msra.mxu0 %v951
  %1370 = vmatprep.subr.mxu0 %v956
  %1371 = vmatpush1.msra.mxu0 %v955
  %1372 = vmatprep.subr.mxu0 %v960
  %1373 = vmatpush1.msra.mxu0 %v959
  %1374 = vmatprep.subr.mxu0 %v964
  %1375 = vmatpush1.msra.mxu0 %v963
  %1376 = vmatprep.subr.mxu0 %v1016
  %1377 = vmatpush1.msra.mxu0 %v1015
  %1378 = vmatprep.subr.mxu0 %v1020
  %1379 = vmatpush1.msra.mxu0 %v1019
  %1380 = vmatprep.subr.mxu0 %v1024
  %1381 = vmatpush1.msra.mxu0 %v1023
  %1382 = vmatprep.subr.mxu0 %v1028
  %1383 = vmatpush1.msra.mxu0 %v1027
  %1384 = vmatprep.mubr.f32.mxu0 %v1094
  %1385 = vmatmul.mubr.f32.gmra.mrb[0].mxu0 %v1093
  %v1386 = vpop.f32.mrb[0].mxu0
  %v1387 = vadd.f32 %v1112, %v1386
  %v1388 = vpop.f32.mrb[0].mxu0
  %v1389 = vadd.f32 %v1112, %v1388
  %1390 = vmatprep.mubr.f32.mxu0 %v1097
  %1391 = vmatmul.mubr.f32.gmra.mrb[0].mxu0 %v1096
  %v1392 = vpop.f32.mrb[0].mxu0
  %v1393 = vadd.f32 %v1117, %v1392
  %v1394 = vpop.f32.mrb[0].mxu0
  %v1395 = vadd.f32 %v1117, %v1394
  %1396 = vmatprep.mubr.f32.mxu0 %v1100
  %1397 = vmatmul.mubr.f32.gmra.mrb[0].mxu0 %v1099
  %v1398 = vpop.f32.mrb[0].mxu0
  %v1399 = vadd.f32 %v1122, %v1398
  %v1400 = vpop.f32.mrb[0].mxu0
  %v1401 = vadd.f32 %v1122, %v1400
  %1402 = vmatprep.mubr.f32.mxu0 %v1103
  %1403 = vmatmul.mubr.f32.gmra.mrb[0].mxu0 %v1102
  %v1404 = vpop.f32.mrb[0].mxu0
  %v1405 = vadd.f32 %v1127, %v1404
  %v1406 = vpop.f32.mrb[0].mxu0
  %v1407 = vadd.f32 %v1127, %v1406
  %1408 = vdwg.mxu0
  %1409 = vmatprep.subr.mxu0 %v1080
  %1410 = vmatpush1.msra.mxu0 %v1079
  %1411 = vmatprep.subr.mxu0 %v1084
  %1412 = vmatpush1.msra.mxu0 %v1083
  %1413 = vmatprep.subr.mxu0 %v1088
  %1414 = vmatpush1.msra.mxu0 %v1087
  %1415 = vmatprep.subr.mxu0 %v1092
  %1416 = vmatpush1.msra.mxu0 %v1091
  %1417 = vmatprep.subr.mxu0 0.0
  %1418 = vmatpush1.msra.mxu0 0.0
  %1419 = vmatprep.subr.mxu0 0.0
  %1420 = vmatpush1.msra.mxu0 0.0
  %1421 = vmatprep.subr.mxu0 0.0
  %1422 = vmatpush1.msra.mxu0 0.0
  %1423 = vmatprep.subr.mxu0 0.0
  %1424 = vmatpush1.msra.mxu0 0.0
  %1425 = vmatprep.subr.mxu0 0.0
  %1426 = vmatpush1.msra.mxu0 0.0
  %1427 = vmatprep.subr.mxu0 0.0
  %1428 = vmatpush1.msra.mxu0 0.0
  %1429 = vmatprep.subr.mxu0 0.0
  %1430 = vmatpush1.msra.mxu0 0.0
  %1431 = vmatprep.subr.mxu0 0.0
  %1432 = vmatpush1.msra.mxu0 0.0
  %1433 = vmatprep.subr.mxu0 0.0
  %1434 = vmatpush1.msra.mxu0 0.0
  %1435 = vmatprep.subr.mxu0 0.0
  %1436 = vmatpush1.msra.mxu0 0.0
  %1437 = vmatprep.subr.mxu0 0.0
  %1438 = vmatpush1.msra.mxu0 0.0
  %1439 = vmatprep.subr.mxu0 0.0
  %1440 = vmatpush1.msra.mxu0 0.0
  %1441 = vmatprep.subr.mxu0 0.0
  %1442 = vmatpush1.msra.mxu0 0.0
  %1443 = vmatprep.subr.mxu0 0.0
  %1444 = vmatpush1.msra.mxu0 0.0
  %1445 = vmatprep.subr.mxu0 0.0
  %1446 = vmatpush1.msra.mxu0 0.0
  %1447 = vmatprep.subr.mxu0 0.0
  %1448 = vmatpush1.msra.mxu0 0.0
  %1449 = vmatprep.subr.mxu0 0.0
  %1450 = vmatpush1.msra.mxu0 0.0
  %1451 = vmatprep.subr.mxu0 0.0
  %1452 = vmatpush1.msra.mxu0 0.0
  %1453 = vmatprep.subr.mxu0 0.0
  %1454 = vmatpush1.msra.mxu0 0.0
  %1455 = vmatprep.subr.mxu0 0.0
  %1456 = vmatpush1.msra.mxu0 0.0
  %1457 = vmatprep.subr.mxu0 0.0
  %1458 = vmatpush1.msra.mxu0 0.0
  %1459 = vmatprep.subr.mxu0 0.0
  %1460 = vmatpush1.msra.mxu0 0.0
  %1461 = vmatprep.subr.mxu0 0.0
  %1462 = vmatpush1.msra.mxu0 0.0
  %1463 = vmatprep.subr.mxu0 0.0
  %1464 = vmatpush1.msra.mxu0 0.0
  %1465 = vmatprep.subr.mxu0 0.0
  %1466 = vmatpush1.msra.mxu0 0.0
  %1467 = vmatprep.subr.mxu0 0.0
  %1468 = vmatpush1.msra.mxu0 0.0
  %1469 = vmatprep.subr.mxu0 0.0
  %1470 = vmatpush1.msra.mxu0 0.0
  %1471 = vmatprep.subr.mxu0 0.0
  %1472 = vmatpush1.msra.mxu0 0.0
  %1473 = vmatprep.mubr.f32.mxu0 0.0
  %1474 = vmatmul.mubr.f32.gmra.mrb[0].mxu0 %v1131
  %v1475 = vpop.f32.mrb[0].mxu0
  %v1476 = vadd.f32 %v1387, %v1475
  %v1477 = vpop.f32.mrb[0].mxu0
  %v1478 = vadd.f32 %v1389, %v1477
  %1479 = vmatprep.mubr.f32.mxu0 0.0
  %1480 = vmatmul.mubr.f32.gmra.mrb[0].mxu0 %v1134
  %v1481 = vpop.f32.mrb[0].mxu0
  %v1482 = vadd.f32 %v1393, %v1481
  %v1483 = vpop.f32.mrb[0].mxu0
  %v1484 = vadd.f32 %v1395, %v1483
  %1485 = vmatprep.mubr.f32.mxu0 0.0
  %1486 = vmatmul.mubr.f32.gmra.mrb[0].mxu0 %v1137
  %v1487 = vpop.f32.mrb[0].mxu0
  %v1488 = vadd.f32 %v1399, %v1487
  %v1489 = vpop.f32.mrb[0].mxu0
  %v1490 = vadd.f32 %v1401, %v1489
  %1491 = vmatprep.mubr.f32.mxu0 0.0
  %1492 = vmatmul.mubr.f32.gmra.mrb[0].mxu0 %v1140
  %v1493 = vpop.f32.mrb[0].mxu0
  %v1494 = vadd.f32 %v1405, %v1493
  %v1495 = vpop.f32.mrb[0].mxu0
  %v1496 = vadd.f32 %v1407, %v1495
  %1497 = vdwg.mxu0
  %vm1498 = vcmp.gt.f32.partialorder %v1298, 0.0
  %vm1499 = vcmp.gt.f32.partialorder %v1300, 0.0
  %vm1500 = vcmp.gt.f32.partialorder %v1476, 0.0
  %vm1501 = vcmp.gt.f32.partialorder %v1478, 0.0
  %vm1502 = vcmp.gt.f32.partialorder %v1304, 0.0
  %vm1503 = vcmp.gt.f32.partialorder %v1306, 0.0
  %vm1504 = vcmp.gt.f32.partialorder %v1482, 0.0
  %vm1505 = vcmp.gt.f32.partialorder %v1484, 0.0
  %vm1506 = vcmp.gt.f32.partialorder %v1310, 0.0
  %vm1507 = vcmp.gt.f32.partialorder %v1312, 0.0
  %vm1508 = vcmp.gt.f32.partialorder %v1488, 0.0
  %vm1509 = vcmp.gt.f32.partialorder %v1490, 0.0
  %vm1510 = vcmp.gt.f32.partialorder %v1316, 0.0
  %vm1511 = vcmp.gt.f32.partialorder %v1318, 0.0
  %vm1512 = vcmp.gt.f32.partialorder %v1494, 0.0
  %vm1513 = vcmp.gt.f32.partialorder %v1496, 0.0
  %v1514 = vstv %s46
  %v1515 = vmul.f32 %v1514, %v1298
  %v1516 = vmul.f32 %v1514, %v1300
  %v1517 = vmul.f32 %v1514, %v1476
  %v1518 = vmul.f32 %v1514, %v1478
  %v1519 = vmul.f32 %v1514, %v1304
  %v1520 = vmul.f32 %v1514, %v1306
  %v1521 = vmul.f32 %v1514, %v1482
  %v1522 = vmul.f32 %v1514, %v1484
  %v1523 = vmul.f32 %v1514, %v1310
  %v1524 = vmul.f32 %v1514, %v1312
  %v1525 = vmul.f32 %v1514, %v1488
  %v1526 = vmul.f32 %v1514, %v1490
  %v1527 = vmul.f32 %v1514, %v1316
  %v1528 = vmul.f32 %v1514, %v1318
  %v1529 = vmul.f32 %v1514, %v1494
  %v1530 = vmul.f32 %v1514, %v1496
  %v1531 = vsel %vm1498, %v1298, %v1515
  %v1532 = vsel %vm1499, %v1300, %v1516
  %v1533 = vsel %vm1500, %v1476, %v1517
  %v1534 = vsel %vm1501, %v1478, %v1518
  %v1535 = vsel %vm1502, %v1304, %v1519
  %v1536 = vsel %vm1503, %v1306, %v1520
  %v1537 = vsel %vm1504, %v1482, %v1521
  %v1538 = vsel %vm1505, %v1484, %v1522
  %v1539 = vsel %vm1506, %v1310, %v1523
  %v1540 = vsel %vm1507, %v1312, %v1524
  %v1541 = vsel %vm1508, %v1488, %v1525
  %v1542 = vsel %vm1509, %v1490, %v1526
  %v1543 = vsel %vm1510, %v1316, %v1527
  %v1544 = vsel %vm1511, %v1318, %v1528
  %v1545 = vsel %vm1512, %v1494, %v1529
  %v1546 = vsel %vm1513, %v1496, %v1530
  %v1547 = vld [vmem:[%s8] sm:$0x3]
  %v1549 = vsel %vm1129, %v1547, 0
  %1551 = vmatprep.subr.mxu0 %v1532
  %1552 = vmatpush1.msra.mxu0 %v1531
  %1553 = vmatprep.subr.mxu0 %v1536
  %1554 = vmatpush1.msra.mxu0 %v1535
  %1555 = vmatprep.subr.mxu0 %v1540
  %1556 = vmatpush1.msra.mxu0 %v1539
  %1557 = vmatprep.subr.mxu0 %v1544
  %1558 = vmatpush1.msra.mxu0 %v1543
  %1559 = vmatprep.subr.mxu0 0.0
  %1560 = vmatpush1.msra.mxu0 0.0
  %1561 = vmatprep.subr.mxu0 0.0
  %1562 = vmatpush1.msra.mxu0 0.0
  %1563 = vmatprep.subr.mxu0 0.0
  %1564 = vmatpush1.msra.mxu0 0.0
  %1565 = vmatprep.subr.mxu0 0.0
  %1566 = vmatpush1.msra.mxu0 0.0
  %1567 = vmatprep.subr.mxu0 0.0
  %1568 = vmatpush1.msra.mxu0 0.0
  %1569 = vmatprep.subr.mxu0 0.0
  %1570 = vmatpush1.msra.mxu0 0.0
  %1571 = vmatprep.subr.mxu0 0.0
  %1572 = vmatpush1.msra.mxu0 0.0
  %1573 = vmatprep.subr.mxu0 0.0
  %1574 = vmatpush1.msra.mxu0 0.0
  %1575 = vmatprep.subr.mxu0 0.0
  %1576 = vmatpush1.msra.mxu0 0.0
  %1577 = vmatprep.subr.mxu0 0.0
  %1578 = vmatpush1.msra.mxu0 0.0
  %1579 = vmatprep.subr.mxu0 0.0
  %1580 = vmatpush1.msra.mxu0 0.0
  %1581 = vmatprep.subr.mxu0 0.0
  %1582 = vmatpush1.msra.mxu0 0.0
  %1583 = vmatprep.subr.mxu0 0.0
  %1584 = vmatpush1.msra.mxu0 0.0
  %1585 = vmatprep.subr.mxu0 0.0
  %1586 = vmatpush1.msra.mxu0 0.0
  %1587 = vmatprep.subr.mxu0 0.0
  %1588 = vmatpush1.msra.mxu0 0.0
  %1589 = vmatprep.subr.mxu0 0.0
  %1590 = vmatpush1.msra.mxu0 0.0
  %1591 = vmatprep.subr.mxu0 0.0
  %1592 = vmatpush1.msra.mxu0 0.0
  %1593 = vmatprep.subr.mxu0 0.0
  %1594 = vmatpush1.msra.mxu0 0.0
  %1595 = vmatprep.subr.mxu0 0.0
  %1596 = vmatpush1.msra.mxu0 0.0
  %1597 = vmatprep.subr.mxu0 0.0
  %1598 = vmatpush1.msra.mxu0 0.0
  %1599 = vmatprep.subr.mxu0 0.0
  %1600 = vmatpush1.msra.mxu0 0.0
  %1601 = vmatprep.subr.mxu0 0.0
  %1602 = vmatpush1.msra.mxu0 0.0
  %1603 = vmatprep.subr.mxu0 0.0
  %1604 = vmatpush1.msra.mxu0 0.0
  %1605 = vmatprep.subr.mxu0 0.0
  %1606 = vmatpush1.msra.mxu0 0.0
  %1607 = vmatprep.subr.mxu0 0.0
  %1608 = vmatpush1.msra.mxu0 0.0
  %1609 = vmatprep.subr.mxu0 0.0
  %1610 = vmatpush1.msra.mxu0 0.0
  %1611 = vmatprep.subr.mxu0 0.0
  %1612 = vmatpush1.msra.mxu0 0.0
  %1613 = vmatprep.subr.mxu0 0.0
  %1614 = vmatpush1.msra.mxu0 0.0
  %1615 = vmatprep.mubr.f32.mxu0 0.0
  %1616 = vmatmul.mubr.f32.gmra.mrb[0].mxu0 %v1549
  %v1617 = vpop.f32.mrb[0].mxu0
  %v1618 = vadd.f32 0.0, %v1617
  %v1619 = vpop.f32.mrb[0].mxu0
  %v1620 = vadd.f32 0.0, %v1619
  %1621 = vdwg.mxu0
  %1622 = vmatprep.subr.mxu0 %v1534
  %1623 = vmatpush1.msra.mxu0 %v1533
  %1624 = vmatprep.subr.mxu0 %v1538
  %1625 = vmatpush1.msra.mxu0 %v1537
  %1626 = vmatprep.subr.mxu0 %v1542
  %1627 = vmatpush1.msra.mxu0 %v1541
  %1628 = vmatprep.subr.mxu0 %v1546
  %1629 = vmatpush1.msra.mxu0 %v1545
  %1630 = vmatprep.subr.mxu0 0.0
  %1631 = vmatpush1.msra.mxu0 0.0
  %1632 = vmatprep.subr.mxu0 0.0
  %1633 = vmatpush1.msra.mxu0 0.0
  %1634 = vmatprep.subr.mxu0 0.0
  %1635 = vmatpush1.msra.mxu0 0.0
  %1636 = vmatprep.subr.mxu0 0.0
  %1637 = vmatpush1.msra.mxu0 0.0
  %1638 = vmatprep.subr.mxu0 0.0
  %1639 = vmatpush1.msra.mxu0 0.0
  %1640 = vmatprep.subr.mxu0 0.0
  %1641 = vmatpush1.msra.mxu0 0.0
  %1642 = vmatprep.subr.mxu0 0.0
  %1643 = vmatpush1.msra.mxu0 0.0
  %1644 = vmatprep.subr.mxu0 0.0
  %1645 = vmatpush1.msra.mxu0 0.0
  %1646 = vmatprep.subr.mxu0 0.0
  %1647 = vmatpush1.msra.mxu0 0.0
  %1648 = vmatprep.subr.mxu0 0.0
  %1649 = vmatpush1.msra.mxu0 0.0
  %1650 = vmatprep.subr.mxu0 0.0
  %1651 = vmatpush1.msra.mxu0 0.0
  %1652 = vmatprep.subr.mxu0 0.0
  %1653 = vmatpush1.msra.mxu0 0.0
  %1654 = vmatprep.subr.mxu0 0.0
  %1655 = vmatpush1.msra.mxu0 0.0
  %1656 = vmatprep.subr.mxu0 0.0
  %1657 = vmatpush1.msra.mxu0 0.0
  %1658 = vmatprep.subr.mxu0 0.0
  %1659 = vmatpush1.msra.mxu0 0.0
  %1660 = vmatprep.subr.mxu0 0.0
  %1661 = vmatpush1.msra.mxu0 0.0
  %1662 = vmatprep.subr.mxu0 0.0
  %1663 = vmatpush1.msra.mxu0 0.0
  %1664 = vmatprep.subr.mxu0 0.0
  %1665 = vmatpush1.msra.mxu0 0.0
  %1666 = vmatprep.subr.mxu0 0.0
  %1667 = vmatpush1.msra.mxu0 0.0
  %1668 = vmatprep.subr.mxu0 0.0
  %1669 = vmatpush1.msra.mxu0 0.0
  %1670 = vmatprep.subr.mxu0 0.0
  %1671 = vmatpush1.msra.mxu0 0.0
  %1672 = vmatprep.subr.mxu0 0.0
  %1673 = vmatpush1.msra.mxu0 0.0
  %1674 = vmatprep.subr.mxu0 0.0
  %1675 = vmatpush1.msra.mxu0 0.0
  %1676 = vmatprep.subr.mxu0 0.0
  %1677 = vmatpush1.msra.mxu0 0.0
  %1678 = vmatprep.subr.mxu0 0.0
  %1679 = vmatpush1.msra.mxu0 0.0
  %1680 = vmatprep.subr.mxu0 0.0
  %1681 = vmatpush1.msra.mxu0 0.0
  %1682 = vmatprep.subr.mxu0 0.0
  %1683 = vmatpush1.msra.mxu0 0.0
  %1684 = vmatprep.subr.mxu0 0.0
  %1685 = vmatpush1.msra.mxu0 0.0
  %1686 = vmatprep.mubr.f32.mxu0 0.0
  %1687 = vmatmul.mubr.f32.gmra.mrb[0].mxu0 %v1549
  %v1688 = vpop.f32.mrb[0].mxu0
  %v1689 = vadd.f32 0.0, %v1688
  %v1690 = vpop.f32.mrb[0].mxu0
  %v1691 = vadd.f32 0.0, %v1690
  %1692 = vdwg.mxu0
  %1693 = vrot.lane.b32.xlu0 %v1618, 17
  %v1694 = vpop.permute.xlu0 %1693
  %1695 = vrot.lane.b32.xlu0 %v1620, 17
  %v1696 = vpop.permute.xlu0 %1695
  %1697 = vrot.lane.b32.xlu0 %v1689, 17
  %v1698 = vpop.permute.xlu0 %1697
  %1699 = vrot.lane.b32.xlu0 %v1691, 17
  %v1700 = vpop.permute.xlu0 %1699
  %v1701 = vsel %vm57, %v1698, %v1700
  %v1702 = vsel %vm57, %v1696, %v1698
  %v1703 = vsel %vm57, %v1694, %v1696
  %v1704 = vsel %vm57, %v1700, %v1694
  %v1705 = vmul.f32 %v1704, %v65
  %v1706 = vmul.f32 %v1703, %v69
  %v1707 = vmul.f32 %v1702, %v73
  %v1708 = vmul.f32 %v1701, %v77
  %s1709 = scalar_lea.vmem %s8, 2
  %v1710 = vld [vmem:[%s1709] sm:$0x3]
  %v1712 = vsel %vm1129, %v1710, 0
  %1714 = vmatprep.subr.mxu0 %v1532
  %1715 = vmatpush1.msra.mxu0 %v1531
  %1716 = vmatprep.subr.mxu0 %v1536
  %1717 = vmatpush1.msra.mxu0 %v1535
  %1718 = vmatprep.subr.mxu0 %v1540
  %1719 = vmatpush1.msra.mxu0 %v1539
  %1720 = vmatprep.subr.mxu0 %v1544
  %1721 = vmatpush1.msra.mxu0 %v1543
  %1722 = vmatprep.subr.mxu0 0.0
  %1723 = vmatpush1.msra.mxu0 0.0
  %1724 = vmatprep.subr.mxu0 0.0
  %1725 = vmatpush1.msra.mxu0 0.0
  %1726 = vmatprep.subr.mxu0 0.0
  %1727 = vmatpush1.msra.mxu0 0.0
  %1728 = vmatprep.subr.mxu0 0.0
  %1729 = vmatpush1.msra.mxu0 0.0
  %1730 = vmatprep.subr.mxu0 0.0
  %1731 = vmatpush1.msra.mxu0 0.0
  %1732 = vmatprep.subr.mxu0 0.0
  %1733 = vmatpush1.msra.mxu0 0.0
  %1734 = vmatprep.subr.mxu0 0.0
  %1735 = vmatpush1.msra.mxu0 0.0
  %1736 = vmatprep.subr.mxu0 0.0
  %1737 = vmatpush1.msra.mxu0 0.0
  %1738 = vmatprep.subr.mxu0 0.0
  %1739 = vmatpush1.msra.mxu0 0.0
  %1740 = vmatprep.subr.mxu0 0.0
  %1741 = vmatpush1.msra.mxu0 0.0
  %1742 = vmatprep.subr.mxu0 0.0
  %1743 = vmatpush1.msra.mxu0 0.0
  %1744 = vmatprep.subr.mxu0 0.0
  %1745 = vmatpush1.msra.mxu0 0.0
  %1746 = vmatprep.subr.mxu0 0.0
  %1747 = vmatpush1.msra.mxu0 0.0
  %1748 = vmatprep.subr.mxu0 0.0
  %1749 = vmatpush1.msra.mxu0 0.0
  %1750 = vmatprep.subr.mxu0 0.0
  %1751 = vmatpush1.msra.mxu0 0.0
  %1752 = vmatprep.subr.mxu0 0.0
  %1753 = vmatpush1.msra.mxu0 0.0
  %1754 = vmatprep.subr.mxu0 0.0
  %1755 = vmatpush1.msra.mxu0 0.0
  %1756 = vmatprep.subr.mxu0 0.0
  %1757 = vmatpush1.msra.mxu0 0.0
  %1758 = vmatprep.subr.mxu0 0.0
  %1759 = vmatpush1.msra.mxu0 0.0
  %1760 = vmatprep.subr.mxu0 0.0
  %1761 = vmatpush1.msra.mxu0 0.0
  %1762 = vmatprep.subr.mxu0 0.0
  %1763 = vmatpush1.msra.mxu0 0.0
  %1764 = vmatprep.subr.mxu0 0.0
  %1765 = vmatpush1.msra.mxu0 0.0
  %1766 = vmatprep.subr.mxu0 0.0
  %1767 = vmatpush1.msra.mxu0 0.0
  %1768 = vmatprep.subr.mxu0 0.0
  %1769 = vmatpush1.msra.mxu0 0.0
  %1770 = vmatprep.subr.mxu0 0.0
  %1771 = vmatpush1.msra.mxu0 0.0
  %1772 = vmatprep.subr.mxu0 0.0
  %1773 = vmatpush1.msra.mxu0 0.0
  %1774 = vmatprep.subr.mxu0 0.0
  %1775 = vmatpush1.msra.mxu0 0.0
  %1776 = vmatprep.subr.mxu0 0.0
  %1777 = vmatpush1.msra.mxu0 0.0
  %1778 = vmatprep.mubr.f32.mxu0 0.0
  %1779 = vmatmul.mubr.f32.gmra.mrb[0].mxu0 %v1712
  %v1780 = vpop.f32.mrb[0].mxu0
  %v1781 = vadd.f32 0.0, %v1780
  %v1782 = vpop.f32.mrb[0].mxu0
  %v1783 = vadd.f32 0.0, %v1782
  %1784 = vdwg.mxu0
  %1785 = vmatprep.subr.mxu0 %v1534
  %1786 = vmatpush1.msra.mxu0 %v1533
  %1787 = vmatprep.subr.mxu0 %v1538
  %1788 = vmatpush1.msra.mxu0 %v1537
  %1789 = vmatprep.subr.mxu0 %v1542
  %1790 = vmatpush1.msra.mxu0 %v1541
  %1791 = vmatprep.subr.mxu0 %v1546
  %1792 = vmatpush1.msra.mxu0 %v1545
  %1793 = vmatprep.subr.mxu0 0.0
  %1794 = vmatpush1.msra.mxu0 0.0
  %1795 = vmatprep.subr.mxu0 0.0
  %1796 = vmatpush1.msra.mxu0 0.0
  %1797 = vmatprep.subr.mxu0 0.0
  %1798 = vmatpush1.msra.mxu0 0.0
  %1799 = vmatprep.subr.mxu0 0.0
  %1800 = vmatpush1.msra.mxu0 0.0
  %1801 = vmatprep.subr.mxu0 0.0
  %1802 = vmatpush1.msra.mxu0 0.0
  %1803 = vmatprep.subr.mxu0 0.0
  %1804 = vmatpush1.msra.mxu0 0.0
  %1805 = vmatprep.subr.mxu0 0.0
  %1806 = vmatpush1.msra.mxu0 0.0
  %1807 = vmatprep.subr.mxu0 0.0
  %1808 = vmatpush1.msra.mxu0 0.0
  %1809 = vmatprep.subr.mxu0 0.0
  %1810 = vmatpush1.msra.mxu0 0.0
  %1811 = vmatprep.subr.mxu0 0.0
  %1812 = vmatpush1.msra.mxu0 0.0
  %1813 = vmatprep.subr.mxu0 0.0
  %1814 = vmatpush1.msra.mxu0 0.0
  %1815 = vmatprep.subr.mxu0 0.0
  %1816 = vmatpush1.msra.mxu0 0.0
  %1817 = vmatprep.subr.mxu0 0.0
  %1818 = vmatpush1.msra.mxu0 0.0
  %1819 = vmatprep.subr.mxu0 0.0
  %1820 = vmatpush1.msra.mxu0 0.0
  %1821 = vmatprep.subr.mxu0 0.0
  %1822 = vmatpush1.msra.mxu0 0.0
  %1823 = vmatprep.subr.mxu0 0.0
  %1824 = vmatpush1.msra.mxu0 0.0
  %1825 = vmatprep.subr.mxu0 0.0
  %1826 = vmatpush1.msra.mxu0 0.0
  %1827 = vmatprep.subr.mxu0 0.0
  %1828 = vmatpush1.msra.mxu0 0.0
  %1829 = vmatprep.subr.mxu0 0.0
  %1830 = vmatpush1.msra.mxu0 0.0
  %1831 = vmatprep.subr.mxu0 0.0
  %1832 = vmatpush1.msra.mxu0 0.0
  %1833 = vmatprep.subr.mxu0 0.0
  %1834 = vmatpush1.msra.mxu0 0.0
  %1835 = vmatprep.subr.mxu0 0.0
  %1836 = vmatpush1.msra.mxu0 0.0
  %1837 = vmatprep.subr.mxu0 0.0
  %1838 = vmatpush1.msra.mxu0 0.0
  %1839 = vmatprep.subr.mxu0 0.0
  %1840 = vmatpush1.msra.mxu0 0.0
  %1841 = vmatprep.subr.mxu0 0.0
  %1842 = vmatpush1.msra.mxu0 0.0
  %1843 = vmatprep.subr.mxu0 0.0
  %1844 = vmatpush1.msra.mxu0 0.0
  %1845 = vmatprep.subr.mxu0 0.0
  %1846 = vmatpush1.msra.mxu0 0.0
  %1847 = vmatprep.subr.mxu0 0.0
  %1848 = vmatpush1.msra.mxu0 0.0
  %1849 = vmatprep.mubr.f32.mxu0 0.0
  %1850 = vmatmul.mubr.f32.gmra.mrb[0].mxu0 %v1712
  %v1851 = vpop.f32.mrb[0].mxu0
  %v1852 = vadd.f32 0.0, %v1851
  %v1853 = vpop.f32.mrb[0].mxu0
  %v1854 = vadd.f32 0.0, %v1853
  %1855 = vdwg.mxu0
  %1856 = vrot.lane.b32.xlu0 %v1781, 16
  %v1857 = vpop.permute.xlu0 %1856
  %1858 = vrot.lane.b32.xlu0 %v1783, 16
  %v1859 = vpop.permute.xlu0 %1858
  %1860 = vrot.lane.b32.xlu0 %v1852, 16
  %v1861 = vpop.permute.xlu0 %1860
  %1862 = vrot.lane.b32.xlu0 %v1854, 16
  %v1863 = vpop.permute.xlu0 %1862
  %v1864 = vsel %vm90, %v1861, %v1863
  %v1865 = vsel %vm90, %v1859, %v1861
  %v1866 = vsel %vm90, %v1857, %v1859
  %v1867 = vsel %vm90, %v1863, %v1857
  %v1868 = vmul.f32 %v1867, %v98
  %v1869 = vmul.f32 %v1866, %v102
  %v1870 = vmul.f32 %v1865, %v106
  %v1871 = vmul.f32 %v1864, %v110
  %v1872 = vadd.f32 %v1705, %v1868
  %v1873 = vadd.f32 %v1706, %v1869
  %v1874 = vadd.f32 %v1707, %v1870
  %v1875 = vadd.f32 %v1708, %v1871
  %s1876 = scalar_lea.vmem %s8, 4
  %v1877 = vld [vmem:[%s1876] sm:$0x3]
  %v1879 = vsel %vm1129, %v1877, 0
  %1881 = vmatprep.subr.mxu0 %v1532
  %1882 = vmatpush1.msra.mxu0 %v1531
  %1883 = vmatprep.subr.mxu0 %v1536
  %1884 = vmatpush1.msra.mxu0 %v1535
  %1885 = vmatprep.subr.mxu0 %v1540
  %1886 = vmatpush1.msra.mxu0 %v1539
  %1887 = vmatprep.subr.mxu0 %v1544
  %1888 = vmatpush1.msra.mxu0 %v1543
  %1889 = vmatprep.subr.mxu0 0.0
  %1890 = vmatpush1.msra.mxu0 0.0
  %1891 = vmatprep.subr.mxu0 0.0
  %1892 = vmatpush1.msra.mxu0 0.0
  %1893 = vmatprep.subr.mxu0 0.0
  %1894 = vmatpush1.msra.mxu0 0.0
  %1895 = vmatprep.subr.mxu0 0.0
  %1896 = vmatpush1.msra.mxu0 0.0
  %1897 = vmatprep.subr.mxu0 0.0
  %1898 = vmatpush1.msra.mxu0 0.0
  %1899 = vmatprep.subr.mxu0 0.0
  %1900 = vmatpush1.msra.mxu0 0.0
  %1901 = vmatprep.subr.mxu0 0.0
  %1902 = vmatpush1.msra.mxu0 0.0
  %1903 = vmatprep.subr.mxu0 0.0
  %1904 = vmatpush1.msra.mxu0 0.0
  %1905 = vmatprep.subr.mxu0 0.0
  %1906 = vmatpush1.msra.mxu0 0.0
  %1907 = vmatprep.subr.mxu0 0.0
  %1908 = vmatpush1.msra.mxu0 0.0
  %1909 = vmatprep.subr.mxu0 0.0
  %1910 = vmatpush1.msra.mxu0 0.0
  %1911 = vmatprep.subr.mxu0 0.0
  %1912 = vmatpush1.msra.mxu0 0.0
  %1913 = vmatprep.subr.mxu0 0.0
  %1914 = vmatpush1.msra.mxu0 0.0
  %1915 = vmatprep.subr.mxu0 0.0
  %1916 = vmatpush1.msra.mxu0 0.0
  %1917 = vmatprep.subr.mxu0 0.0
  %1918 = vmatpush1.msra.mxu0 0.0
  %1919 = vmatprep.subr.mxu0 0.0
  %1920 = vmatpush1.msra.mxu0 0.0
  %1921 = vmatprep.subr.mxu0 0.0
  %1922 = vmatpush1.msra.mxu0 0.0
  %1923 = vmatprep.subr.mxu0 0.0
  %1924 = vmatpush1.msra.mxu0 0.0
  %1925 = vmatprep.subr.mxu0 0.0
  %1926 = vmatpush1.msra.mxu0 0.0
  %1927 = vmatprep.subr.mxu0 0.0
  %1928 = vmatpush1.msra.mxu0 0.0
  %1929 = vmatprep.subr.mxu0 0.0
  %1930 = vmatpush1.msra.mxu0 0.0
  %1931 = vmatprep.subr.mxu0 0.0
  %1932 = vmatpush1.msra.mxu0 0.0
  %1933 = vmatprep.subr.mxu0 0.0
  %1934 = vmatpush1.msra.mxu0 0.0
  %1935 = vmatprep.subr.mxu0 0.0
  %1936 = vmatpush1.msra.mxu0 0.0
  %1937 = vmatprep.subr.mxu0 0.0
  %1938 = vmatpush1.msra.mxu0 0.0
  %1939 = vmatprep.subr.mxu0 0.0
  %1940 = vmatpush1.msra.mxu0 0.0
  %1941 = vmatprep.subr.mxu0 0.0
  %1942 = vmatpush1.msra.mxu0 0.0
  %1943 = vmatprep.subr.mxu0 0.0
  %1944 = vmatpush1.msra.mxu0 0.0
  %1945 = vmatprep.mubr.f32.mxu0 0.0
  %1946 = vmatmul.mubr.f32.gmra.mrb[0].mxu0 %v1879
  %v1947 = vpop.f32.mrb[0].mxu0
  %v1948 = vadd.f32 0.0, %v1947
  %v1949 = vpop.f32.mrb[0].mxu0
  %v1950 = vadd.f32 0.0, %v1949
  %1951 = vdwg.mxu0
  %1952 = vmatprep.subr.mxu0 %v1534
  %1953 = vmatpush1.msra.mxu0 %v1533
  %1954 = vmatprep.subr.mxu0 %v1538
  %1955 = vmatpush1.msra.mxu0 %v1537
  %1956 = vmatprep.subr.mxu0 %v1542
  %1957 = vmatpush1.msra.mxu0 %v1541
  %1958 = vmatprep.subr.mxu0 %v1546
  %1959 = vmatpush1.msra.mxu0 %v1545
  %1960 = vmatprep.subr.mxu0 0.0
  %1961 = vmatpush1.msra.mxu0 0.0
  %1962 = vmatprep.subr.mxu0 0.0
  %1963 = vmatpush1.msra.mxu0 0.0
  %1964 = vmatprep.subr.mxu0 0.0
  %1965 = vmatpush1.msra.mxu0 0.0
  %1966 = vmatprep.subr.mxu0 0.0
  %1967 = vmatpush1.msra.mxu0 0.0
  %1968 = vmatprep.subr.mxu0 0.0
  %1969 = vmatpush1.msra.mxu0 0.0
  %1970 = vmatprep.subr.mxu0 0.0
  %1971 = vmatpush1.msra.mxu0 0.0
  %1972 = vmatprep.subr.mxu0 0.0
  %1973 = vmatpush1.msra.mxu0 0.0
  %1974 = vmatprep.subr.mxu0 0.0
  %1975 = vmatpush1.msra.mxu0 0.0
  %1976 = vmatprep.subr.mxu0 0.0
  %1977 = vmatpush1.msra.mxu0 0.0
  %1978 = vmatprep.subr.mxu0 0.0
  %1979 = vmatpush1.msra.mxu0 0.0
  %1980 = vmatprep.subr.mxu0 0.0
  %1981 = vmatpush1.msra.mxu0 0.0
  %1982 = vmatprep.subr.mxu0 0.0
  %1983 = vmatpush1.msra.mxu0 0.0
  %1984 = vmatprep.subr.mxu0 0.0
  %1985 = vmatpush1.msra.mxu0 0.0
  %1986 = vmatprep.subr.mxu0 0.0
  %1987 = vmatpush1.msra.mxu0 0.0
  %1988 = vmatprep.subr.mxu0 0.0
  %1989 = vmatpush1.msra.mxu0 0.0
  %1990 = vmatprep.subr.mxu0 0.0
  %1991 = vmatpush1.msra.mxu0 0.0
  %1992 = vmatprep.subr.mxu0 0.0
  %1993 = vmatpush1.msra.mxu0 0.0
  %1994 = vmatprep.subr.mxu0 0.0
  %1995 = vmatpush1.msra.mxu0 0.0
  %1996 = vmatprep.subr.mxu0 0.0
  %1997 = vmatpush1.msra.mxu0 0.0
  %1998 = vmatprep.subr.mxu0 0.0
  %1999 = vmatpush1.msra.mxu0 0.0
  %2000 = vmatprep.subr.mxu0 0.0
  %2001 = vmatpush1.msra.mxu0 0.0
  %2002 = vmatprep.subr.mxu0 0.0
  %2003 = vmatpush1.msra.mxu0 0.0
  %2004 = vmatprep.subr.mxu0 0.0
  %2005 = vmatpush1.msra.mxu0 0.0
  %2006 = vmatprep.subr.mxu0 0.0
  %2007 = vmatpush1.msra.mxu0 0.0
  %2008 = vmatprep.subr.mxu0 0.0
  %2009 = vmatpush1.msra.mxu0 0.0
  %2010 = vmatprep.subr.mxu0 0.0
  %2011 = vmatpush1.msra.mxu0 0.0
  %2012 = vmatprep.subr.mxu0 0.0
  %2013 = vmatpush1.msra.mxu0 0.0
  %2014 = vmatprep.subr.mxu0 0.0
  %2015 = vmatpush1.msra.mxu0 0.0
  %2016 = vmatprep.mubr.f32.mxu0 0.0
  %2017 = vmatmul.mubr.f32.gmra.mrb[0].mxu0 %v1879
  %v2018 = vpop.f32.mrb[0].mxu0
  %v2019 = vadd.f32 0.0, %v2018
  %v2020 = vpop.f32.mrb[0].mxu0
  %v2021 = vadd.f32 0.0, %v2020
  %2022 = vdwg.mxu0
  %2023 = vrot.lane.b32.xlu0 %v1948, 15
  %v2024 = vpop.permute.xlu0 %2023
  %2025 = vrot.lane.b32.xlu0 %v1950, 15
  %v2026 = vpop.permute.xlu0 %2025
  %2027 = vrot.lane.b32.xlu0 %v2019, 15
  %v2028 = vpop.permute.xlu0 %2027
  %2029 = vrot.lane.b32.xlu0 %v2021, 15
  %v2030 = vpop.permute.xlu0 %2029
  %v2031 = vsel %vm123, %v2028, %v2030
  %v2032 = vsel %vm123, %v2026, %v2028
  %v2033 = vsel %vm123, %v2024, %v2026
  %v2034 = vsel %vm123, %v2030, %v2024
  %v2035 = vmul.f32 %v2034, %v131
  %v2036 = vmul.f32 %v2033, %v135
  %v2037 = vmul.f32 %v2032, %v139
  %v2038 = vmul.f32 %v2031, %v143
  %v2039 = vadd.f32 %v1872, %v2035
  %v2040 = vadd.f32 %v1873, %v2036
  %v2041 = vadd.f32 %v1874, %v2037
  %v2042 = vadd.f32 %v1875, %v2038
  %s2043 = scalar_lea.vmem %s8, 6
  %v2044 = vld [vmem:[%s2043] sm:$0x3]
  %v2046 = vsel %vm1129, %v2044, 0
  %2048 = vmatprep.subr.mxu0 %v1532
  %2049 = vmatpush1.msra.mxu0 %v1531
  %2050 = vmatprep.subr.mxu0 %v1536
  %2051 = vmatpush1.msra.mxu0 %v1535
  %2052 = vmatprep.subr.mxu0 %v1540
  %2053 = vmatpush1.msra.mxu0 %v1539
  %2054 = vmatprep.subr.mxu0 %v1544
  %2055 = vmatpush1.msra.mxu0 %v1543
  %2056 = vmatprep.subr.mxu0 0.0
  %2057 = vmatpush1.msra.mxu0 0.0
  %2058 = vmatprep.subr.mxu0 0.0
  %2059 = vmatpush1.msra.mxu0 0.0
  %2060 = vmatprep.subr.mxu0 0.0
  %2061 = vmatpush1.msra.mxu0 0.0
  %2062 = vmatprep.subr.mxu0 0.0
  %2063 = vmatpush1.msra.mxu0 0.0
  %2064 = vmatprep.subr.mxu0 0.0
  %2065 = vmatpush1.msra.mxu0 0.0
  %2066 = vmatprep.subr.mxu0 0.0
  %2067 = vmatpush1.msra.mxu0 0.0
  %2068 = vmatprep.subr.mxu0 0.0
  %2069 = vmatpush1.msra.mxu0 0.0
  %2070 = vmatprep.subr.mxu0 0.0
  %2071 = vmatpush1.msra.mxu0 0.0
  %2072 = vmatprep.subr.mxu0 0.0
  %2073 = vmatpush1.msra.mxu0 0.0
  %2074 = vmatprep.subr.mxu0 0.0
  %2075 = vmatpush1.msra.mxu0 0.0
  %2076 = vmatprep.subr.mxu0 0.0
  %2077 = vmatpush1.msra.mxu0 0.0
  %2078 = vmatprep.subr.mxu0 0.0
  %2079 = vmatpush1.msra.mxu0 0.0
  %2080 = vmatprep.subr.mxu0 0.0
  %2081 = vmatpush1.msra.mxu0 0.0
  %2082 = vmatprep.subr.mxu0 0.0
  %2083 = vmatpush1.msra.mxu0 0.0
  %2084 = vmatprep.subr.mxu0 0.0
  %2085 = vmatpush1.msra.mxu0 0.0
  %2086 = vmatprep.subr.mxu0 0.0
  %2087 = vmatpush1.msra.mxu0 0.0
  %2088 = vmatprep.subr.mxu0 0.0
  %2089 = vmatpush1.msra.mxu0 0.0
  %2090 = vmatprep.subr.mxu0 0.0
  %2091 = vmatpush1.msra.mxu0 0.0
  %2092 = vmatprep.subr.mxu0 0.0
  %2093 = vmatpush1.msra.mxu0 0.0
  %2094 = vmatprep.subr.mxu0 0.0
  %2095 = vmatpush1.msra.mxu0 0.0
  %2096 = vmatprep.subr.mxu0 0.0
  %2097 = vmatpush1.msra.mxu0 0.0
  %2098 = vmatprep.subr.mxu0 0.0
  %2099 = vmatpush1.msra.mxu0 0.0
  %2100 = vmatprep.subr.mxu0 0.0
  %2101 = vmatpush1.msra.mxu0 0.0
  %2102 = vmatprep.subr.mxu0 0.0
  %2103 = vmatpush1.msra.mxu0 0.0
  %2104 = vmatprep.subr.mxu0 0.0
  %2105 = vmatpush1.msra.mxu0 0.0
  %2106 = vmatprep.subr.mxu0 0.0
  %2107 = vmatpush1.msra.mxu0 0.0
  %2108 = vmatprep.subr.mxu0 0.0
  %2109 = vmatpush1.msra.mxu0 0.0
  %2110 = vmatprep.subr.mxu0 0.0
  %2111 = vmatpush1.msra.mxu0 0.0
  %2112 = vmatprep.mubr.f32.mxu0 0.0
  %2113 = vmatmul.mubr.f32.gmra.mrb[0].mxu0 %v2046
  %v2114 = vpop.f32.mrb[0].mxu0
  %v2115 = vadd.f32 0.0, %v2114
  %v2116 = vpop.f32.mrb[0].mxu0
  %v2117 = vadd.f32 0.0, %v2116
  %2118 = vdwg.mxu0
  %2119 = vmatprep.subr.mxu0 %v1534
  %2120 = vmatpush1.msra.mxu0 %v1533
  %2121 = vmatprep.subr.mxu0 %v1538
  %2122 = vmatpush1.msra.mxu0 %v1537
  %2123 = vmatprep.subr.mxu0 %v1542
  %2124 = vmatpush1.msra.mxu0 %v1541
  %2125 = vmatprep.subr.mxu0 %v1546
  %2126 = vmatpush1.msra.mxu0 %v1545
  %2127 = vmatprep.subr.mxu0 0.0
  %2128 = vmatpush1.msra.mxu0 0.0
  %2129 = vmatprep.subr.mxu0 0.0
  %2130 = vmatpush1.msra.mxu0 0.0
  %2131 = vmatprep.subr.mxu0 0.0
  %2132 = vmatpush1.msra.mxu0 0.0
  %2133 = vmatprep.subr.mxu0 0.0
  %2134 = vmatpush1.msra.mxu0 0.0
  %2135 = vmatprep.subr.mxu0 0.0
  %2136 = vmatpush1.msra.mxu0 0.0
  %2137 = vmatprep.subr.mxu0 0.0
  %2138 = vmatpush1.msra.mxu0 0.0
  %2139 = vmatprep.subr.mxu0 0.0
  %2140 = vmatpush1.msra.mxu0 0.0
  %2141 = vmatprep.subr.mxu0 0.0
  %2142 = vmatpush1.msra.mxu0 0.0
  %2143 = vmatprep.subr.mxu0 0.0
  %2144 = vmatpush1.msra.mxu0 0.0
  %2145 = vmatprep.subr.mxu0 0.0
  %2146 = vmatpush1.msra.mxu0 0.0
  %2147 = vmatprep.subr.mxu0 0.0
  %2148 = vmatpush1.msra.mxu0 0.0
  %2149 = vmatprep.subr.mxu0 0.0
  %2150 = vmatpush1.msra.mxu0 0.0
  %2151 = vmatprep.subr.mxu0 0.0
  %2152 = vmatpush1.msra.mxu0 0.0
  %2153 = vmatprep.subr.mxu0 0.0
  %2154 = vmatpush1.msra.mxu0 0.0
  %2155 = vmatprep.subr.mxu0 0.0
  %2156 = vmatpush1.msra.mxu0 0.0
  %2157 = vmatprep.subr.mxu0 0.0
  %2158 = vmatpush1.msra.mxu0 0.0
  %2159 = vmatprep.subr.mxu0 0.0
  %2160 = vmatpush1.msra.mxu0 0.0
  %2161 = vmatprep.subr.mxu0 0.0
  %2162 = vmatpush1.msra.mxu0 0.0
  %2163 = vmatprep.subr.mxu0 0.0
  %2164 = vmatpush1.msra.mxu0 0.0
  %2165 = vmatprep.subr.mxu0 0.0
  %2166 = vmatpush1.msra.mxu0 0.0
  %2167 = vmatprep.subr.mxu0 0.0
  %2168 = vmatpush1.msra.mxu0 0.0
  %2169 = vmatprep.subr.mxu0 0.0
  %2170 = vmatpush1.msra.mxu0 0.0
  %2171 = vmatprep.subr.mxu0 0.0
  %2172 = vmatpush1.msra.mxu0 0.0
  %2173 = vmatprep.subr.mxu0 0.0
  %2174 = vmatpush1.msra.mxu0 0.0
  %2175 = vmatprep.subr.mxu0 0.0
  %2176 = vmatpush1.msra.mxu0 0.0
  %2177 = vmatprep.subr.mxu0 0.0
  %2178 = vmatpush1.msra.mxu0 0.0
  %2179 = vmatprep.subr.mxu0 0.0
  %2180 = vmatpush1.msra.mxu0 0.0
  %2181 = vmatprep.subr.mxu0 0.0
  %2182 = vmatpush1.msra.mxu0 0.0
  %2183 = vmatprep.mubr.f32.mxu0 0.0
  %2184 = vmatmul.mubr.f32.gmra.mrb[0].mxu0 %v2046
  %v2185 = vpop.f32.mrb[0].mxu0
  %v2186 = vadd.f32 0.0, %v2185
  %v2187 = vpop.f32.mrb[0].mxu0
  %v2188 = vadd.f32 0.0, %v2187
  %2189 = vdwg.mxu0
  %2190 = vrot.lane.b32.xlu0 %v2115, 1
  %v2191 = vpop.permute.xlu0 %2190
  %2192 = vrot.lane.b32.xlu0 %v2117, 1
  %v2193 = vpop.permute.xlu0 %2192
  %2194 = vrot.lane.b32.xlu0 %v2186, 1
  %v2195 = vpop.permute.xlu0 %2194
  %2196 = vrot.lane.b32.xlu0 %v2188, 1
  %v2197 = vpop.permute.xlu0 %2196
  %v2198 = vsel %vm156, %v2195, %v2197
  %v2199 = vsel %vm156, %v2193, %v2195
  %v2200 = vsel %vm156, %v2191, %v2193
  %v2201 = vsel %vm156, %v2197, %v2191
  %v2202 = vmul.f32 %v2201, %v164
  %v2203 = vmul.f32 %v2200, %v168
  %v2204 = vmul.f32 %v2199, %v172
  %v2205 = vmul.f32 %v2198, %v176
  %v2206 = vadd.f32 %v2039, %v2202
  %v2207 = vadd.f32 %v2040, %v2203
  %v2208 = vadd.f32 %v2041, %v2204
  %v2209 = vadd.f32 %v2042, %v2205
  %s2210 = scalar_lea.vmem %s8, 8
  %v2211 = vld [vmem:[%s2210] sm:$0x3]
  %v2213 = vsel %vm1129, %v2211, 0
  %2215 = vmatprep.subr.mxu0 %v1532
  %2216 = vmatpush1.msra.mxu0 %v1531
  %2217 = vmatprep.subr.mxu0 %v1536
  %2218 = vmatpush1.msra.mxu0 %v1535
  %2219 = vmatprep.subr.mxu0 %v1540
  %2220 = vmatpush1.msra.mxu0 %v1539
  %2221 = vmatprep.subr.mxu0 %v1544
  %2222 = vmatpush1.msra.mxu0 %v1543
  %2223 = vmatprep.subr.mxu0 0.0
  %2224 = vmatpush1.msra.mxu0 0.0
  %2225 = vmatprep.subr.mxu0 0.0
  %2226 = vmatpush1.msra.mxu0 0.0
  %2227 = vmatprep.subr.mxu0 0.0
  %2228 = vmatpush1.msra.mxu0 0.0
  %2229 = vmatprep.subr.mxu0 0.0
  %2230 = vmatpush1.msra.mxu0 0.0
  %2231 = vmatprep.subr.mxu0 0.0
  %2232 = vmatpush1.msra.mxu0 0.0
  %2233 = vmatprep.subr.mxu0 0.0
  %2234 = vmatpush1.msra.mxu0 0.0
  %2235 = vmatprep.subr.mxu0 0.0
  %2236 = vmatpush1.msra.mxu0 0.0
  %2237 = vmatprep.subr.mxu0 0.0
  %2238 = vmatpush1.msra.mxu0 0.0
  %2239 = vmatprep.subr.mxu0 0.0
  %2240 = vmatpush1.msra.mxu0 0.0
  %2241 = vmatprep.subr.mxu0 0.0
  %2242 = vmatpush1.msra.mxu0 0.0
  %2243 = vmatprep.subr.mxu0 0.0
  %2244 = vmatpush1.msra.mxu0 0.0
  %2245 = vmatprep.subr.mxu0 0.0
  %2246 = vmatpush1.msra.mxu0 0.0
  %2247 = vmatprep.subr.mxu0 0.0
  %2248 = vmatpush1.msra.mxu0 0.0
  %2249 = vmatprep.subr.mxu0 0.0
  %2250 = vmatpush1.msra.mxu0 0.0
  %2251 = vmatprep.subr.mxu0 0.0
  %2252 = vmatpush1.msra.mxu0 0.0
  %2253 = vmatprep.subr.mxu0 0.0
  %2254 = vmatpush1.msra.mxu0 0.0
  %2255 = vmatprep.subr.mxu0 0.0
  %2256 = vmatpush1.msra.mxu0 0.0
  %2257 = vmatprep.subr.mxu0 0.0
  %2258 = vmatpush1.msra.mxu0 0.0
  %2259 = vmatprep.subr.mxu0 0.0
  %2260 = vmatpush1.msra.mxu0 0.0
  %2261 = vmatprep.subr.mxu0 0.0
  %2262 = vmatpush1.msra.mxu0 0.0
  %2263 = vmatprep.subr.mxu0 0.0
  %2264 = vmatpush1.msra.mxu0 0.0
  %2265 = vmatprep.subr.mxu0 0.0
  %2266 = vmatpush1.msra.mxu0 0.0
  %2267 = vmatprep.subr.mxu0 0.0
  %2268 = vmatpush1.msra.mxu0 0.0
  %2269 = vmatprep.subr.mxu0 0.0
  %2270 = vmatpush1.msra.mxu0 0.0
  %2271 = vmatprep.subr.mxu0 0.0
  %2272 = vmatpush1.msra.mxu0 0.0
  %2273 = vmatprep.subr.mxu0 0.0
  %2274 = vmatpush1.msra.mxu0 0.0
  %2275 = vmatprep.subr.mxu0 0.0
  %2276 = vmatpush1.msra.mxu0 0.0
  %2277 = vmatprep.subr.mxu0 0.0
  %2278 = vmatpush1.msra.mxu0 0.0
  %2279 = vmatprep.mubr.f32.mxu0 0.0
  %2280 = vmatmul.mubr.f32.gmra.mrb[0].mxu0 %v2213
  %v2281 = vpop.f32.mrb[0].mxu0
  %v2282 = vadd.f32 0.0, %v2281
  %v2283 = vpop.f32.mrb[0].mxu0
  %v2284 = vadd.f32 0.0, %v2283
  %2285 = vdwg.mxu0
  %2286 = vmatprep.subr.mxu0 %v1534
  %2287 = vmatpush1.msra.mxu0 %v1533
  %2288 = vmatprep.subr.mxu0 %v1538
  %2289 = vmatpush1.msra.mxu0 %v1537
  %2290 = vmatprep.subr.mxu0 %v1542
  %2291 = vmatpush1.msra.mxu0 %v1541
  %2292 = vmatprep.subr.mxu0 %v1546
  %2293 = vmatpush1.msra.mxu0 %v1545
  %2294 = vmatprep.subr.mxu0 0.0
  %2295 = vmatpush1.msra.mxu0 0.0
  %2296 = vmatprep.subr.mxu0 0.0
  %2297 = vmatpush1.msra.mxu0 0.0
  %2298 = vmatprep.subr.mxu0 0.0
  %2299 = vmatpush1.msra.mxu0 0.0
  %2300 = vmatprep.subr.mxu0 0.0
  %2301 = vmatpush1.msra.mxu0 0.0
  %2302 = vmatprep.subr.mxu0 0.0
  %2303 = vmatpush1.msra.mxu0 0.0
  %2304 = vmatprep.subr.mxu0 0.0
  %2305 = vmatpush1.msra.mxu0 0.0
  %2306 = vmatprep.subr.mxu0 0.0
  %2307 = vmatpush1.msra.mxu0 0.0
  %2308 = vmatprep.subr.mxu0 0.0
  %2309 = vmatpush1.msra.mxu0 0.0
  %2310 = vmatprep.subr.mxu0 0.0
  %2311 = vmatpush1.msra.mxu0 0.0
  %2312 = vmatprep.subr.mxu0 0.0
  %2313 = vmatpush1.msra.mxu0 0.0
  %2314 = vmatprep.subr.mxu0 0.0
  %2315 = vmatpush1.msra.mxu0 0.0
  %2316 = vmatprep.subr.mxu0 0.0
  %2317 = vmatpush1.msra.mxu0 0.0
  %2318 = vmatprep.subr.mxu0 0.0
  %2319 = vmatpush1.msra.mxu0 0.0
  %2320 = vmatprep.subr.mxu0 0.0
  %2321 = vmatpush1.msra.mxu0 0.0
  %2322 = vmatprep.subr.mxu0 0.0
  %2323 = vmatpush1.msra.mxu0 0.0
  %2324 = vmatprep.subr.mxu0 0.0
  %2325 = vmatpush1.msra.mxu0 0.0
  %2326 = vmatprep.subr.mxu0 0.0
  %2327 = vmatpush1.msra.mxu0 0.0
  %2328 = vmatprep.subr.mxu0 0.0
  %2329 = vmatpush1.msra.mxu0 0.0
  %2330 = vmatprep.subr.mxu0 0.0
  %2331 = vmatpush1.msra.mxu0 0.0
  %2332 = vmatprep.subr.mxu0 0.0
  %2333 = vmatpush1.msra.mxu0 0.0
  %2334 = vmatprep.subr.mxu0 0.0
  %2335 = vmatpush1.msra.mxu0 0.0
  %2336 = vmatprep.subr.mxu0 0.0
  %2337 = vmatpush1.msra.mxu0 0.0
  %2338 = vmatprep.subr.mxu0 0.0
  %2339 = vmatpush1.msra.mxu0 0.0
  %2340 = vmatprep.subr.mxu0 0.0
  %2341 = vmatpush1.msra.mxu0 0.0
  %2342 = vmatprep.subr.mxu0 0.0
  %2343 = vmatpush1.msra.mxu0 0.0
  %2344 = vmatprep.subr.mxu0 0.0
  %2345 = vmatpush1.msra.mxu0 0.0
  %2346 = vmatprep.subr.mxu0 0.0
  %2347 = vmatpush1.msra.mxu0 0.0
  %2348 = vmatprep.subr.mxu0 0.0
  %2349 = vmatpush1.msra.mxu0 0.0
  %2350 = vmatprep.mubr.f32.mxu0 0.0
  %2351 = vmatmul.mubr.f32.gmra.mrb[0].mxu0 %v2213
  %v2352 = vpop.f32.mrb[0].mxu0
  %v2353 = vadd.f32 0.0, %v2352
  %v2354 = vpop.f32.mrb[0].mxu0
  %v2355 = vadd.f32 0.0, %v2354
  %2356 = vdwg.mxu0
  %v2357 = vadd.f32 %v2206, %v2282
  %v2358 = vadd.f32 %v2207, %v2284
  %v2359 = vadd.f32 %v2208, %v2353
  %v2360 = vadd.f32 %v2209, %v2355
  %s2361 = scalar_lea.vmem %s8, 10
  %v2362 = vld [vmem:[%s2361] sm:$0x3]
  %v2364 = vsel %vm1129, %v2362, 0
  %2366 = vmatprep.subr.mxu0 %v1532
  %2367 = vmatpush1.msra.mxu0 %v1531
  %2368 = vmatprep.subr.mxu0 %v1536
  %2369 = vmatpush1.msra.mxu0 %v1535
  %2370 = vmatprep.subr.mxu0 %v1540
  %2371 = vmatpush1.msra.mxu0 %v1539
  %2372 = vmatprep.subr.mxu0 %v1544
  %2373 = vmatpush1.msra.mxu0 %v1543
  %2374 = vmatprep.subr.mxu0 0.0
  %2375 = vmatpush1.msra.mxu0 0.0
  %2376 = vmatprep.subr.mxu0 0.0
  %2377 = vmatpush1.msra.mxu0 0.0
  %2378 = vmatprep.subr.mxu0 0.0
  %2379 = vmatpush1.msra.mxu0 0.0
  %2380 = vmatprep.subr.mxu0 0.0
  %2381 = vmatpush1.msra.mxu0 0.0
  %2382 = vmatprep.subr.mxu0 0.0
  %2383 = vmatpush1.msra.mxu0 0.0
  %2384 = vmatprep.subr.mxu0 0.0
  %2385 = vmatpush1.msra.mxu0 0.0
  %2386 = vmatprep.subr.mxu0 0.0
  %2387 = vmatpush1.msra.mxu0 0.0
  %2388 = vmatprep.subr.mxu0 0.0
  %2389 = vmatpush1.msra.mxu0 0.0
  %2390 = vmatprep.subr.mxu0 0.0
  %2391 = vmatpush1.msra.mxu0 0.0
  %2392 = vmatprep.subr.mxu0 0.0
  %2393 = vmatpush1.msra.mxu0 0.0
  %2394 = vmatprep.subr.mxu0 0.0
  %2395 = vmatpush1.msra.mxu0 0.0
  %2396 = vmatprep.subr.mxu0 0.0
  %2397 = vmatpush1.msra.mxu0 0.0
  %2398 = vmatprep.subr.mxu0 0.0
  %2399 = vmatpush1.msra.mxu0 0.0
  %2400 = vmatprep.subr.mxu0 0.0
  %2401 = vmatpush1.msra.mxu0 0.0
  %2402 = vmatprep.subr.mxu0 0.0
  %2403 = vmatpush1.msra.mxu0 0.0
  %2404 = vmatprep.subr.mxu0 0.0
  %2405 = vmatpush1.msra.mxu0 0.0
  %2406 = vmatprep.subr.mxu0 0.0
  %2407 = vmatpush1.msra.mxu0 0.0
  %2408 = vmatprep.subr.mxu0 0.0
  %2409 = vmatpush1.msra.mxu0 0.0
  %2410 = vmatprep.subr.mxu0 0.0
  %2411 = vmatpush1.msra.mxu0 0.0
  %2412 = vmatprep.subr.mxu0 0.0
  %2413 = vmatpush1.msra.mxu0 0.0
  %2414 = vmatprep.subr.mxu0 0.0
  %2415 = vmatpush1.msra.mxu0 0.0
  %2416 = vmatprep.subr.mxu0 0.0
  %2417 = vmatpush1.msra.mxu0 0.0
  %2418 = vmatprep.subr.mxu0 0.0
  %2419 = vmatpush1.msra.mxu0 0.0
  %2420 = vmatprep.subr.mxu0 0.0
  %2421 = vmatpush1.msra.mxu0 0.0
  %2422 = vmatprep.subr.mxu0 0.0
  %2423 = vmatpush1.msra.mxu0 0.0
  %2424 = vmatprep.subr.mxu0 0.0
  %2425 = vmatpush1.msra.mxu0 0.0
  %2426 = vmatprep.subr.mxu0 0.0
  %2427 = vmatpush1.msra.mxu0 0.0
  %2428 = vmatprep.subr.mxu0 0.0
  %2429 = vmatpush1.msra.mxu0 0.0
  %2430 = vmatprep.mubr.f32.mxu0 0.0
  %2431 = vmatmul.mubr.f32.gmra.mrb[0].mxu0 %v2364
  %v2432 = vpop.f32.mrb[0].mxu0
  %v2433 = vadd.f32 0.0, %v2432
  %v2434 = vpop.f32.mrb[0].mxu0
  %v2435 = vadd.f32 0.0, %v2434
  %2436 = vdwg.mxu0
  %2437 = vmatprep.subr.mxu0 %v1534
  %2438 = vmatpush1.msra.mxu0 %v1533
  %2439 = vmatprep.subr.mxu0 %v1538
  %2440 = vmatpush1.msra.mxu0 %v1537
  %2441 = vmatprep.subr.mxu0 %v1542
  %2442 = vmatpush1.msra.mxu0 %v1541
  %2443 = vmatprep.subr.mxu0 %v1546
  %2444 = vmatpush1.msra.mxu0 %v1545
  %2445 = vmatprep.subr.mxu0 0.0
  %2446 = vmatpush1.msra.mxu0 0.0
  %2447 = vmatprep.subr.mxu0 0.0
  %2448 = vmatpush1.msra.mxu0 0.0
  %2449 = vmatprep.subr.mxu0 0.0
  %2450 = vmatpush1.msra.mxu0 0.0
  %2451 = vmatprep.subr.mxu0 0.0
  %2452 = vmatpush1.msra.mxu0 0.0
  %2453 = vmatprep.subr.mxu0 0.0
  %2454 = vmatpush1.msra.mxu0 0.0
  %2455 = vmatprep.subr.mxu0 0.0
  %2456 = vmatpush1.msra.mxu0 0.0
  %2457 = vmatprep.subr.mxu0 0.0
  %2458 = vmatpush1.msra.mxu0 0.0
  %2459 = vmatprep.subr.mxu0 0.0
  %2460 = vmatpush1.msra.mxu0 0.0
  %2461 = vmatprep.subr.mxu0 0.0
  %2462 = vmatpush1.msra.mxu0 0.0
  %2463 = vmatprep.subr.mxu0 0.0
  %2464 = vmatpush1.msra.mxu0 0.0
  %2465 = vmatprep.subr.mxu0 0.0
  %2466 = vmatpush1.msra.mxu0 0.0
  %2467 = vmatprep.subr.mxu0 0.0
  %2468 = vmatpush1.msra.mxu0 0.0
  %2469 = vmatprep.subr.mxu0 0.0
  %2470 = vmatpush1.msra.mxu0 0.0
  %2471 = vmatprep.subr.mxu0 0.0
  %2472 = vmatpush1.msra.mxu0 0.0
  %2473 = vmatprep.subr.mxu0 0.0
  %2474 = vmatpush1.msra.mxu0 0.0
  %2475 = vmatprep.subr.mxu0 0.0
  %2476 = vmatpush1.msra.mxu0 0.0
  %2477 = vmatprep.subr.mxu0 0.0
  %2478 = vmatpush1.msra.mxu0 0.0
  %2479 = vmatprep.subr.mxu0 0.0
  %2480 = vmatpush1.msra.mxu0 0.0
  %2481 = vmatprep.subr.mxu0 0.0
  %2482 = vmatpush1.msra.mxu0 0.0
  %2483 = vmatprep.subr.mxu0 0.0
  %2484 = vmatpush1.msra.mxu0 0.0
  %2485 = vmatprep.subr.mxu0 0.0
  %2486 = vmatpush1.msra.mxu0 0.0
  %2487 = vmatprep.subr.mxu0 0.0
  %2488 = vmatpush1.msra.mxu0 0.0
  %2489 = vmatprep.subr.mxu0 0.0
  %2490 = vmatpush1.msra.mxu0 0.0
  %2491 = vmatprep.subr.mxu0 0.0
  %2492 = vmatpush1.msra.mxu0 0.0
  %2493 = vmatprep.subr.mxu0 0.0
  %2494 = vmatpush1.msra.mxu0 0.0
  %2495 = vmatprep.subr.mxu0 0.0
  %2496 = vmatpush1.msra.mxu0 0.0
  %2497 = vmatprep.subr.mxu0 0.0
  %2498 = vmatpush1.msra.mxu0 0.0
  %2499 = vmatprep.subr.mxu0 0.0
  %2500 = vmatpush1.msra.mxu0 0.0
  %2501 = vmatprep.mubr.f32.mxu0 0.0
  %2502 = vmatmul.mubr.f32.gmra.mrb[0].mxu0 %v2364
  %v2503 = vpop.f32.mrb[0].mxu0
  %v2504 = vadd.f32 0.0, %v2503
  %v2505 = vpop.f32.mrb[0].mxu0
  %v2506 = vadd.f32 0.0, %v2505
  %2507 = vdwg.mxu0
  %2508 = vrot.lane.b32.xlu0 %v2433, 127
  %v2509 = vpop.permute.xlu0 %2508
  %2510 = vrot.lane.b32.xlu0 %v2435, 127
  %v2511 = vpop.permute.xlu0 %2510
  %2512 = vrot.lane.b32.xlu0 %v2504, 127
  %v2513 = vpop.permute.xlu0 %2512
  %2514 = vrot.lane.b32.xlu0 %v2506, 127
  %v2515 = vpop.permute.xlu0 %2514
  %v2516 = vsel %vm189, %v2513, %v2515
  %v2517 = vsel %vm189, %v2511, %v2513
  %v2518 = vsel %vm189, %v2509, %v2511
  %v2519 = vsel %vm189, %v2515, %v2509
  %v2520 = vmul.f32 %v2518, %v197
  %v2521 = vmul.f32 %v2517, %v201
  %v2522 = vmul.f32 %v2516, %v205
  %v2523 = vmul.f32 %v2519, %v209
  %v2524 = vadd.f32 %v2357, %v2520
  %v2525 = vadd.f32 %v2358, %v2521
  %v2526 = vadd.f32 %v2359, %v2522
  %v2527 = vadd.f32 %v2360, %v2523
  %s2528 = scalar_lea.vmem %s8, 12
  %v2529 = vld [vmem:[%s2528] sm:$0x3]
  %v2531 = vsel %vm1129, %v2529, 0
  %2533 = vmatprep.subr.mxu0 %v1532
  %2534 = vmatpush1.msra.mxu0 %v1531
  %2535 = vmatprep.subr.mxu0 %v1536
  %2536 = vmatpush1.msra.mxu0 %v1535
  %2537 = vmatprep.subr.mxu0 %v1540
  %2538 = vmatpush1.msra.mxu0 %v1539
  %2539 = vmatprep.subr.mxu0 %v1544
  %2540 = vmatpush1.msra.mxu0 %v1543
  %2541 = vmatprep.subr.mxu0 0.0
  %2542 = vmatpush1.msra.mxu0 0.0
  %2543 = vmatprep.subr.mxu0 0.0
  %2544 = vmatpush1.msra.mxu0 0.0
  %2545 = vmatprep.subr.mxu0 0.0
  %2546 = vmatpush1.msra.mxu0 0.0
  %2547 = vmatprep.subr.mxu0 0.0
  %2548 = vmatpush1.msra.mxu0 0.0
  %2549 = vmatprep.subr.mxu0 0.0
  %2550 = vmatpush1.msra.mxu0 0.0
  %2551 = vmatprep.subr.mxu0 0.0
  %2552 = vmatpush1.msra.mxu0 0.0
  %2553 = vmatprep.subr.mxu0 0.0
  %2554 = vmatpush1.msra.mxu0 0.0
  %2555 = vmatprep.subr.mxu0 0.0
  %2556 = vmatpush1.msra.mxu0 0.0
  %2557 = vmatprep.subr.mxu0 0.0
  %2558 = vmatpush1.msra.mxu0 0.0
  %2559 = vmatprep.subr.mxu0 0.0
  %2560 = vmatpush1.msra.mxu0 0.0
  %2561 = vmatprep.subr.mxu0 0.0
  %2562 = vmatpush1.msra.mxu0 0.0
  %2563 = vmatprep.subr.mxu0 0.0
  %2564 = vmatpush1.msra.mxu0 0.0
  %2565 = vmatprep.subr.mxu0 0.0
  %2566 = vmatpush1.msra.mxu0 0.0
  %2567 = vmatprep.subr.mxu0 0.0
  %2568 = vmatpush1.msra.mxu0 0.0
  %2569 = vmatprep.subr.mxu0 0.0
  %2570 = vmatpush1.msra.mxu0 0.0
  %2571 = vmatprep.subr.mxu0 0.0
  %2572 = vmatpush1.msra.mxu0 0.0
  %2573 = vmatprep.subr.mxu0 0.0
  %2574 = vmatpush1.msra.mxu0 0.0
  %2575 = vmatprep.subr.mxu0 0.0
  %2576 = vmatpush1.msra.mxu0 0.0
  %2577 = vmatprep.subr.mxu0 0.0
  %2578 = vmatpush1.msra.mxu0 0.0
  %2579 = vmatprep.subr.mxu0 0.0
  %2580 = vmatpush1.msra.mxu0 0.0
  %2581 = vmatprep.subr.mxu0 0.0
  %2582 = vmatpush1.msra.mxu0 0.0
  %2583 = vmatprep.subr.mxu0 0.0
  %2584 = vmatpush1.msra.mxu0 0.0
  %2585 = vmatprep.subr.mxu0 0.0
  %2586 = vmatpush1.msra.mxu0 0.0
  %2587 = vmatprep.subr.mxu0 0.0
  %2588 = vmatpush1.msra.mxu0 0.0
  %2589 = vmatprep.subr.mxu0 0.0
  %2590 = vmatpush1.msra.mxu0 0.0
  %2591 = vmatprep.subr.mxu0 0.0
  %2592 = vmatpush1.msra.mxu0 0.0
  %2593 = vmatprep.subr.mxu0 0.0
  %2594 = vmatpush1.msra.mxu0 0.0
  %2595 = vmatprep.subr.mxu0 0.0
  %2596 = vmatpush1.msra.mxu0 0.0
  %2597 = vmatprep.mubr.f32.mxu0 0.0
  %2598 = vmatmul.mubr.f32.gmra.mrb[0].mxu0 %v2531
  %v2599 = vpop.f32.mrb[0].mxu0
  %v2600 = vadd.f32 0.0, %v2599
  %v2601 = vpop.f32.mrb[0].mxu0
  %v2602 = vadd.f32 0.0, %v2601
  %2603 = vdwg.mxu0
  %2604 = vmatprep.subr.mxu0 %v1534
  %2605 = vmatpush1.msra.mxu0 %v1533
  %2606 = vmatprep.subr.mxu0 %v1538
  %2607 = vmatpush1.msra.mxu0 %v1537
  %2608 = vmatprep.subr.mxu0 %v1542
  %2609 = vmatpush1.msra.mxu0 %v1541
  %2610 = vmatprep.subr.mxu0 %v1546
  %2611 = vmatpush1.msra.mxu0 %v1545
  %2612 = vmatprep.subr.mxu0 0.0
  %2613 = vmatpush1.msra.mxu0 0.0
  %2614 = vmatprep.subr.mxu0 0.0
  %2615 = vmatpush1.msra.mxu0 0.0
  %2616 = vmatprep.subr.mxu0 0.0
  %2617 = vmatpush1.msra.mxu0 0.0
  %2618 = vmatprep.subr.mxu0 0.0
  %2619 = vmatpush1.msra.mxu0 0.0
  %2620 = vmatprep.subr.mxu0 0.0
  %2621 = vmatpush1.msra.mxu0 0.0
  %2622 = vmatprep.subr.mxu0 0.0
  %2623 = vmatpush1.msra.mxu0 0.0
  %2624 = vmatprep.subr.mxu0 0.0
  %2625 = vmatpush1.msra.mxu0 0.0
  %2626 = vmatprep.subr.mxu0 0.0
  %2627 = vmatpush1.msra.mxu0 0.0
  %2628 = vmatprep.subr.mxu0 0.0
  %2629 = vmatpush1.msra.mxu0 0.0
  %2630 = vmatprep.subr.mxu0 0.0
  %2631 = vmatpush1.msra.mxu0 0.0
  %2632 = vmatprep.subr.mxu0 0.0
  %2633 = vmatpush1.msra.mxu0 0.0
  %2634 = vmatprep.subr.mxu0 0.0
  %2635 = vmatpush1.msra.mxu0 0.0
  %2636 = vmatprep.subr.mxu0 0.0
  %2637 = vmatpush1.msra.mxu0 0.0
  %2638 = vmatprep.subr.mxu0 0.0
  %2639 = vmatpush1.msra.mxu0 0.0
  %2640 = vmatprep.subr.mxu0 0.0
  %2641 = vmatpush1.msra.mxu0 0.0
  %2642 = vmatprep.subr.mxu0 0.0
  %2643 = vmatpush1.msra.mxu0 0.0
  %2644 = vmatprep.subr.mxu0 0.0
  %2645 = vmatpush1.msra.mxu0 0.0
  %2646 = vmatprep.subr.mxu0 0.0
  %2647 = vmatpush1.msra.mxu0 0.0
  %2648 = vmatprep.subr.mxu0 0.0
  %2649 = vmatpush1.msra.mxu0 0.0
  %2650 = vmatprep.subr.mxu0 0.0
  %2651 = vmatpush1.msra.mxu0 0.0
  %2652 = vmatprep.subr.mxu0 0.0
  %2653 = vmatpush1.msra.mxu0 0.0
  %2654 = vmatprep.subr.mxu0 0.0
  %2655 = vmatpush1.msra.mxu0 0.0
  %2656 = vmatprep.subr.mxu0 0.0
  %2657 = vmatpush1.msra.mxu0 0.0
  %2658 = vmatprep.subr.mxu0 0.0
  %2659 = vmatpush1.msra.mxu0 0.0
  %2660 = vmatprep.subr.mxu0 0.0
  %2661 = vmatpush1.msra.mxu0 0.0
  %2662 = vmatprep.subr.mxu0 0.0
  %2663 = vmatpush1.msra.mxu0 0.0
  %2664 = vmatprep.subr.mxu0 0.0
  %2665 = vmatpush1.msra.mxu0 0.0
  %2666 = vmatprep.subr.mxu0 0.0
  %2667 = vmatpush1.msra.mxu0 0.0
  %2668 = vmatprep.mubr.f32.mxu0 0.0
  %2669 = vmatmul.mubr.f32.gmra.mrb[0].mxu0 %v2531
  %v2670 = vpop.f32.mrb[0].mxu0
  %v2671 = vadd.f32 0.0, %v2670
  %v2672 = vpop.f32.mrb[0].mxu0
  %v2673 = vadd.f32 0.0, %v2672
  %2674 = vdwg.mxu0
  %2675 = vrot.lane.b32.xlu0 %v2600, 113
  %v2676 = vpop.permute.xlu0 %2675
  %2677 = vrot.lane.b32.xlu0 %v2602, 113
  %v2678 = vpop.permute.xlu0 %2677
  %2679 = vrot.lane.b32.xlu0 %v2671, 113
  %v2680 = vpop.permute.xlu0 %2679
  %2681 = vrot.lane.b32.xlu0 %v2673, 113
  %v2682 = vpop.permute.xlu0 %2681
  %v2683 = vsel %vm222, %v2680, %v2682
  %v2684 = vsel %vm222, %v2678, %v2680
  %v2685 = vsel %vm222, %v2676, %v2678
  %v2686 = vsel %vm222, %v2682, %v2676
  %v2687 = vmul.f32 %v2685, %v230
  %v2688 = vmul.f32 %v2684, %v234
  %v2689 = vmul.f32 %v2683, %v238
  %v2690 = vmul.f32 %v2686, %v242
  %v2691 = vadd.f32 %v2524, %v2687
  %v2692 = vadd.f32 %v2525, %v2688
  %v2693 = vadd.f32 %v2526, %v2689
  %v2694 = vadd.f32 %v2527, %v2690
  %s2695 = scalar_lea.vmem %s8, 14
  %v2696 = vld [vmem:[%s2695] sm:$0x3]
  %v2698 = vsel %vm1129, %v2696, 0
  %2700 = vmatprep.subr.mxu0 %v1532
  %2701 = vmatpush1.msra.mxu0 %v1531
  %2702 = vmatprep.subr.mxu0 %v1536
  %2703 = vmatpush1.msra.mxu0 %v1535
  %2704 = vmatprep.subr.mxu0 %v1540
  %2705 = vmatpush1.msra.mxu0 %v1539
  %2706 = vmatprep.subr.mxu0 %v1544
  %2707 = vmatpush1.msra.mxu0 %v1543
  %2708 = vmatprep.subr.mxu0 0.0
  %2709 = vmatpush1.msra.mxu0 0.0
  %2710 = vmatprep.subr.mxu0 0.0
  %2711 = vmatpush1.msra.mxu0 0.0
  %2712 = vmatprep.subr.mxu0 0.0
  %2713 = vmatpush1.msra.mxu0 0.0
  %2714 = vmatprep.subr.mxu0 0.0
  %2715 = vmatpush1.msra.mxu0 0.0
  %2716 = vmatprep.subr.mxu0 0.0
  %2717 = vmatpush1.msra.mxu0 0.0
  %2718 = vmatprep.subr.mxu0 0.0
  %2719 = vmatpush1.msra.mxu0 0.0
  %2720 = vmatprep.subr.mxu0 0.0
  %2721 = vmatpush1.msra.mxu0 0.0
  %2722 = vmatprep.subr.mxu0 0.0
  %2723 = vmatpush1.msra.mxu0 0.0
  %2724 = vmatprep.subr.mxu0 0.0
  %2725 = vmatpush1.msra.mxu0 0.0
  %2726 = vmatprep.subr.mxu0 0.0
  %2727 = vmatpush1.msra.mxu0 0.0
  %2728 = vmatprep.subr.mxu0 0.0
  %2729 = vmatpush1.msra.mxu0 0.0
  %2730 = vmatprep.subr.mxu0 0.0
  %2731 = vmatpush1.msra.mxu0 0.0
  %2732 = vmatprep.subr.mxu0 0.0
  %2733 = vmatpush1.msra.mxu0 0.0
  %2734 = vmatprep.subr.mxu0 0.0
  %2735 = vmatpush1.msra.mxu0 0.0
  %2736 = vmatprep.subr.mxu0 0.0
  %2737 = vmatpush1.msra.mxu0 0.0
  %2738 = vmatprep.subr.mxu0 0.0
  %2739 = vmatpush1.msra.mxu0 0.0
  %2740 = vmatprep.subr.mxu0 0.0
  %2741 = vmatpush1.msra.mxu0 0.0
  %2742 = vmatprep.subr.mxu0 0.0
  %2743 = vmatpush1.msra.mxu0 0.0
  %2744 = vmatprep.subr.mxu0 0.0
  %2745 = vmatpush1.msra.mxu0 0.0
  %2746 = vmatprep.subr.mxu0 0.0
  %2747 = vmatpush1.msra.mxu0 0.0
  %2748 = vmatprep.subr.mxu0 0.0
  %2749 = vmatpush1.msra.mxu0 0.0
  %2750 = vmatprep.subr.mxu0 0.0
  %2751 = vmatpush1.msra.mxu0 0.0
  %2752 = vmatprep.subr.mxu0 0.0
  %2753 = vmatpush1.msra.mxu0 0.0
  %2754 = vmatprep.subr.mxu0 0.0
  %2755 = vmatpush1.msra.mxu0 0.0
  %2756 = vmatprep.subr.mxu0 0.0
  %2757 = vmatpush1.msra.mxu0 0.0
  %2758 = vmatprep.subr.mxu0 0.0
  %2759 = vmatpush1.msra.mxu0 0.0
  %2760 = vmatprep.subr.mxu0 0.0
  %2761 = vmatpush1.msra.mxu0 0.0
  %2762 = vmatprep.subr.mxu0 0.0
  %2763 = vmatpush1.msra.mxu0 0.0
  %2764 = vmatprep.mubr.f32.mxu0 0.0
  %2765 = vmatmul.mubr.f32.gmra.mrb[0].mxu0 %v2698
  %v2766 = vpop.f32.mrb[0].mxu0
  %v2767 = vadd.f32 0.0, %v2766
  %v2768 = vpop.f32.mrb[0].mxu0
  %v2769 = vadd.f32 0.0, %v2768
  %2770 = vdwg.mxu0
  %2771 = vmatprep.subr.mxu0 %v1534
  %2772 = vmatpush1.msra.mxu0 %v1533
  %2773 = vmatprep.subr.mxu0 %v1538
  %2774 = vmatpush1.msra.mxu0 %v1537
  %2775 = vmatprep.subr.mxu0 %v1542
  %2776 = vmatpush1.msra.mxu0 %v1541
  %2777 = vmatprep.subr.mxu0 %v1546
  %2778 = vmatpush1.msra.mxu0 %v1545
  %2779 = vmatprep.subr.mxu0 0.0
  %2780 = vmatpush1.msra.mxu0 0.0
  %2781 = vmatprep.subr.mxu0 0.0
  %2782 = vmatpush1.msra.mxu0 0.0
  %2783 = vmatprep.subr.mxu0 0.0
  %2784 = vmatpush1.msra.mxu0 0.0
  %2785 = vmatprep.subr.mxu0 0.0
  %2786 = vmatpush1.msra.mxu0 0.0
  %2787 = vmatprep.subr.mxu0 0.0
  %2788 = vmatpush1.msra.mxu0 0.0
  %2789 = vmatprep.subr.mxu0 0.0
  %2790 = vmatpush1.msra.mxu0 0.0
  %2791 = vmatprep.subr.mxu0 0.0
  %2792 = vmatpush1.msra.mxu0 0.0
  %2793 = vmatprep.subr.mxu0 0.0
  %2794 = vmatpush1.msra.mxu0 0.0
  %2795 = vmatprep.subr.mxu0 0.0
  %2796 = vmatpush1.msra.mxu0 0.0
  %2797 = vmatprep.subr.mxu0 0.0
  %2798 = vmatpush1.msra.mxu0 0.0
  %2799 = vmatprep.subr.mxu0 0.0
  %2800 = vmatpush1.msra.mxu0 0.0
  %2801 = vmatprep.subr.mxu0 0.0
  %2802 = vmatpush1.msra.mxu0 0.0
  %2803 = vmatprep.subr.mxu0 0.0
  %2804 = vmatpush1.msra.mxu0 0.0
  %2805 = vmatprep.subr.mxu0 0.0
  %2806 = vmatpush1.msra.mxu0 0.0
  %2807 = vmatprep.subr.mxu0 0.0
  %2808 = vmatpush1.msra.mxu0 0.0
  %2809 = vmatprep.subr.mxu0 0.0
  %2810 = vmatpush1.msra.mxu0 0.0
  %2811 = vmatprep.subr.mxu0 0.0
  %2812 = vmatpush1.msra.mxu0 0.0
  %2813 = vmatprep.subr.mxu0 0.0
  %2814 = vmatpush1.msra.mxu0 0.0
  %2815 = vmatprep.subr.mxu0 0.0
  %2816 = vmatpush1.msra.mxu0 0.0
  %2817 = vmatprep.subr.mxu0 0.0
  %2818 = vmatpush1.msra.mxu0 0.0
  %2819 = vmatprep.subr.mxu0 0.0
  %2820 = vmatpush1.msra.mxu0 0.0
  %2821 = vmatprep.subr.mxu0 0.0
  %2822 = vmatpush1.msra.mxu0 0.0
  %2823 = vmatprep.subr.mxu0 0.0
  %2824 = vmatpush1.msra.mxu0 0.0
  %2825 = vmatprep.subr.mxu0 0.0
  %2826 = vmatpush1.msra.mxu0 0.0
  %2827 = vmatprep.subr.mxu0 0.0
  %2828 = vmatpush1.msra.mxu0 0.0
  %2829 = vmatprep.subr.mxu0 0.0
  %2830 = vmatpush1.msra.mxu0 0.0
  %2831 = vmatprep.subr.mxu0 0.0
  %2832 = vmatpush1.msra.mxu0 0.0
  %2833 = vmatprep.subr.mxu0 0.0
  %2834 = vmatpush1.msra.mxu0 0.0
  %2835 = vmatprep.mubr.f32.mxu0 0.0
  %2836 = vmatmul.mubr.f32.gmra.mrb[0].mxu0 %v2698
  %v2837 = vpop.f32.mrb[0].mxu0
  %v2838 = vadd.f32 0.0, %v2837
  %v2839 = vpop.f32.mrb[0].mxu0
  %v2840 = vadd.f32 0.0, %v2839
  %2841 = vdwg.mxu0
  %2842 = vrot.lane.b32.xlu0 %v2767, 112
  %v2843 = vpop.permute.xlu0 %2842
  %2844 = vrot.lane.b32.xlu0 %v2769, 112
  %v2845 = vpop.permute.xlu0 %2844
  %2846 = vrot.lane.b32.xlu0 %v2838, 112
  %v2847 = vpop.permute.xlu0 %2846
  %2848 = vrot.lane.b32.xlu0 %v2840, 112
  %v2849 = vpop.permute.xlu0 %2848
  %v2850 = vsel %vm255, %v2847, %v2849
  %v2851 = vsel %vm255, %v2845, %v2847
  %v2852 = vsel %vm255, %v2843, %v2845
  %v2853 = vsel %vm255, %v2849, %v2843
  %v2854 = vmul.f32 %v2852, %v263
  %v2855 = vmul.f32 %v2851, %v267
  %v2856 = vmul.f32 %v2850, %v271
  %v2857 = vmul.f32 %v2853, %v275
  %v2858 = vadd.f32 %v2691, %v2854
  %v2859 = vadd.f32 %v2692, %v2855
  %v2860 = vadd.f32 %v2693, %v2856
  %v2861 = vadd.f32 %v2694, %v2857
  %s2862 = scalar_lea.vmem %s8, 16
  %v2863 = vld [vmem:[%s2862] sm:$0x3]
  %v2865 = vsel %vm1129, %v2863, 0
  %2867 = vmatprep.subr.mxu0 %v1532
  %2868 = vmatpush1.msra.mxu0 %v1531
  %2869 = vmatprep.subr.mxu0 %v1536
  %2870 = vmatpush1.msra.mxu0 %v1535
  %2871 = vmatprep.subr.mxu0 %v1540
  %2872 = vmatpush1.msra.mxu0 %v1539
  %2873 = vmatprep.subr.mxu0 %v1544
  %2874 = vmatpush1.msra.mxu0 %v1543
  %2875 = vmatprep.subr.mxu0 0.0
  %2876 = vmatpush1.msra.mxu0 0.0
  %2877 = vmatprep.subr.mxu0 0.0
  %2878 = vmatpush1.msra.mxu0 0.0
  %2879 = vmatprep.subr.mxu0 0.0
  %2880 = vmatpush1.msra.mxu0 0.0
  %2881 = vmatprep.subr.mxu0 0.0
  %2882 = vmatpush1.msra.mxu0 0.0
  %2883 = vmatprep.subr.mxu0 0.0
  %2884 = vmatpush1.msra.mxu0 0.0
  %2885 = vmatprep.subr.mxu0 0.0
  %2886 = vmatpush1.msra.mxu0 0.0
  %2887 = vmatprep.subr.mxu0 0.0
  %2888 = vmatpush1.msra.mxu0 0.0
  %2889 = vmatprep.subr.mxu0 0.0
  %2890 = vmatpush1.msra.mxu0 0.0
  %2891 = vmatprep.subr.mxu0 0.0
  %2892 = vmatpush1.msra.mxu0 0.0
  %2893 = vmatprep.subr.mxu0 0.0
  %2894 = vmatpush1.msra.mxu0 0.0
  %2895 = vmatprep.subr.mxu0 0.0
  %2896 = vmatpush1.msra.mxu0 0.0
  %2897 = vmatprep.subr.mxu0 0.0
  %2898 = vmatpush1.msra.mxu0 0.0
  %2899 = vmatprep.subr.mxu0 0.0
  %2900 = vmatpush1.msra.mxu0 0.0
  %2901 = vmatprep.subr.mxu0 0.0
  %2902 = vmatpush1.msra.mxu0 0.0
  %2903 = vmatprep.subr.mxu0 0.0
  %2904 = vmatpush1.msra.mxu0 0.0
  %2905 = vmatprep.subr.mxu0 0.0
  %2906 = vmatpush1.msra.mxu0 0.0
  %2907 = vmatprep.subr.mxu0 0.0
  %2908 = vmatpush1.msra.mxu0 0.0
  %2909 = vmatprep.subr.mxu0 0.0
  %2910 = vmatpush1.msra.mxu0 0.0
  %2911 = vmatprep.subr.mxu0 0.0
  %2912 = vmatpush1.msra.mxu0 0.0
  %2913 = vmatprep.subr.mxu0 0.0
  %2914 = vmatpush1.msra.mxu0 0.0
  %2915 = vmatprep.subr.mxu0 0.0
  %2916 = vmatpush1.msra.mxu0 0.0
  %2917 = vmatprep.subr.mxu0 0.0
  %2918 = vmatpush1.msra.mxu0 0.0
  %2919 = vmatprep.subr.mxu0 0.0
  %2920 = vmatpush1.msra.mxu0 0.0
  %2921 = vmatprep.subr.mxu0 0.0
  %2922 = vmatpush1.msra.mxu0 0.0
  %2923 = vmatprep.subr.mxu0 0.0
  %2924 = vmatpush1.msra.mxu0 0.0
  %2925 = vmatprep.subr.mxu0 0.0
  %2926 = vmatpush1.msra.mxu0 0.0
  %2927 = vmatprep.subr.mxu0 0.0
  %2928 = vmatpush1.msra.mxu0 0.0
  %2929 = vmatprep.subr.mxu0 0.0
  %2930 = vmatpush1.msra.mxu0 0.0
  %2931 = vmatprep.mubr.f32.mxu0 0.0
  %2932 = vmatmul.mubr.f32.gmra.mrb[0].mxu0 %v2865
  %v2933 = vpop.f32.mrb[0].mxu0
  %v2934 = vadd.f32 0.0, %v2933
  %v2935 = vpop.f32.mrb[0].mxu0
  %v2936 = vadd.f32 0.0, %v2935
  %2937 = vdwg.mxu0
  %2938 = vmatprep.subr.mxu0 %v1534
  %2939 = vmatpush1.msra.mxu0 %v1533
  %2940 = vmatprep.subr.mxu0 %v1538
  %2941 = vmatpush1.msra.mxu0 %v1537
  %2942 = vmatprep.subr.mxu0 %v1542
  %2943 = vmatpush1.msra.mxu0 %v1541
  %2944 = vmatprep.subr.mxu0 %v1546
  %2945 = vmatpush1.msra.mxu0 %v1545
  %2946 = vmatprep.subr.mxu0 0.0
  %2947 = vmatpush1.msra.mxu0 0.0
  %2948 = vmatprep.subr.mxu0 0.0
  %2949 = vmatpush1.msra.mxu0 0.0
  %2950 = vmatprep.subr.mxu0 0.0
  %2951 = vmatpush1.msra.mxu0 0.0
  %2952 = vmatprep.subr.mxu0 0.0
  %2953 = vmatpush1.msra.mxu0 0.0
  %2954 = vmatprep.subr.mxu0 0.0
  %2955 = vmatpush1.msra.mxu0 0.0
  %2956 = vmatprep.subr.mxu0 0.0
  %2957 = vmatpush1.msra.mxu0 0.0
  %2958 = vmatprep.subr.mxu0 0.0
  %2959 = vmatpush1.msra.mxu0 0.0
  %2960 = vmatprep.subr.mxu0 0.0
  %2961 = vmatpush1.msra.mxu0 0.0
  %2962 = vmatprep.subr.mxu0 0.0
  %2963 = vmatpush1.msra.mxu0 0.0
  %2964 = vmatprep.subr.mxu0 0.0
  %2965 = vmatpush1.msra.mxu0 0.0
  %2966 = vmatprep.subr.mxu0 0.0
  %2967 = vmatpush1.msra.mxu0 0.0
  %2968 = vmatprep.subr.mxu0 0.0
  %2969 = vmatpush1.msra.mxu0 0.0
  %2970 = vmatprep.subr.mxu0 0.0
  %2971 = vmatpush1.msra.mxu0 0.0
  %2972 = vmatprep.subr.mxu0 0.0
  %2973 = vmatpush1.msra.mxu0 0.0
  %2974 = vmatprep.subr.mxu0 0.0
  %2975 = vmatpush1.msra.mxu0 0.0
  %2976 = vmatprep.subr.mxu0 0.0
  %2977 = vmatpush1.msra.mxu0 0.0
  %2978 = vmatprep.subr.mxu0 0.0
  %2979 = vmatpush1.msra.mxu0 0.0
  %2980 = vmatprep.subr.mxu0 0.0
  %2981 = vmatpush1.msra.mxu0 0.0
  %2982 = vmatprep.subr.mxu0 0.0
  %2983 = vmatpush1.msra.mxu0 0.0
  %2984 = vmatprep.subr.mxu0 0.0
  %2985 = vmatpush1.msra.mxu0 0.0
  %2986 = vmatprep.subr.mxu0 0.0
  %2987 = vmatpush1.msra.mxu0 0.0
  %2988 = vmatprep.subr.mxu0 0.0
  %2989 = vmatpush1.msra.mxu0 0.0
  %2990 = vmatprep.subr.mxu0 0.0
  %2991 = vmatpush1.msra.mxu0 0.0
  %2992 = vmatprep.subr.mxu0 0.0
  %2993 = vmatpush1.msra.mxu0 0.0
  %2994 = vmatprep.subr.mxu0 0.0
  %2995 = vmatpush1.msra.mxu0 0.0
  %2996 = vmatprep.subr.mxu0 0.0
  %2997 = vmatpush1.msra.mxu0 0.0
  %2998 = vmatprep.subr.mxu0 0.0
  %2999 = vmatpush1.msra.mxu0 0.0
  %3000 = vmatprep.subr.mxu0 0.0
  %3001 = vmatpush1.msra.mxu0 0.0
  %3002 = vmatprep.mubr.f32.mxu0 0.0
  %3003 = vmatmul.mubr.f32.gmra.mrb[0].mxu0 %v2865
  %v3004 = vpop.f32.mrb[0].mxu0
  %v3005 = vadd.f32 0.0, %v3004
  %v3006 = vpop.f32.mrb[0].mxu0
  %v3007 = vadd.f32 0.0, %v3006
  %3008 = vdwg.mxu0
  %3009 = vrot.lane.b32.xlu0 %v2934, 111
  %v3010 = vpop.permute.xlu0 %3009
  %3011 = vrot.lane.b32.xlu0 %v2936, 111
  %v3012 = vpop.permute.xlu0 %3011
  %3013 = vrot.lane.b32.xlu0 %v3005, 111
  %v3014 = vpop.permute.xlu0 %3013
  %3015 = vrot.lane.b32.xlu0 %v3007, 111
  %v3016 = vpop.permute.xlu0 %3015
  %v3017 = vsel %vm288, %v3014, %v3016
  %v3018 = vsel %vm288, %v3012, %v3014
  %v3019 = vsel %vm288, %v3010, %v3012
  %v3020 = vsel %vm288, %v3016, %v3010
  %v3021 = vmul.f32 %v3019, %v296
  %v3022 = vmul.f32 %v3018, %v300
  %v3023 = vmul.f32 %v3017, %v304
  %v3024 = vmul.f32 %v3020, %v308
  %v3025 = vadd.f32 %v2858, %v3021
  %v3026 = vadd.f32 %v2859, %v3022
  %v3027 = vadd.f32 %v2860, %v3023
  %v3028 = vadd.f32 %v2861, %v3024
  %v3029 = vld [vmem:[%s9] sm:$0x3]
  %3031 = vset.pattern.permute.xlu0 0
  %3032 = vperm.xlu0 %3031, %v3029
  %v3033 = vpop.permute.xlu0 %3032
  %v3035 = vadd.f32 %v3025, %v3033
  %v3036 = vadd.f32 %v3026, %v3033
  %v3037 = vadd.f32 %v3027, %v3033
  %v3038 = vadd.f32 %v3028, %v3033
  %v3039 = vadd.f32 %v3035, %v37
  %v3040 = vadd.f32 %v3036, %v38
  %v3041 = vadd.f32 %v3037, %v39
  %v3042 = vadd.f32 %v3038, %v40
  %v3047 = vcombine.low %v3039, %v3040
  %v3048 = vcombine.low %v3041, %v3042
  %v3050 = vunpack.c.l.s4 1983009808
  %v3051 = vunpack.c.0.s8 %v3050
  %v3052 = vlaneseq
  %v3053 = vshrl.u32 %v3052, 7
  %v3054 = vsub.s32 %v3051, %v3053
  %v3055 = vrot.slane %v3047, %v3054
  %v3057 = vunpack.c.l.s4 1983009808
  %v3058 = vunpack.c.0.s8 %v3057
  %v3059 = vlaneseq
  %v3060 = vshrl.u32 %v3059, 7
  %v3061 = vsub.s32 %v3058, %v3060
  %v3062 = vrot.slane %v3048, %v3061
  %v3063 = vcombine.low %v3055, %v3062
  %3065 = vst [vmem:[%s10] sm:$0xff] %v3063
  // Predicated region
  $region42: #{dual_network_forward.1} parent=0 // pred_check
    _
  $region43: #{dual_network_forward.1} parent=0 // pred_check_branch
    %3067 = sbr.rel (0) target = $region45
  $region44: #{dual_network_forward.1} parent=0 // pred_region
    _
  $region45: #{dual_network_forward.1} parent=0 // pred_fallthru
    _
  // Predicated region
  $region46: #{dual_network_forward.1} parent=0 // pred_check
    _
  $region47: #{dual_network_forward.1} parent=0 // pred_check_branch
    %3069 = sbr.rel (0) target = $region49
  $region48: #{dual_network_forward.1} parent=0 // pred_region
    _
  $region49: #{dual_network_forward.1} parent=0 // pred_fallthru
    _

</llo_original>
